<compile_context>
chip_gen: v7x
topology: tpu7x:2x2x1
jax: 0.10.0
libtpu: 0.0.40
codegen_flags: <defaults>
</compile_context>

<pallas_src>
import jax
import jax.numpy as jnp
from jax.experimental import pallas as pl
from jax.experimental.pallas import tpu as pltpu

# Logical (PyTorch) dims
INPUT_DIM = 200            # 100 * 2
INT_DIM = 100
OUTPUT_DIMS = (1, 20, 20)
OUTPUT_DIM = 1 * 20 * 20   # 400
N_BLOCKS = 12              # layers=[3,3,3,3] -> 12 ResBlocks
BN_EPS = 1e-5

# Lane-padded dims (f32 vreg lane width = 128)
INPUT_PAD = 256
INT_PAD = 128
OUTPUT_PAD = 512


def _sigmoid(x):
    # lax.logistic lowers through the EUP on TPU (exp/reciprocal slots).
    return jax.nn.sigmoid(x)


def _bn_fused(x, gamma, beta):
    # nn.BatchNorm1d training mode: biased batch stats over the batch dim,
    # fused into y = x*scale + shift. Padded lanes have gamma=0, beta=0 and
    # x=0, so they stay exactly 0 (var=0 is harmless: scale = 0 * rsqrt(eps)).
    mean = jnp.mean(x, axis=0, keepdims=True)
    var = jnp.mean(jnp.square(x - mean), axis=0, keepdims=True)
    scale = gamma * jax.lax.rsqrt(var + BN_EPS)
    shift = beta - mean * scale
    return x * scale + shift


def resnet_kernel(x_ref,
                  w1_ref, b1_ref, g1_ref, bt1_ref,
                  wa_ref, ba_ref, ga_ref, bta_ref,
                  wb_ref, bb_ref, gb_ref, btb_ref,
                  wf_ref, bf_ref,
                  out_ref):
    x = x_ref[...]

    # Stem: Linear(256p,128p) -> BN -> Sigmoid
    h = jnp.dot(x, w1_ref[...], preferred_element_type=jnp.float32) + b1_ref[...]
    h = _sigmoid(_bn_fused(h, g1_ref[...], bt1_ref[...]))

    # 12 ResBlocks (statically unrolled; tiny live set, no spill risk)
    for i in range(N_BLOCKS):
        res = h
        t = jnp.dot(h, wa_ref[i], preferred_element_type=jnp.float32) + ba_ref[i]
        t = _sigmoid(_bn_fused(t, ga_ref[i], bta_ref[i]))
        t = jnp.dot(t, wb_ref[i], preferred_element_type=jnp.float32) + bb_ref[i]
        t = _bn_fused(t, gb_ref[i], btb_ref[i])
        h = _sigmoid(t + res)

    # fc: Linear(128p, 512p); ones-bias already folded into bf. Lane-dense store.
    y = jnp.dot(h, wf_ref[...], preferred_element_type=jnp.float32) + bf_ref[...]
    out_ref[...] = _sigmoid(y)


def resnet_forward(x, padded_params):
    B = x.shape[0]
    # zero-pad input features 200 -> 256 (matching padded weight rows are zero)
    x_pad = jnp.zeros((B, INPUT_PAD), jnp.float32).at[:, :INPUT_DIM].set(x)

    def full_spec(a):
        nd = a.ndim
        return pl.BlockSpec(a.shape, lambda _i, _nd=nd: (0,) * _nd)

    args = (x_pad,) + tuple(padded_params)
    out = pl.pallas_call(
        resnet_kernel,
        out_shape=jax.ShapeDtypeStruct((B, OUTPUT_PAD), jnp.float32),
        grid=(1,),
        in_specs=[full_spec(a) for a in args],
        out_specs=pl.BlockSpec((B, OUTPUT_PAD), lambda _i: (0, 0)),
        compiler_params=pltpu.CompilerParams(
            dimension_semantics=("arbitrary",)),
    )(*args)
    # slice padded lanes off, then match torch: x.view(-1, 1, 20, 20)
    return out[:, :OUTPUT_DIM].reshape(B, *OUTPUT_DIMS)


def init_params(key):
    """Logical (unpadded) parameters, matching PyTorch layouts transposed to (in,out)."""
    keys = jax.random.split(key, 4)

    def lin(k, fan_in, fan_out):
        # PyTorch nn.Linear default init: U(-1/sqrt(fan_in), 1/sqrt(fan_in))
        bound = 1.0 / float(fan_in) ** 0.5
        kw, kb = jax.random.split(k)
        w = jax.random.uniform(kw, (fan_in, fan_out), jnp.float32, -bound, bound)
        b = jax.random.uniform(kb, (fan_out,), jnp.float32, -bound, bound)
        return w, b

    w1, b1 = lin(keys[0], INPUT_DIM, INT_DIM)
    b1 = b1.reshape(1, INT_DIM)
    g1 = jnp.ones((1, INT_DIM), jnp.float32)
    bt1 = jnp.zeros((1, INT_DIM), jnp.float32)

    ka = jax.random.split(keys[1], N_BLOCKS)
    kb = jax.random.split(keys[2], N_BLOCKS)
    was, bas, wbs, bbs = [], [], [], []
    for i in range(N_BLOCKS):
        w, b = lin(ka[i], INT_DIM, INT_DIM)
        was.append(w); bas.append(b)
        w, b = lin(kb[i], INT_DIM, INT_DIM)
        wbs.append(w); bbs.append(b)
    wa = jnp.stack(was)
    ba = jnp.stack(bas).reshape(N_BLOCKS, 1, INT_DIM)
    wb = jnp.stack(wbs)
    bb = jnp.stack(bbs).reshape(N_BLOCKS, 1, INT_DIM)
    ga = jnp.ones((N_BLOCKS, 1, INT_DIM), jnp.float32)
    bta = jnp.zeros((N_BLOCKS, 1, INT_DIM), jnp.float32)
    gb = jnp.ones((N_BLOCKS, 1, INT_DIM), jnp.float32)
    btb = jnp.zeros((N_BLOCKS, 1, INT_DIM), jnp.float32)

    wf, bf = lin(keys[3], INT_DIM, OUTPUT_DIM)
    bf = bf.reshape(1, OUTPUT_DIM)
    # self.bias = nn.Parameter(torch.ones(output_dims)) -> flattened (1, 400)
    obias = jnp.ones((1, OUTPUT_DIM), jnp.float32)

    return (w1, b1, g1, bt1, wa, ba, ga, bta, wb, bb, gb, btb, wf, bf, obias)


def pad_params(params):
    """Zero-pad to lane-aligned shapes; fold the ones output bias into the fc bias."""
    (w1, b1, g1, bt1, wa, ba, ga, bta, wb, bb, gb, btb, wf, bf, obias) = params

    def pad_to(a, shape):
        out = jnp.zeros(shape, a.dtype)
        return out.at[tuple(slice(0, s) for s in a.shape)].set(a)

    w1p = pad_to(w1, (INPUT_PAD, INT_PAD))
    b1p = pad_to(b1, (1, INT_PAD))
    g1p = pad_to(g1, (1, INT_PAD))                 # padded lanes: gamma=0
    bt1p = pad_to(bt1, (1, INT_PAD))               # padded lanes: beta=0

    wap = pad_to(wa, (N_BLOCKS, INT_PAD, INT_PAD))
    bap = pad_to(ba, (N_BLOCKS, 1, INT_PAD))
    gap = pad_to(ga, (N_BLOCKS, 1, INT_PAD))
    btap = pad_to(bta, (N_BLOCKS, 1, INT_PAD))
    wbp = pad_to(wb, (N_BLOCKS, INT_PAD, INT_PAD))
    bbp = pad_to(bb, (N_BLOCKS, 1, INT_PAD))
    gbp = pad_to(gb, (N_BLOCKS, 1, INT_PAD))
    btbp = pad_to(btb, (N_BLOCKS, 1, INT_PAD))

    wfp = pad_to(wf, (INT_PAD, OUTPUT_PAD))
    bfp = pad_to(bf + obias, (1, OUTPUT_PAD))      # fold constant ones bias

    return (w1p, b1p, g1p, bt1p, wap, bap, gap, btap,
            wbp, bbp, gbp, btbp, wfp, bfp)


# --------------------------- pure-JAX reference ---------------------------
def _bn_ref(x, gamma, beta):
    mean = jnp.mean(x, axis=0, keepdims=True)
    var = jnp.mean(jnp.square(x - mean), axis=0, keepdims=True)
    return gamma * (x - mean) * jax.lax.rsqrt(var + BN_EPS) + beta


def resnet_reference(x, params):
    (w1, b1, g1, bt1, wa, ba, ga, bta, wb, bb, gb, btb, wf, bf, obias) = params
    h = jax.nn.sigmoid(_bn_ref(x @ w1 + b1, g1, bt1))
    for i in range(N_BLOCKS):
        res = h
        t = jax.nn.sigmoid(_bn_ref(h @ wa[i] + ba[i], ga[i], bta[i]))
        t = _bn_ref(t @ wb[i] + bb[i], gb[i], btb[i])
        h = jax.nn.sigmoid(t + res)
    y = h @ wf + bf
    return jax.nn.sigmoid(y + obias).reshape(x.shape[0], *OUTPUT_DIMS)


if __name__ == "__main__":
    key = jax.random.PRNGKey(0)
    kx, kp = jax.random.split(key)
    B = 16
    x = jax.random.normal(kx, (B, INPUT_DIM), jnp.float32)
    params = init_params(kp)
    padded = pad_params(params)

    out = jax.block_until_ready(resnet_forward(x, padded))
    ref = resnet_reference(x, params)

    assert out.shape == (B, *OUTPUT_DIMS)
    assert bool(jnp.allclose(out, ref, atol=1e-4, rtol=1e-4))
    print("KERNEL_OK")
</pallas_src>

<mosaic_0001>
module attributes {stable_mosaic.version = 11 : i64} {
  func.func @resnet_kernel(%arg0: i32, %arg1: memref<16x256xf32, #tpu.memory_space<vmem>>, %arg2: memref<256x128xf32, #tpu.memory_space<vmem>>, %arg3: memref<1x128xf32, #tpu.memory_space<vmem>>, %arg4: memref<1x128xf32, #tpu.memory_space<vmem>>, %arg5: memref<1x128xf32, #tpu.memory_space<vmem>>, %arg6: memref<12x128x128xf32, #tpu.memory_space<vmem>>, %arg7: memref<12x1x128xf32, #tpu.memory_space<vmem>>, %arg8: memref<12x1x128xf32, #tpu.memory_space<vmem>>, %arg9: memref<12x1x128xf32, #tpu.memory_space<vmem>>, %arg10: memref<12x128x128xf32, #tpu.memory_space<vmem>>, %arg11: memref<12x1x128xf32, #tpu.memory_space<vmem>>, %arg12: memref<12x1x128xf32, #tpu.memory_space<vmem>>, %arg13: memref<12x1x128xf32, #tpu.memory_space<vmem>>, %arg14: memref<128x512xf32, #tpu.memory_space<vmem>>, %arg15: memref<1x512xf32, #tpu.memory_space<vmem>>, %arg16: memref<16x512xf32, #tpu.memory_space<vmem>>) attributes {dimension_semantics = [#tpu.dimension_semantics<arbitrary>], iteration_bounds = array<i64: 1>, scalar_prefetch = 0 : i64, scratch_operands = 0 : i64, tpu.core_type = #tpu.core_type<tc>, window_params = [{pipeline_mode = #tpu.pipeline_mode<synchronous>, transform_indices = @transform_0, window_bounds = array<i64: 16, 256>}, {pipeline_mode = #tpu.pipeline_mode<synchronous>, transform_indices = @transform_1, window_bounds = array<i64: 256, 128>}, {pipeline_mode = #tpu.pipeline_mode<synchronous>, transform_indices = @transform_2, window_bounds = array<i64: 1, 128>}, {pipeline_mode = #tpu.pipeline_mode<synchronous>, transform_indices = @transform_3, window_bounds = array<i64: 1, 128>}, {pipeline_mode = #tpu.pipeline_mode<synchronous>, transform_indices = @transform_4, window_bounds = array<i64: 1, 128>}, {pipeline_mode = #tpu.pipeline_mode<synchronous>, transform_indices = @transform_5, window_bounds = array<i64: 12, 128, 128>}, {pipeline_mode = #tpu.pipeline_mode<synchronous>, transform_indices = @transform_6, window_bounds = array<i64: 12, 1, 128>}, {pipeline_mode = #tpu.pipeline_mode<synchronous>, transform_indices = @transform_7, window_bounds = array<i64: 12, 1, 128>}, {pipeline_mode = #tpu.pipeline_mode<synchronous>, transform_indices = @transform_8, window_bounds = array<i64: 12, 1, 128>}, {pipeline_mode = #tpu.pipeline_mode<synchronous>, transform_indices = @transform_9, window_bounds = array<i64: 12, 128, 128>}, {pipeline_mode = #tpu.pipeline_mode<synchronous>, transform_indices = @transform_10, window_bounds = array<i64: 12, 1, 128>}, {pipeline_mode = #tpu.pipeline_mode<synchronous>, transform_indices = @transform_11, window_bounds = array<i64: 12, 1, 128>}, {pipeline_mode = #tpu.pipeline_mode<synchronous>, transform_indices = @transform_12, window_bounds = array<i64: 12, 1, 128>}, {pipeline_mode = #tpu.pipeline_mode<synchronous>, transform_indices = @transform_13, window_bounds = array<i64: 128, 512>}, {pipeline_mode = #tpu.pipeline_mode<synchronous>, transform_indices = @transform_14, window_bounds = array<i64: 1, 512>}, {pipeline_mode = #tpu.pipeline_mode<synchronous>, transform_indices = @transform_15, window_bounds = array<i64: 16, 512>}]} {
    %c0 = arith.constant 0 : index
    %c0_0 = arith.constant 0 : index
    %0 = vector.load %arg1[%c0, %c0_0] : memref<16x256xf32, #tpu.memory_space<vmem>>, vector<16x256xf32>
    %c0_1 = arith.constant 0 : index
    %c0_2 = arith.constant 0 : index
    %1 = vector.load %arg2[%c0_1, %c0_2] : memref<256x128xf32, #tpu.memory_space<vmem>>, vector<256x128xf32>
    %cst = arith.constant dense<0.000000e+00> : vector<16x128xf32>
    %2 = tpu.matmul %0, %1, %cst {dimension_numbers = #tpu.dot_dimension_numbers<[1], [0], [0], [1], [0, 0, 1, 1], [], []>} : vector<16x256xf32>, vector<256x128xf32>, vector<16x128xf32> -> vector<16x128xf32>
    %c0_3 = arith.constant 0 : index
    %c0_4 = arith.constant 0 : index
    %3 = vector.load %arg3[%c0_3, %c0_4] : memref<1x128xf32, #tpu.memory_space<vmem>>, vector<1x128xf32>
    %4 = vector.broadcast %3 : vector<1x128xf32> to vector<16x128xf32>
    %5 = arith.addf %2, %4 : vector<16x128xf32>
    %c0_5 = arith.constant 0 : index
    %c0_6 = arith.constant 0 : index
    %6 = vector.load %arg4[%c0_5, %c0_6] : memref<1x128xf32, #tpu.memory_space<vmem>>, vector<1x128xf32>
    %c0_7 = arith.constant 0 : index
    %c0_8 = arith.constant 0 : index
    %7 = vector.load %arg5[%c0_7, %c0_8] : memref<1x128xf32, #tpu.memory_space<vmem>>, vector<1x128xf32>
    %cst_9 = arith.constant dense<0.000000e+00> : vector<128xf32>
    %8 = vector.multi_reduction <add>, %5, %cst_9 [0] : vector<16x128xf32> to vector<128xf32>
    %9 = vector.shape_cast %8 : vector<128xf32> to vector<1x128xf32>
    %cst_10 = arith.constant 1.600000e+01 : f32
    %10 = vector.broadcast %cst_10 : f32 to vector<1x128xf32>
    %11 = arith.divf %9, %10 : vector<1x128xf32>
    %12 = vector.broadcast %11 : vector<1x128xf32> to vector<16x128xf32>
    %13 = arith.subf %5, %12 : vector<16x128xf32>
    %14 = arith.mulf %13, %13 : vector<16x128xf32>
    %cst_11 = arith.constant dense<0.000000e+00> : vector<128xf32>
    %15 = vector.multi_reduction <add>, %14, %cst_11 [0] : vector<16x128xf32> to vector<128xf32>
    %16 = vector.shape_cast %15 : vector<128xf32> to vector<1x128xf32>
    %cst_12 = arith.constant 1.600000e+01 : f32
    %17 = vector.broadcast %cst_12 : f32 to vector<1x128xf32>
    %18 = arith.divf %16, %17 : vector<1x128xf32>
    %cst_13 = arith.constant 9.99999974E-6 : f32
    %19 = vector.broadcast %cst_13 : f32 to vector<1x128xf32>
    %20 = arith.addf %18, %19 : vector<1x128xf32>
    %21 = math.rsqrt %20 : vector<1x128xf32>
    %22 = arith.mulf %6, %21 : vector<1x128xf32>
    %23 = arith.mulf %11, %22 : vector<1x128xf32>
    %24 = arith.subf %7, %23 : vector<1x128xf32>
    %25 = vector.broadcast %22 : vector<1x128xf32> to vector<16x128xf32>
    %26 = arith.mulf %5, %25 : vector<16x128xf32>
    %27 = vector.broadcast %24 : vector<1x128xf32> to vector<16x128xf32>
    %28 = arith.addf %26, %27 : vector<16x128xf32>
    %29 = arith.negf %28 : vector<16x128xf32>
    %30 = math.exp %29 : vector<16x128xf32>
    %cst_14 = arith.constant 1.000000e+00 : f32
    %31 = vector.broadcast %cst_14 : f32 to vector<16x128xf32>
    %32 = arith.addf %31, %30 : vector<16x128xf32>
    %33 = arith.divf %31, %32 : vector<16x128xf32>
    %c0_15 = arith.constant 0 : index
    %c0_16 = arith.constant 0 : index
    %c0_17 = arith.constant 0 : index
    %34 = vector.load %arg6[%c0_15, %c0_16, %c0_17] : memref<12x128x128xf32, #tpu.memory_space<vmem>>, vector<1x128x128xf32>
    %35 = vector.shape_cast %34 : vector<1x128x128xf32> to vector<128x128xf32>
    %cst_18 = arith.constant dense<0.000000e+00> : vector<16x128xf32>
    %36 = tpu.matmul %33, %35, %cst_18 {dimension_numbers = #tpu.dot_dimension_numbers<[1], [0], [0], [1], [0, 0, 1, 1], [], []>} : vector<16x128xf32>, vector<128x128xf32>, vector<16x128xf32> -> vector<16x128xf32>
    %c0_19 = arith.constant 0 : index
    %c0_20 = arith.constant 0 : index
    %c0_21 = arith.constant 0 : index
    %37 = vector.load %arg7[%c0_19, %c0_20, %c0_21] : memref<12x1x128xf32, #tpu.memory_space<vmem>>, vector<1x1x128xf32>
    %38 = vector.shape_cast %37 : vector<1x1x128xf32> to vector<1x128xf32>
    %39 = vector.broadcast %38 : vector<1x128xf32> to vector<16x128xf32>
    %40 = arith.addf %36, %39 : vector<16x128xf32>
    %c0_22 = arith.constant 0 : index
    %c0_23 = arith.constant 0 : index
    %c0_24 = arith.constant 0 : index
    %41 = vector.load %arg8[%c0_22, %c0_23, %c0_24] : memref<12x1x128xf32, #tpu.memory_space<vmem>>, vector<1x1x128xf32>
    %42 = vector.shape_cast %41 : vector<1x1x128xf32> to vector<1x128xf32>
    %c0_25 = arith.constant 0 : index
    %c0_26 = arith.constant 0 : index
    %c0_27 = arith.constant 0 : index
    %43 = vector.load %arg9[%c0_25, %c0_26, %c0_27] : memref<12x1x128xf32, #tpu.memory_space<vmem>>, vector<1x1x128xf32>
    %44 = vector.shape_cast %43 : vector<1x1x128xf32> to vector<1x128xf32>
    %cst_28 = arith.constant dense<0.000000e+00> : vector<128xf32>
    %45 = vector.multi_reduction <add>, %40, %cst_28 [0] : vector<16x128xf32> to vector<128xf32>
    %46 = vector.shape_cast %45 : vector<128xf32> to vector<1x128xf32>
    %cst_29 = arith.constant 1.600000e+01 : f32
    %47 = vector.broadcast %cst_29 : f32 to vector<1x128xf32>
    %48 = arith.divf %46, %47 : vector<1x128xf32>
    %49 = vector.broadcast %48 : vector<1x128xf32> to vector<16x128xf32>
    %50 = arith.subf %40, %49 : vector<16x128xf32>
    %51 = arith.mulf %50, %50 : vector<16x128xf32>
    %cst_30 = arith.constant dense<0.000000e+00> : vector<128xf32>
    %52 = vector.multi_reduction <add>, %51, %cst_30 [0] : vector<16x128xf32> to vector<128xf32>
    %53 = vector.shape_cast %52 : vector<128xf32> to vector<1x128xf32>
    %cst_31 = arith.constant 1.600000e+01 : f32
    %54 = vector.broadcast %cst_31 : f32 to vector<1x128xf32>
    %55 = arith.divf %53, %54 : vector<1x128xf32>
    %cst_32 = arith.constant 9.99999974E-6 : f32
    %56 = vector.broadcast %cst_32 : f32 to vector<1x128xf32>
    %57 = arith.addf %55, %56 : vector<1x128xf32>
    %58 = math.rsqrt %57 : vector<1x128xf32>
    %59 = arith.mulf %42, %58 : vector<1x128xf32>
    %60 = arith.mulf %48, %59 : vector<1x128xf32>
    %61 = arith.subf %44, %60 : vector<1x128xf32>
    %62 = vector.broadcast %59 : vector<1x128xf32> to vector<16x128xf32>
    %63 = arith.mulf %40, %62 : vector<16x128xf32>
    %64 = vector.broadcast %61 : vector<1x128xf32> to vector<16x128xf32>
    %65 = arith.addf %63, %64 : vector<16x128xf32>
    %66 = arith.negf %65 : vector<16x128xf32>
    %67 = math.exp %66 : vector<16x128xf32>
    %cst_33 = arith.constant 1.000000e+00 : f32
    %68 = vector.broadcast %cst_33 : f32 to vector<16x128xf32>
    %69 = arith.addf %68, %67 : vector<16x128xf32>
    %70 = arith.divf %68, %69 : vector<16x128xf32>
    %c0_34 = arith.constant 0 : index
    %c0_35 = arith.constant 0 : index
    %c0_36 = arith.constant 0 : index
    %71 = vector.load %arg10[%c0_34, %c0_35, %c0_36] : memref<12x128x128xf32, #tpu.memory_space<vmem>>, vector<1x128x128xf32>
    %72 = vector.shape_cast %71 : vector<1x128x128xf32> to vector<128x128xf32>
    %cst_37 = arith.constant dense<0.000000e+00> : vector<16x128xf32>
    %73 = tpu.matmul %70, %72, %cst_37 {dimension_numbers = #tpu.dot_dimension_numbers<[1], [0], [0], [1], [0, 0, 1, 1], [], []>} : vector<16x128xf32>, vector<128x128xf32>, vector<16x128xf32> -> vector<16x128xf32>
    %c0_38 = arith.constant 0 : index
    %c0_39 = arith.constant 0 : index
    %c0_40 = arith.constant 0 : index
    %74 = vector.load %arg11[%c0_38, %c0_39, %c0_40] : memref<12x1x128xf32, #tpu.memory_space<vmem>>, vector<1x1x128xf32>
    %75 = vector.shape_cast %74 : vector<1x1x128xf32> to vector<1x128xf32>
    %76 = vector.broadcast %75 : vector<1x128xf32> to vector<16x128xf32>
    %77 = arith.addf %73, %76 : vector<16x128xf32>
    %c0_41 = arith.constant 0 : index
    %c0_42 = arith.constant 0 : index
    %c0_43 = arith.constant 0 : index
    %78 = vector.load %arg12[%c0_41, %c0_42, %c0_43] : memref<12x1x128xf32, #tpu.memory_space<vmem>>, vector<1x1x128xf32>
    %79 = vector.shape_cast %78 : vector<1x1x128xf32> to vector<1x128xf32>
    %c0_44 = arith.constant 0 : index
    %c0_45 = arith.constant 0 : index
    %c0_46 = arith.constant 0 : index
    %80 = vector.load %arg13[%c0_44, %c0_45, %c0_46] : memref<12x1x128xf32, #tpu.memory_space<vmem>>, vector<1x1x128xf32>
    %81 = vector.shape_cast %80 : vector<1x1x128xf32> to vector<1x128xf32>
    %cst_47 = arith.constant dense<0.000000e+00> : vector<128xf32>
    %82 = vector.multi_reduction <add>, %77, %cst_47 [0] : vector<16x128xf32> to vector<128xf32>
    %83 = vector.shape_cast %82 : vector<128xf32> to vector<1x128xf32>
    %cst_48 = arith.constant 1.600000e+01 : f32
    %84 = vector.broadcast %cst_48 : f32 to vector<1x128xf32>
    %85 = arith.divf %83, %84 : vector<1x128xf32>
    %86 = vector.broadcast %85 : vector<1x128xf32> to vector<16x128xf32>
    %87 = arith.subf %77, %86 : vector<16x128xf32>
    %88 = arith.mulf %87, %87 : vector<16x128xf32>
    %cst_49 = arith.constant dense<0.000000e+00> : vector<128xf32>
    %89 = vector.multi_reduction <add>, %88, %cst_49 [0] : vector<16x128xf32> to vector<128xf32>
    %90 = vector.shape_cast %89 : vector<128xf32> to vector<1x128xf32>
    %cst_50 = arith.constant 1.600000e+01 : f32
    %91 = vector.broadcast %cst_50 : f32 to vector<1x128xf32>
    %92 = arith.divf %90, %91 : vector<1x128xf32>
    %cst_51 = arith.constant 9.99999974E-6 : f32
    %93 = vector.broadcast %cst_51 : f32 to vector<1x128xf32>
    %94 = arith.addf %92, %93 : vector<1x128xf32>
    %95 = math.rsqrt %94 : vector<1x128xf32>
    %96 = arith.mulf %79, %95 : vector<1x128xf32>
    %97 = arith.mulf %85, %96 : vector<1x128xf32>
    %98 = arith.subf %81, %97 : vector<1x128xf32>
    %99 = vector.broadcast %96 : vector<1x128xf32> to vector<16x128xf32>
    %100 = arith.mulf %77, %99 : vector<16x128xf32>
    %101 = vector.broadcast %98 : vector<1x128xf32> to vector<16x128xf32>
    %102 = arith.addf %100, %101 : vector<16x128xf32>
    %103 = arith.addf %102, %33 : vector<16x128xf32>
    %104 = arith.negf %103 : vector<16x128xf32>
    %105 = math.exp %104 : vector<16x128xf32>
    %cst_52 = arith.constant 1.000000e+00 : f32
    %106 = vector.broadcast %cst_52 : f32 to vector<16x128xf32>
    %107 = arith.addf %106, %105 : vector<16x128xf32>
    %108 = arith.divf %106, %107 : vector<16x128xf32>
    %c1 = arith.constant 1 : index
    %c0_53 = arith.constant 0 : index
    %c0_54 = arith.constant 0 : index
    %109 = vector.load %arg6[%c1, %c0_53, %c0_54] : memref<12x128x128xf32, #tpu.memory_space<vmem>>, vector<1x128x128xf32>
    %110 = vector.shape_cast %109 : vector<1x128x128xf32> to vector<128x128xf32>
    %cst_55 = arith.constant dense<0.000000e+00> : vector<16x128xf32>
    %111 = tpu.matmul %108, %110, %cst_55 {dimension_numbers = #tpu.dot_dimension_numbers<[1], [0], [0], [1], [0, 0, 1, 1], [], []>} : vector<16x128xf32>, vector<128x128xf32>, vector<16x128xf32> -> vector<16x128xf32>
    %c1_56 = arith.constant 1 : index
    %c0_57 = arith.constant 0 : index
    %c0_58 = arith.constant 0 : index
    %112 = vector.load %arg7[%c1_56, %c0_57, %c0_58] : memref<12x1x128xf32, #tpu.memory_space<vmem>>, vector<1x1x128xf32>
    %113 = vector.shape_cast %112 : vector<1x1x128xf32> to vector<1x128xf32>
    %114 = vector.broadcast %113 : vector<1x128xf32> to vector<16x128xf32>
    %115 = arith.addf %111, %114 : vector<16x128xf32>
    %c1_59 = arith.constant 1 : index
    %c0_60 = arith.constant 0 : index
    %c0_61 = arith.constant 0 : index
    %116 = vector.load %arg8[%c1_59, %c0_60, %c0_61] : memref<12x1x128xf32, #tpu.memory_space<vmem>>, vector<1x1x128xf32>
    %117 = vector.shape_cast %116 : vector<1x1x128xf32> to vector<1x128xf32>
    %c1_62 = arith.constant 1 : index
    %c0_63 = arith.constant 0 : index
    %c0_64 = arith.constant 0 : index
    %118 = vector.load %arg9[%c1_62, %c0_63, %c0_64] : memref<12x1x128xf32, #tpu.memory_space<vmem>>, vector<1x1x128xf32>
    %119 = vector.shape_cast %118 : vector<1x1x128xf32> to vector<1x128xf32>
    %cst_65 = arith.constant dense<0.000000e+00> : vector<128xf32>
    %120 = vector.multi_reduction <add>, %115, %cst_65 [0] : vector<16x128xf32> to vector<128xf32>
    %121 = vector.shape_cast %120 : vector<128xf32> to vector<1x128xf32>
    %cst_66 = arith.constant 1.600000e+01 : f32
    %122 = vector.broadcast %cst_66 : f32 to vector<1x128xf32>
    %123 = arith.divf %121, %122 : vector<1x128xf32>
    %124 = vector.broadcast %123 : vector<1x128xf32> to vector<16x128xf32>
    %125 = arith.subf %115, %124 : vector<16x128xf32>
    %126 = arith.mulf %125, %125 : vector<16x128xf32>
    %cst_67 = arith.constant dense<0.000000e+00> : vector<128xf32>
    %127 = vector.multi_reduction <add>, %126, %cst_67 [0] : vector<16x128xf32> to vector<128xf32>
    %128 = vector.shape_cast %127 : vector<128xf32> to vector<1x128xf32>
    %cst_68 = arith.constant 1.600000e+01 : f32
    %129 = vector.broadcast %cst_68 : f32 to vector<1x128xf32>
    %130 = arith.divf %128, %129 : vector<1x128xf32>
    %cst_69 = arith.constant 9.99999974E-6 : f32
    %131 = vector.broadcast %cst_69 : f32 to vector<1x128xf32>
    %132 = arith.addf %130, %131 : vector<1x128xf32>
    %133 = math.rsqrt %132 : vector<1x128xf32>
    %134 = arith.mulf %117, %133 : vector<1x128xf32>
    %135 = arith.mulf %123, %134 : vector<1x128xf32>
    %136 = arith.subf %119, %135 : vector<1x128xf32>
    %137 = vector.broadcast %134 : vector<1x128xf32> to vector<16x128xf32>
    %138 = arith.mulf %115, %137 : vector<16x128xf32>
    %139 = vector.broadcast %136 : vector<1x128xf32> to vector<16x128xf32>
    %140 = arith.addf %138, %139 : vector<16x128xf32>
    %141 = arith.negf %140 : vector<16x128xf32>
    %142 = math.exp %141 : vector<16x128xf32>
    %cst_70 = arith.constant 1.000000e+00 : f32
    %143 = vector.broadcast %cst_70 : f32 to vector<16x128xf32>
    %144 = arith.addf %143, %142 : vector<16x128xf32>
    %145 = arith.divf %143, %144 : vector<16x128xf32>
    %c1_71 = arith.constant 1 : index
    %c0_72 = arith.constant 0 : index
    %c0_73 = arith.constant 0 : index
    %146 = vector.load %arg10[%c1_71, %c0_72, %c0_73] : memref<12x128x128xf32, #tpu.memory_space<vmem>>, vector<1x128x128xf32>
    %147 = vector.shape_cast %146 : vector<1x128x128xf32> to vector<128x128xf32>
    %cst_74 = arith.constant dense<0.000000e+00> : vector<16x128xf32>
    %148 = tpu.matmul %145, %147, %cst_74 {dimension_numbers = #tpu.dot_dimension_numbers<[1], [0], [0], [1], [0, 0, 1, 1], [], []>} : vector<16x128xf32>, vector<128x128xf32>, vector<16x128xf32> -> vector<16x128xf32>
    %c1_75 = arith.constant 1 : index
    %c0_76 = arith.constant 0 : index
    %c0_77 = arith.constant 0 : index
    %149 = vector.load %arg11[%c1_75, %c0_76, %c0_77] : memref<12x1x128xf32, #tpu.memory_space<vmem>>, vector<1x1x128xf32>
    %150 = vector.shape_cast %149 : vector<1x1x128xf32> to vector<1x128xf32>
    %151 = vector.broadcast %150 : vector<1x128xf32> to vector<16x128xf32>
    %152 = arith.addf %148, %151 : vector<16x128xf32>
    %c1_78 = arith.constant 1 : index
    %c0_79 = arith.constant 0 : index
    %c0_80 = arith.constant 0 : index
    %153 = vector.load %arg12[%c1_78, %c0_79, %c0_80] : memref<12x1x128xf32, #tpu.memory_space<vmem>>, vector<1x1x128xf32>
    %154 = vector.shape_cast %153 : vector<1x1x128xf32> to vector<1x128xf32>
    %c1_81 = arith.constant 1 : index
    %c0_82 = arith.constant 0 : index
    %c0_83 = arith.constant 0 : index
    %155 = vector.load %arg13[%c1_81, %c0_82, %c0_83] : memref<12x1x128xf32, #tpu.memory_space<vmem>>, vector<1x1x128xf32>
    %156 = vector.shape_cast %155 : vector<1x1x128xf32> to vector<1x128xf32>
    %cst_84 = arith.constant dense<0.000000e+00> : vector<128xf32>
    %157 = vector.multi_reduction <add>, %152, %cst_84 [0] : vector<16x128xf32> to vector<128xf32>
    %158 = vector.shape_cast %157 : vector<128xf32> to vector<1x128xf32>
    %cst_85 = arith.constant 1.600000e+01 : f32
    %159 = vector.broadcast %cst_85 : f32 to vector<1x128xf32>
    %160 = arith.divf %158, %159 : vector<1x128xf32>
    %161 = vector.broadcast %160 : vector<1x128xf32> to vector<16x128xf32>
    %162 = arith.subf %152, %161 : vector<16x128xf32>
    %163 = arith.mulf %162, %162 : vector<16x128xf32>
    %cst_86 = arith.constant dense<0.000000e+00> : vector<128xf32>
    %164 = vector.multi_reduction <add>, %163, %cst_86 [0] : vector<16x128xf32> to vector<128xf32>
    %165 = vector.shape_cast %164 : vector<128xf32> to vector<1x128xf32>
    %cst_87 = arith.constant 1.600000e+01 : f32
    %166 = vector.broadcast %cst_87 : f32 to vector<1x128xf32>
    %167 = arith.divf %165, %166 : vector<1x128xf32>
    %cst_88 = arith.constant 9.99999974E-6 : f32
    %168 = vector.broadcast %cst_88 : f32 to vector<1x128xf32>
    %169 = arith.addf %167, %168 : vector<1x128xf32>
    %170 = math.rsqrt %169 : vector<1x128xf32>
    %171 = arith.mulf %154, %170 : vector<1x128xf32>
    %172 = arith.mulf %160, %171 : vector<1x128xf32>
    %173 = arith.subf %156, %172 : vector<1x128xf32>
    %174 = vector.broadcast %171 : vector<1x128xf32> to vector<16x128xf32>
    %175 = arith.mulf %152, %174 : vector<16x128xf32>
    %176 = vector.broadcast %173 : vector<1x128xf32> to vector<16x128xf32>
    %177 = arith.addf %175, %176 : vector<16x128xf32>
    %178 = arith.addf %177, %108 : vector<16x128xf32>
    %179 = arith.negf %178 : vector<16x128xf32>
    %180 = math.exp %179 : vector<16x128xf32>
    %cst_89 = arith.constant 1.000000e+00 : f32
    %181 = vector.broadcast %cst_89 : f32 to vector<16x128xf32>
    %182 = arith.addf %181, %180 : vector<16x128xf32>
    %183 = arith.divf %181, %182 : vector<16x128xf32>
    %c2 = arith.constant 2 : index
    %c0_90 = arith.constant 0 : index
    %c0_91 = arith.constant 0 : index
    %184 = vector.load %arg6[%c2, %c0_90, %c0_91] : memref<12x128x128xf32, #tpu.memory_space<vmem>>, vector<1x128x128xf32>
    %185 = vector.shape_cast %184 : vector<1x128x128xf32> to vector<128x128xf32>
    %cst_92 = arith.constant dense<0.000000e+00> : vector<16x128xf32>
    %186 = tpu.matmul %183, %185, %cst_92 {dimension_numbers = #tpu.dot_dimension_numbers<[1], [0], [0], [1], [0, 0, 1, 1], [], []>} : vector<16x128xf32>, vector<128x128xf32>, vector<16x128xf32> -> vector<16x128xf32>
    %c2_93 = arith.constant 2 : index
    %c0_94 = arith.constant 0 : index
    %c0_95 = arith.constant 0 : index
    %187 = vector.load %arg7[%c2_93, %c0_94, %c0_95] : memref<12x1x128xf32, #tpu.memory_space<vmem>>, vector<1x1x128xf32>
    %188 = vector.shape_cast %187 : vector<1x1x128xf32> to vector<1x128xf32>
    %189 = vector.broadcast %188 : vector<1x128xf32> to vector<16x128xf32>
    %190 = arith.addf %186, %189 : vector<16x128xf32>
    %c2_96 = arith.constant 2 : index
    %c0_97 = arith.constant 0 : index
    %c0_98 = arith.constant 0 : index
    %191 = vector.load %arg8[%c2_96, %c0_97, %c0_98] : memref<12x1x128xf32, #tpu.memory_space<vmem>>, vector<1x1x128xf32>
    %192 = vector.shape_cast %191 : vector<1x1x128xf32> to vector<1x128xf32>
    %c2_99 = arith.constant 2 : index
    %c0_100 = arith.constant 0 : index
    %c0_101 = arith.constant 0 : index
    %193 = vector.load %arg9[%c2_99, %c0_100, %c0_101] : memref<12x1x128xf32, #tpu.memory_space<vmem>>, vector<1x1x128xf32>
    %194 = vector.shape_cast %193 : vector<1x1x128xf32> to vector<1x128xf32>
    %cst_102 = arith.constant dense<0.000000e+00> : vector<128xf32>
    %195 = vector.multi_reduction <add>, %190, %cst_102 [0] : vector<16x128xf32> to vector<128xf32>
    %196 = vector.shape_cast %195 : vector<128xf32> to vector<1x128xf32>
    %cst_103 = arith.constant 1.600000e+01 : f32
    %197 = vector.broadcast %cst_103 : f32 to vector<1x128xf32>
    %198 = arith.divf %196, %197 : vector<1x128xf32>
    %199 = vector.broadcast %198 : vector<1x128xf32> to vector<16x128xf32>
    %200 = arith.subf %190, %199 : vector<16x128xf32>
    %201 = arith.mulf %200, %200 : vector<16x128xf32>
    %cst_104 = arith.constant dense<0.000000e+00> : vector<128xf32>
    %202 = vector.multi_reduction <add>, %201, %cst_104 [0] : vector<16x128xf32> to vector<128xf32>
    %203 = vector.shape_cast %202 : vector<128xf32> to vector<1x128xf32>
    %cst_105 = arith.constant 1.600000e+01 : f32
    %204 = vector.broadcast %cst_105 : f32 to vector<1x128xf32>
    %205 = arith.divf %203, %204 : vector<1x128xf32>
    %cst_106 = arith.constant 9.99999974E-6 : f32
    %206 = vector.broadcast %cst_106 : f32 to vector<1x128xf32>
    %207 = arith.addf %205, %206 : vector<1x128xf32>
    %208 = math.rsqrt %207 : vector<1x128xf32>
    %209 = arith.mulf %192, %208 : vector<1x128xf32>
    %210 = arith.mulf %198, %209 : vector<1x128xf32>
    %211 = arith.subf %194, %210 : vector<1x128xf32>
    %212 = vector.broadcast %209 : vector<1x128xf32> to vector<16x128xf32>
    %213 = arith.mulf %190, %212 : vector<16x128xf32>
    %214 = vector.broadcast %211 : vector<1x128xf32> to vector<16x128xf32>
    %215 = arith.addf %213, %214 : vector<16x128xf32>
    %216 = arith.negf %215 : vector<16x128xf32>
    %217 = math.exp %216 : vector<16x128xf32>
    %cst_107 = arith.constant 1.000000e+00 : f32
    %218 = vector.broadcast %cst_107 : f32 to vector<16x128xf32>
    %219 = arith.addf %218, %217 : vector<16x128xf32>
    %220 = arith.divf %218, %219 : vector<16x128xf32>
    %c2_108 = arith.constant 2 : index
    %c0_109 = arith.constant 0 : index
    %c0_110 = arith.constant 0 : index
    %221 = vector.load %arg10[%c2_108, %c0_109, %c0_110] : memref<12x128x128xf32, #tpu.memory_space<vmem>>, vector<1x128x128xf32>
    %222 = vector.shape_cast %221 : vector<1x128x128xf32> to vector<128x128xf32>
    %cst_111 = arith.constant dense<0.000000e+00> : vector<16x128xf32>
    %223 = tpu.matmul %220, %222, %cst_111 {dimension_numbers = #tpu.dot_dimension_numbers<[1], [0], [0], [1], [0, 0, 1, 1], [], []>} : vector<16x128xf32>, vector<128x128xf32>, vector<16x128xf32> -> vector<16x128xf32>
    %c2_112 = arith.constant 2 : index
    %c0_113 = arith.constant 0 : index
    %c0_114 = arith.constant 0 : index
    %224 = vector.load %arg11[%c2_112, %c0_113, %c0_114] : memref<12x1x128xf32, #tpu.memory_space<vmem>>, vector<1x1x128xf32>
    %225 = vector.shape_cast %224 : vector<1x1x128xf32> to vector<1x128xf32>
    %226 = vector.broadcast %225 : vector<1x128xf32> to vector<16x128xf32>
    %227 = arith.addf %223, %226 : vector<16x128xf32>
    %c2_115 = arith.constant 2 : index
    %c0_116 = arith.constant 0 : index
    %c0_117 = arith.constant 0 : index
    %228 = vector.load %arg12[%c2_115, %c0_116, %c0_117] : memref<12x1x128xf32, #tpu.memory_space<vmem>>, vector<1x1x128xf32>
    %229 = vector.shape_cast %228 : vector<1x1x128xf32> to vector<1x128xf32>
    %c2_118 = arith.constant 2 : index
    %c0_119 = arith.constant 0 : index
    %c0_120 = arith.constant 0 : index
    %230 = vector.load %arg13[%c2_118, %c0_119, %c0_120] : memref<12x1x128xf32, #tpu.memory_space<vmem>>, vector<1x1x128xf32>
    %231 = vector.shape_cast %230 : vector<1x1x128xf32> to vector<1x128xf32>
    %cst_121 = arith.constant dense<0.000000e+00> : vector<128xf32>
    %232 = vector.multi_reduction <add>, %227, %cst_121 [0] : vector<16x128xf32> to vector<128xf32>
    %233 = vector.shape_cast %232 : vector<128xf32> to vector<1x128xf32>
    %cst_122 = arith.constant 1.600000e+01 : f32
    %234 = vector.broadcast %cst_122 : f32 to vector<1x128xf32>
    %235 = arith.divf %233, %234 : vector<1x128xf32>
    %236 = vector.broadcast %235 : vector<1x128xf32> to vector<16x128xf32>
    %237 = arith.subf %227, %236 : vector<16x128xf32>
    %238 = arith.mulf %237, %237 : vector<16x128xf32>
    %cst_123 = arith.constant dense<0.000000e+00> : vector<128xf32>
    %239 = vector.multi_reduction <add>, %238, %cst_123 [0] : vector<16x128xf32> to vector<128xf32>
    %240 = vector.shape_cast %239 : vector<128xf32> to vector<1x128xf32>
    %cst_124 = arith.constant 1.600000e+01 : f32
    %241 = vector.broadcast %cst_124 : f32 to vector<1x128xf32>
    %242 = arith.divf %240, %241 : vector<1x128xf32>
    %cst_125 = arith.constant 9.99999974E-6 : f32
    %243 = vector.broadcast %cst_125 : f32 to vector<1x128xf32>
    %244 = arith.addf %242, %243 : vector<1x128xf32>
    %245 = math.rsqrt %244 : vector<1x128xf32>
    %246 = arith.mulf %229, %245 : vector<1x128xf32>
    %247 = arith.mulf %235, %246 : vector<1x128xf32>
    %248 = arith.subf %231, %247 : vector<1x128xf32>
    %249 = vector.broadcast %246 : vector<1x128xf32> to vector<16x128xf32>
    %250 = arith.mulf %227, %249 : vector<16x128xf32>
    %251 = vector.broadcast %248 : vector<1x128xf32> to vector<16x128xf32>
    %252 = arith.addf %250, %251 : vector<16x128xf32>
    %253 = arith.addf %252, %183 : vector<16x128xf32>
    %254 = arith.negf %253 : vector<16x128xf32>
    %255 = math.exp %254 : vector<16x128xf32>
    %cst_126 = arith.constant 1.000000e+00 : f32
    %256 = vector.broadcast %cst_126 : f32 to vector<16x128xf32>
    %257 = arith.addf %256, %255 : vector<16x128xf32>
    %258 = arith.divf %256, %257 : vector<16x128xf32>
    %c3 = arith.constant 3 : index
    %c0_127 = arith.constant 0 : index
    %c0_128 = arith.constant 0 : index
    %259 = vector.load %arg6[%c3, %c0_127, %c0_128] : memref<12x128x128xf32, #tpu.memory_space<vmem>>, vector<1x128x128xf32>
    %260 = vector.shape_cast %259 : vector<1x128x128xf32> to vector<128x128xf32>
    %cst_129 = arith.constant dense<0.000000e+00> : vector<16x128xf32>
    %261 = tpu.matmul %258, %260, %cst_129 {dimension_numbers = #tpu.dot_dimension_numbers<[1], [0], [0], [1], [0, 0, 1, 1], [], []>} : vector<16x128xf32>, vector<128x128xf32>, vector<16x128xf32> -> vector<16x128xf32>
    %c3_130 = arith.constant 3 : index
    %c0_131 = arith.constant 0 : index
    %c0_132 = arith.constant 0 : index
    %262 = vector.load %arg7[%c3_130, %c0_131, %c0_132] : memref<12x1x128xf32, #tpu.memory_space<vmem>>, vector<1x1x128xf32>
    %263 = vector.shape_cast %262 : vector<1x1x128xf32> to vector<1x128xf32>
    %264 = vector.broadcast %263 : vector<1x128xf32> to vector<16x128xf32>
    %265 = arith.addf %261, %264 : vector<16x128xf32>
    %c3_133 = arith.constant 3 : index
    %c0_134 = arith.constant 0 : index
    %c0_135 = arith.constant 0 : index
    %266 = vector.load %arg8[%c3_133, %c0_134, %c0_135] : memref<12x1x128xf32, #tpu.memory_space<vmem>>, vector<1x1x128xf32>
    %267 = vector.shape_cast %266 : vector<1x1x128xf32> to vector<1x128xf32>
    %c3_136 = arith.constant 3 : index
    %c0_137 = arith.constant 0 : index
    %c0_138 = arith.constant 0 : index
    %268 = vector.load %arg9[%c3_136, %c0_137, %c0_138] : memref<12x1x128xf32, #tpu.memory_space<vmem>>, vector<1x1x128xf32>
    %269 = vector.shape_cast %268 : vector<1x1x128xf32> to vector<1x128xf32>
    %cst_139 = arith.constant dense<0.000000e+00> : vector<128xf32>
    %270 = vector.multi_reduction <add>, %265, %cst_139 [0] : vector<16x128xf32> to vector<128xf32>
    %271 = vector.shape_cast %270 : vector<128xf32> to vector<1x128xf32>
    %cst_140 = arith.constant 1.600000e+01 : f32
    %272 = vector.broadcast %cst_140 : f32 to vector<1x128xf32>
    %273 = arith.divf %271, %272 : vector<1x128xf32>
    %274 = vector.broadcast %273 : vector<1x128xf32> to vector<16x128xf32>
    %275 = arith.subf %265, %274 : vector<16x128xf32>
    %276 = arith.mulf %275, %275 : vector<16x128xf32>
    %cst_141 = arith.constant dense<0.000000e+00> : vector<128xf32>
    %277 = vector.multi_reduction <add>, %276, %cst_141 [0] : vector<16x128xf32> to vector<128xf32>
    %278 = vector.shape_cast %277 : vector<128xf32> to vector<1x128xf32>
    %cst_142 = arith.constant 1.600000e+01 : f32
    %279 = vector.broadcast %cst_142 : f32 to vector<1x128xf32>
    %280 = arith.divf %278, %279 : vector<1x128xf32>
    %cst_143 = arith.constant 9.99999974E-6 : f32
    %281 = vector.broadcast %cst_143 : f32 to vector<1x128xf32>
    %282 = arith.addf %280, %281 : vector<1x128xf32>
    %283 = math.rsqrt %282 : vector<1x128xf32>
    %284 = arith.mulf %267, %283 : vector<1x128xf32>
    %285 = arith.mulf %273, %284 : vector<1x128xf32>
    %286 = arith.subf %269, %285 : vector<1x128xf32>
    %287 = vector.broadcast %284 : vector<1x128xf32> to vector<16x128xf32>
    %288 = arith.mulf %265, %287 : vector<16x128xf32>
    %289 = vector.broadcast %286 : vector<1x128xf32> to vector<16x128xf32>
    %290 = arith.addf %288, %289 : vector<16x128xf32>
    %291 = arith.negf %290 : vector<16x128xf32>
    %292 = math.exp %291 : vector<16x128xf32>
    %cst_144 = arith.constant 1.000000e+00 : f32
    %293 = vector.broadcast %cst_144 : f32 to vector<16x128xf32>
    %294 = arith.addf %293, %292 : vector<16x128xf32>
    %295 = arith.divf %293, %294 : vector<16x128xf32>
    %c3_145 = arith.constant 3 : index
    %c0_146 = arith.constant 0 : index
    %c0_147 = arith.constant 0 : index
    %296 = vector.load %arg10[%c3_145, %c0_146, %c0_147] : memref<12x128x128xf32, #tpu.memory_space<vmem>>, vector<1x128x128xf32>
    %297 = vector.shape_cast %296 : vector<1x128x128xf32> to vector<128x128xf32>
    %cst_148 = arith.constant dense<0.000000e+00> : vector<16x128xf32>
    %298 = tpu.matmul %295, %297, %cst_148 {dimension_numbers = #tpu.dot_dimension_numbers<[1], [0], [0], [1], [0, 0, 1, 1], [], []>} : vector<16x128xf32>, vector<128x128xf32>, vector<16x128xf32> -> vector<16x128xf32>
    %c3_149 = arith.constant 3 : index
    %c0_150 = arith.constant 0 : index
    %c0_151 = arith.constant 0 : index
    %299 = vector.load %arg11[%c3_149, %c0_150, %c0_151] : memref<12x1x128xf32, #tpu.memory_space<vmem>>, vector<1x1x128xf32>
    %300 = vector.shape_cast %299 : vector<1x1x128xf32> to vector<1x128xf32>
    %301 = vector.broadcast %300 : vector<1x128xf32> to vector<16x128xf32>
    %302 = arith.addf %298, %301 : vector<16x128xf32>
    %c3_152 = arith.constant 3 : index
    %c0_153 = arith.constant 0 : index
    %c0_154 = arith.constant 0 : index
    %303 = vector.load %arg12[%c3_152, %c0_153, %c0_154] : memref<12x1x128xf32, #tpu.memory_space<vmem>>, vector<1x1x128xf32>
    %304 = vector.shape_cast %303 : vector<1x1x128xf32> to vector<1x128xf32>
    %c3_155 = arith.constant 3 : index
    %c0_156 = arith.constant 0 : index
    %c0_157 = arith.constant 0 : index
    %305 = vector.load %arg13[%c3_155, %c0_156, %c0_157] : memref<12x1x128xf32, #tpu.memory_space<vmem>>, vector<1x1x128xf32>
    %306 = vector.shape_cast %305 : vector<1x1x128xf32> to vector<1x128xf32>
    %cst_158 = arith.constant dense<0.000000e+00> : vector<128xf32>
    %307 = vector.multi_reduction <add>, %302, %cst_158 [0] : vector<16x128xf32> to vector<128xf32>
    %308 = vector.shape_cast %307 : vector<128xf32> to vector<1x128xf32>
    %cst_159 = arith.constant 1.600000e+01 : f32
    %309 = vector.broadcast %cst_159 : f32 to vector<1x128xf32>
    %310 = arith.divf %308, %309 : vector<1x128xf32>
    %311 = vector.broadcast %310 : vector<1x128xf32> to vector<16x128xf32>
    %312 = arith.subf %302, %311 : vector<16x128xf32>
    %313 = arith.mulf %312, %312 : vector<16x128xf32>
    %cst_160 = arith.constant dense<0.000000e+00> : vector<128xf32>
    %314 = vector.multi_reduction <add>, %313, %cst_160 [0] : vector<16x128xf32> to vector<128xf32>
    %315 = vector.shape_cast %314 : vector<128xf32> to vector<1x128xf32>
    %cst_161 = arith.constant 1.600000e+01 : f32
    %316 = vector.broadcast %cst_161 : f32 to vector<1x128xf32>
    %317 = arith.divf %315, %316 : vector<1x128xf32>
    %cst_162 = arith.constant 9.99999974E-6 : f32
    %318 = vector.broadcast %cst_162 : f32 to vector<1x128xf32>
    %319 = arith.addf %317, %318 : vector<1x128xf32>
    %320 = math.rsqrt %319 : vector<1x128xf32>
    %321 = arith.mulf %304, %320 : vector<1x128xf32>
    %322 = arith.mulf %310, %321 : vector<1x128xf32>
    %323 = arith.subf %306, %322 : vector<1x128xf32>
    %324 = vector.broadcast %321 : vector<1x128xf32> to vector<16x128xf32>
    %325 = arith.mulf %302, %324 : vector<16x128xf32>
    %326 = vector.broadcast %323 : vector<1x128xf32> to vector<16x128xf32>
    %327 = arith.addf %325, %326 : vector<16x128xf32>
    %328 = arith.addf %327, %258 : vector<16x128xf32>
    %329 = arith.negf %328 : vector<16x128xf32>
    %330 = math.exp %329 : vector<16x128xf32>
    %cst_163 = arith.constant 1.000000e+00 : f32
    %331 = vector.broadcast %cst_163 : f32 to vector<16x128xf32>
    %332 = arith.addf %331, %330 : vector<16x128xf32>
    %333 = arith.divf %331, %332 : vector<16x128xf32>
    %c4 = arith.constant 4 : index
    %c0_164 = arith.constant 0 : index
    %c0_165 = arith.constant 0 : index
    %334 = vector.load %arg6[%c4, %c0_164, %c0_165] : memref<12x128x128xf32, #tpu.memory_space<vmem>>, vector<1x128x128xf32>
    %335 = vector.shape_cast %334 : vector<1x128x128xf32> to vector<128x128xf32>
    %cst_166 = arith.constant dense<0.000000e+00> : vector<16x128xf32>
    %336 = tpu.matmul %333, %335, %cst_166 {dimension_numbers = #tpu.dot_dimension_numbers<[1], [0], [0], [1], [0, 0, 1, 1], [], []>} : vector<16x128xf32>, vector<128x128xf32>, vector<16x128xf32> -> vector<16x128xf32>
    %c4_167 = arith.constant 4 : index
    %c0_168 = arith.constant 0 : index
    %c0_169 = arith.constant 0 : index
    %337 = vector.load %arg7[%c4_167, %c0_168, %c0_169] : memref<12x1x128xf32, #tpu.memory_space<vmem>>, vector<1x1x128xf32>
    %338 = vector.shape_cast %337 : vector<1x1x128xf32> to vector<1x128xf32>
    %339 = vector.broadcast %338 : vector<1x128xf32> to vector<16x128xf32>
    %340 = arith.addf %336, %339 : vector<16x128xf32>
    %c4_170 = arith.constant 4 : index
    %c0_171 = arith.constant 0 : index
    %c0_172 = arith.constant 0 : index
    %341 = vector.load %arg8[%c4_170, %c0_171, %c0_172] : memref<12x1x128xf32, #tpu.memory_space<vmem>>, vector<1x1x128xf32>
    %342 = vector.shape_cast %341 : vector<1x1x128xf32> to vector<1x128xf32>
    %c4_173 = arith.constant 4 : index
    %c0_174 = arith.constant 0 : index
    %c0_175 = arith.constant 0 : index
    %343 = vector.load %arg9[%c4_173, %c0_174, %c0_175] : memref<12x1x128xf32, #tpu.memory_space<vmem>>, vector<1x1x128xf32>
    %344 = vector.shape_cast %343 : vector<1x1x128xf32> to vector<1x128xf32>
    %cst_176 = arith.constant dense<0.000000e+00> : vector<128xf32>
    %345 = vector.multi_reduction <add>, %340, %cst_176 [0] : vector<16x128xf32> to vector<128xf32>
    %346 = vector.shape_cast %345 : vector<128xf32> to vector<1x128xf32>
    %cst_177 = arith.constant 1.600000e+01 : f32
    %347 = vector.broadcast %cst_177 : f32 to vector<1x128xf32>
    %348 = arith.divf %346, %347 : vector<1x128xf32>
    %349 = vector.broadcast %348 : vector<1x128xf32> to vector<16x128xf32>
    %350 = arith.subf %340, %349 : vector<16x128xf32>
    %351 = arith.mulf %350, %350 : vector<16x128xf32>
    %cst_178 = arith.constant dense<0.000000e+00> : vector<128xf32>
    %352 = vector.multi_reduction <add>, %351, %cst_178 [0] : vector<16x128xf32> to vector<128xf32>
    %353 = vector.shape_cast %352 : vector<128xf32> to vector<1x128xf32>
    %cst_179 = arith.constant 1.600000e+01 : f32
    %354 = vector.broadcast %cst_179 : f32 to vector<1x128xf32>
    %355 = arith.divf %353, %354 : vector<1x128xf32>
    %cst_180 = arith.constant 9.99999974E-6 : f32
    %356 = vector.broadcast %cst_180 : f32 to vector<1x128xf32>
    %357 = arith.addf %355, %356 : vector<1x128xf32>
    %358 = math.rsqrt %357 : vector<1x128xf32>
    %359 = arith.mulf %342, %358 : vector<1x128xf32>
    %360 = arith.mulf %348, %359 : vector<1x128xf32>
    %361 = arith.subf %344, %360 : vector<1x128xf32>
    %362 = vector.broadcast %359 : vector<1x128xf32> to vector<16x128xf32>
    %363 = arith.mulf %340, %362 : vector<16x128xf32>
    %364 = vector.broadcast %361 : vector<1x128xf32> to vector<16x128xf32>
    %365 = arith.addf %363, %364 : vector<16x128xf32>
    %366 = arith.negf %365 : vector<16x128xf32>
    %367 = math.exp %366 : vector<16x128xf32>
    %cst_181 = arith.constant 1.000000e+00 : f32
    %368 = vector.broadcast %cst_181 : f32 to vector<16x128xf32>
    %369 = arith.addf %368, %367 : vector<16x128xf32>
    %370 = arith.divf %368, %369 : vector<16x128xf32>
    %c4_182 = arith.constant 4 : index
    %c0_183 = arith.constant 0 : index
    %c0_184 = arith.constant 0 : index
    %371 = vector.load %arg10[%c4_182, %c0_183, %c0_184] : memref<12x128x128xf32, #tpu.memory_space<vmem>>, vector<1x128x128xf32>
    %372 = vector.shape_cast %371 : vector<1x128x128xf32> to vector<128x128xf32>
    %cst_185 = arith.constant dense<0.000000e+00> : vector<16x128xf32>
    %373 = tpu.matmul %370, %372, %cst_185 {dimension_numbers = #tpu.dot_dimension_numbers<[1], [0], [0], [1], [0, 0, 1, 1], [], []>} : vector<16x128xf32>, vector<128x128xf32>, vector<16x128xf32> -> vector<16x128xf32>
    %c4_186 = arith.constant 4 : index
    %c0_187 = arith.constant 0 : index
    %c0_188 = arith.constant 0 : index
    %374 = vector.load %arg11[%c4_186, %c0_187, %c0_188] : memref<12x1x128xf32, #tpu.memory_space<vmem>>, vector<1x1x128xf32>
    %375 = vector.shape_cast %374 : vector<1x1x128xf32> to vector<1x128xf32>
    %376 = vector.broadcast %375 : vector<1x128xf32> to vector<16x128xf32>
    %377 = arith.addf %373, %376 : vector<16x128xf32>
    %c4_189 = arith.constant 4 : index
    %c0_190 = arith.constant 0 : index
    %c0_191 = arith.constant 0 : index
    %378 = vector.load %arg12[%c4_189, %c0_190, %c0_191] : memref<12x1x128xf32, #tpu.memory_space<vmem>>, vector<1x1x128xf32>
    %379 = vector.shape_cast %378 : vector<1x1x128xf32> to vector<1x128xf32>
    %c4_192 = arith.constant 4 : index
    %c0_193 = arith.constant 0 : index
    %c0_194 = arith.constant 0 : index
    %380 = vector.load %arg13[%c4_192, %c0_193, %c0_194] : memref<12x1x128xf32, #tpu.memory_space<vmem>>, vector<1x1x128xf32>
    %381 = vector.shape_cast %380 : vector<1x1x128xf32> to vector<1x128xf32>
    %cst_195 = arith.constant dense<0.000000e+00> : vector<128xf32>
    %382 = vector.multi_reduction <add>, %377, %cst_195 [0] : vector<16x128xf32> to vector<128xf32>
    %383 = vector.shape_cast %382 : vector<128xf32> to vector<1x128xf32>
    %cst_196 = arith.constant 1.600000e+01 : f32
    %384 = vector.broadcast %cst_196 : f32 to vector<1x128xf32>
    %385 = arith.divf %383, %384 : vector<1x128xf32>
    %386 = vector.broadcast %385 : vector<1x128xf32> to vector<16x128xf32>
    %387 = arith.subf %377, %386 : vector<16x128xf32>
    %388 = arith.mulf %387, %387 : vector<16x128xf32>
    %cst_197 = arith.constant dense<0.000000e+00> : vector<128xf32>
    %389 = vector.multi_reduction <add>, %388, %cst_197 [0] : vector<16x128xf32> to vector<128xf32>
    %390 = vector.shape_cast %389 : vector<128xf32> to vector<1x128xf32>
    %cst_198 = arith.constant 1.600000e+01 : f32
    %391 = vector.broadcast %cst_198 : f32 to vector<1x128xf32>
    %392 = arith.divf %390, %391 : vector<1x128xf32>
    %cst_199 = arith.constant 9.99999974E-6 : f32
    %393 = vector.broadcast %cst_199 : f32 to vector<1x128xf32>
    %394 = arith.addf %392, %393 : vector<1x128xf32>
    %395 = math.rsqrt %394 : vector<1x128xf32>
    %396 = arith.mulf %379, %395 : vector<1x128xf32>
    %397 = arith.mulf %385, %396 : vector<1x128xf32>
    %398 = arith.subf %381, %397 : vector<1x128xf32>
    %399 = vector.broadcast %396 : vector<1x128xf32> to vector<16x128xf32>
    %400 = arith.mulf %377, %399 : vector<16x128xf32>
    %401 = vector.broadcast %398 : vector<1x128xf32> to vector<16x128xf32>
    %402 = arith.addf %400, %401 : vector<16x128xf32>
    %403 = arith.addf %402, %333 : vector<16x128xf32>
    %404 = arith.negf %403 : vector<16x128xf32>
    %405 = math.exp %404 : vector<16x128xf32>
    %cst_200 = arith.constant 1.000000e+00 : f32
    %406 = vector.broadcast %cst_200 : f32 to vector<16x128xf32>
    %407 = arith.addf %406, %405 : vector<16x128xf32>
    %408 = arith.divf %406, %407 : vector<16x128xf32>
    %c5 = arith.constant 5 : index
    %c0_201 = arith.constant 0 : index
    %c0_202 = arith.constant 0 : index
    %409 = vector.load %arg6[%c5, %c0_201, %c0_202] : memref<12x128x128xf32, #tpu.memory_space<vmem>>, vector<1x128x128xf32>
    %410 = vector.shape_cast %409 : vector<1x128x128xf32> to vector<128x128xf32>
    %cst_203 = arith.constant dense<0.000000e+00> : vector<16x128xf32>
    %411 = tpu.matmul %408, %410, %cst_203 {dimension_numbers = #tpu.dot_dimension_numbers<[1], [0], [0], [1], [0, 0, 1, 1], [], []>} : vector<16x128xf32>, vector<128x128xf32>, vector<16x128xf32> -> vector<16x128xf32>
    %c5_204 = arith.constant 5 : index
    %c0_205 = arith.constant 0 : index
    %c0_206 = arith.constant 0 : index
    %412 = vector.load %arg7[%c5_204, %c0_205, %c0_206] : memref<12x1x128xf32, #tpu.memory_space<vmem>>, vector<1x1x128xf32>
    %413 = vector.shape_cast %412 : vector<1x1x128xf32> to vector<1x128xf32>
    %414 = vector.broadcast %413 : vector<1x128xf32> to vector<16x128xf32>
    %415 = arith.addf %411, %414 : vector<16x128xf32>
    %c5_207 = arith.constant 5 : index
    %c0_208 = arith.constant 0 : index
    %c0_209 = arith.constant 0 : index
    %416 = vector.load %arg8[%c5_207, %c0_208, %c0_209] : memref<12x1x128xf32, #tpu.memory_space<vmem>>, vector<1x1x128xf32>
    %417 = vector.shape_cast %416 : vector<1x1x128xf32> to vector<1x128xf32>
    %c5_210 = arith.constant 5 : index
    %c0_211 = arith.constant 0 : index
    %c0_212 = arith.constant 0 : index
    %418 = vector.load %arg9[%c5_210, %c0_211, %c0_212] : memref<12x1x128xf32, #tpu.memory_space<vmem>>, vector<1x1x128xf32>
    %419 = vector.shape_cast %418 : vector<1x1x128xf32> to vector<1x128xf32>
    %cst_213 = arith.constant dense<0.000000e+00> : vector<128xf32>
    %420 = vector.multi_reduction <add>, %415, %cst_213 [0] : vector<16x128xf32> to vector<128xf32>
    %421 = vector.shape_cast %420 : vector<128xf32> to vector<1x128xf32>
    %cst_214 = arith.constant 1.600000e+01 : f32
    %422 = vector.broadcast %cst_214 : f32 to vector<1x128xf32>
    %423 = arith.divf %421, %422 : vector<1x128xf32>
    %424 = vector.broadcast %423 : vector<1x128xf32> to vector<16x128xf32>
    %425 = arith.subf %415, %424 : vector<16x128xf32>
    %426 = arith.mulf %425, %425 : vector<16x128xf32>
    %cst_215 = arith.constant dense<0.000000e+00> : vector<128xf32>
    %427 = vector.multi_reduction <add>, %426, %cst_215 [0] : vector<16x128xf32> to vector<128xf32>
    %428 = vector.shape_cast %427 : vector<128xf32> to vector<1x128xf32>
    %cst_216 = arith.constant 1.600000e+01 : f32
    %429 = vector.broadcast %cst_216 : f32 to vector<1x128xf32>
    %430 = arith.divf %428, %429 : vector<1x128xf32>
    %cst_217 = arith.constant 9.99999974E-6 : f32
    %431 = vector.broadcast %cst_217 : f32 to vector<1x128xf32>
    %432 = arith.addf %430, %431 : vector<1x128xf32>
    %433 = math.rsqrt %432 : vector<1x128xf32>
    %434 = arith.mulf %417, %433 : vector<1x128xf32>
    %435 = arith.mulf %423, %434 : vector<1x128xf32>
    %436 = arith.subf %419, %435 : vector<1x128xf32>
    %437 = vector.broadcast %434 : vector<1x128xf32> to vector<16x128xf32>
    %438 = arith.mulf %415, %437 : vector<16x128xf32>
    %439 = vector.broadcast %436 : vector<1x128xf32> to vector<16x128xf32>
    %440 = arith.addf %438, %439 : vector<16x128xf32>
    %441 = arith.negf %440 : vector<16x128xf32>
    %442 = math.exp %441 : vector<16x128xf32>
    %cst_218 = arith.constant 1.000000e+00 : f32
    %443 = vector.broadcast %cst_218 : f32 to vector<16x128xf32>
    %444 = arith.addf %443, %442 : vector<16x128xf32>
    %445 = arith.divf %443, %444 : vector<16x128xf32>
    %c5_219 = arith.constant 5 : index
    %c0_220 = arith.constant 0 : index
    %c0_221 = arith.constant 0 : index
    %446 = vector.load %arg10[%c5_219, %c0_220, %c0_221] : memref<12x128x128xf32, #tpu.memory_space<vmem>>, vector<1x128x128xf32>
    %447 = vector.shape_cast %446 : vector<1x128x128xf32> to vector<128x128xf32>
    %cst_222 = arith.constant dense<0.000000e+00> : vector<16x128xf32>
    %448 = tpu.matmul %445, %447, %cst_222 {dimension_numbers = #tpu.dot_dimension_numbers<[1], [0], [0], [1], [0, 0, 1, 1], [], []>} : vector<16x128xf32>, vector<128x128xf32>, vector<16x128xf32> -> vector<16x128xf32>
    %c5_223 = arith.constant 5 : index
    %c0_224 = arith.constant 0 : index
    %c0_225 = arith.constant 0 : index
    %449 = vector.load %arg11[%c5_223, %c0_224, %c0_225] : memref<12x1x128xf32, #tpu.memory_space<vmem>>, vector<1x1x128xf32>
    %450 = vector.shape_cast %449 : vector<1x1x128xf32> to vector<1x128xf32>
    %451 = vector.broadcast %450 : vector<1x128xf32> to vector<16x128xf32>
    %452 = arith.addf %448, %451 : vector<16x128xf32>
    %c5_226 = arith.constant 5 : index
    %c0_227 = arith.constant 0 : index
    %c0_228 = arith.constant 0 : index
    %453 = vector.load %arg12[%c5_226, %c0_227, %c0_228] : memref<12x1x128xf32, #tpu.memory_space<vmem>>, vector<1x1x128xf32>
    %454 = vector.shape_cast %453 : vector<1x1x128xf32> to vector<1x128xf32>
    %c5_229 = arith.constant 5 : index
    %c0_230 = arith.constant 0 : index
    %c0_231 = arith.constant 0 : index
    %455 = vector.load %arg13[%c5_229, %c0_230, %c0_231] : memref<12x1x128xf32, #tpu.memory_space<vmem>>, vector<1x1x128xf32>
    %456 = vector.shape_cast %455 : vector<1x1x128xf32> to vector<1x128xf32>
    %cst_232 = arith.constant dense<0.000000e+00> : vector<128xf32>
    %457 = vector.multi_reduction <add>, %452, %cst_232 [0] : vector<16x128xf32> to vector<128xf32>
    %458 = vector.shape_cast %457 : vector<128xf32> to vector<1x128xf32>
    %cst_233 = arith.constant 1.600000e+01 : f32
    %459 = vector.broadcast %cst_233 : f32 to vector<1x128xf32>
    %460 = arith.divf %458, %459 : vector<1x128xf32>
    %461 = vector.broadcast %460 : vector<1x128xf32> to vector<16x128xf32>
    %462 = arith.subf %452, %461 : vector<16x128xf32>
    %463 = arith.mulf %462, %462 : vector<16x128xf32>
    %cst_234 = arith.constant dense<0.000000e+00> : vector<128xf32>
    %464 = vector.multi_reduction <add>, %463, %cst_234 [0] : vector<16x128xf32> to vector<128xf32>
    %465 = vector.shape_cast %464 : vector<128xf32> to vector<1x128xf32>
    %cst_235 = arith.constant 1.600000e+01 : f32
    %466 = vector.broadcast %cst_235 : f32 to vector<1x128xf32>
    %467 = arith.divf %465, %466 : vector<1x128xf32>
    %cst_236 = arith.constant 9.99999974E-6 : f32
    %468 = vector.broadcast %cst_236 : f32 to vector<1x128xf32>
    %469 = arith.addf %467, %468 : vector<1x128xf32>
    %470 = math.rsqrt %469 : vector<1x128xf32>
    %471 = arith.mulf %454, %470 : vector<1x128xf32>
    %472 = arith.mulf %460, %471 : vector<1x128xf32>
    %473 = arith.subf %456, %472 : vector<1x128xf32>
    %474 = vector.broadcast %471 : vector<1x128xf32> to vector<16x128xf32>
    %475 = arith.mulf %452, %474 : vector<16x128xf32>
    %476 = vector.broadcast %473 : vector<1x128xf32> to vector<16x128xf32>
    %477 = arith.addf %475, %476 : vector<16x128xf32>
    %478 = arith.addf %477, %408 : vector<16x128xf32>
    %479 = arith.negf %478 : vector<16x128xf32>
    %480 = math.exp %479 : vector<16x128xf32>
    %cst_237 = arith.constant 1.000000e+00 : f32
    %481 = vector.broadcast %cst_237 : f32 to vector<16x128xf32>
    %482 = arith.addf %481, %480 : vector<16x128xf32>
    %483 = arith.divf %481, %482 : vector<16x128xf32>
    %c6 = arith.constant 6 : index
    %c0_238 = arith.constant 0 : index
    %c0_239 = arith.constant 0 : index
    %484 = vector.load %arg6[%c6, %c0_238, %c0_239] : memref<12x128x128xf32, #tpu.memory_space<vmem>>, vector<1x128x128xf32>
    %485 = vector.shape_cast %484 : vector<1x128x128xf32> to vector<128x128xf32>
    %cst_240 = arith.constant dense<0.000000e+00> : vector<16x128xf32>
    %486 = tpu.matmul %483, %485, %cst_240 {dimension_numbers = #tpu.dot_dimension_numbers<[1], [0], [0], [1], [0, 0, 1, 1], [], []>} : vector<16x128xf32>, vector<128x128xf32>, vector<16x128xf32> -> vector<16x128xf32>
    %c6_241 = arith.constant 6 : index
    %c0_242 = arith.constant 0 : index
    %c0_243 = arith.constant 0 : index
    %487 = vector.load %arg7[%c6_241, %c0_242, %c0_243] : memref<12x1x128xf32, #tpu.memory_space<vmem>>, vector<1x1x128xf32>
    %488 = vector.shape_cast %487 : vector<1x1x128xf32> to vector<1x128xf32>
    %489 = vector.broadcast %488 : vector<1x128xf32> to vector<16x128xf32>
    %490 = arith.addf %486, %489 : vector<16x128xf32>
    %c6_244 = arith.constant 6 : index
    %c0_245 = arith.constant 0 : index
    %c0_246 = arith.constant 0 : index
    %491 = vector.load %arg8[%c6_244, %c0_245, %c0_246] : memref<12x1x128xf32, #tpu.memory_space<vmem>>, vector<1x1x128xf32>
    %492 = vector.shape_cast %491 : vector<1x1x128xf32> to vector<1x128xf32>
    %c6_247 = arith.constant 6 : index
    %c0_248 = arith.constant 0 : index
    %c0_249 = arith.constant 0 : index
    %493 = vector.load %arg9[%c6_247, %c0_248, %c0_249] : memref<12x1x128xf32, #tpu.memory_space<vmem>>, vector<1x1x128xf32>
    %494 = vector.shape_cast %493 : vector<1x1x128xf32> to vector<1x128xf32>
    %cst_250 = arith.constant dense<0.000000e+00> : vector<128xf32>
    %495 = vector.multi_reduction <add>, %490, %cst_250 [0] : vector<16x128xf32> to vector<128xf32>
    %496 = vector.shape_cast %495 : vector<128xf32> to vector<1x128xf32>
    %cst_251 = arith.constant 1.600000e+01 : f32
    %497 = vector.broadcast %cst_251 : f32 to vector<1x128xf32>
    %498 = arith.divf %496, %497 : vector<1x128xf32>
    %499 = vector.broadcast %498 : vector<1x128xf32> to vector<16x128xf32>
    %500 = arith.subf %490, %499 : vector<16x128xf32>
    %501 = arith.mulf %500, %500 : vector<16x128xf32>
    %cst_252 = arith.constant dense<0.000000e+00> : vector<128xf32>
    %502 = vector.multi_reduction <add>, %501, %cst_252 [0] : vector<16x128xf32> to vector<128xf32>
    %503 = vector.shape_cast %502 : vector<128xf32> to vector<1x128xf32>
    %cst_253 = arith.constant 1.600000e+01 : f32
    %504 = vector.broadcast %cst_253 : f32 to vector<1x128xf32>
    %505 = arith.divf %503, %504 : vector<1x128xf32>
    %cst_254 = arith.constant 9.99999974E-6 : f32
    %506 = vector.broadcast %cst_254 : f32 to vector<1x128xf32>
    %507 = arith.addf %505, %506 : vector<1x128xf32>
    %508 = math.rsqrt %507 : vector<1x128xf32>
    %509 = arith.mulf %492, %508 : vector<1x128xf32>
    %510 = arith.mulf %498, %509 : vector<1x128xf32>
    %511 = arith.subf %494, %510 : vector<1x128xf32>
    %512 = vector.broadcast %509 : vector<1x128xf32> to vector<16x128xf32>
    %513 = arith.mulf %490, %512 : vector<16x128xf32>
    %514 = vector.broadcast %511 : vector<1x128xf32> to vector<16x128xf32>
    %515 = arith.addf %513, %514 : vector<16x128xf32>
    %516 = arith.negf %515 : vector<16x128xf32>
    %517 = math.exp %516 : vector<16x128xf32>
    %cst_255 = arith.constant 1.000000e+00 : f32
    %518 = vector.broadcast %cst_255 : f32 to vector<16x128xf32>
    %519 = arith.addf %518, %517 : vector<16x128xf32>
    %520 = arith.divf %518, %519 : vector<16x128xf32>
    %c6_256 = arith.constant 6 : index
    %c0_257 = arith.constant 0 : index
    %c0_258 = arith.constant 0 : index
    %521 = vector.load %arg10[%c6_256, %c0_257, %c0_258] : memref<12x128x128xf32, #tpu.memory_space<vmem>>, vector<1x128x128xf32>
    %522 = vector.shape_cast %521 : vector<1x128x128xf32> to vector<128x128xf32>
    %cst_259 = arith.constant dense<0.000000e+00> : vector<16x128xf32>
    %523 = tpu.matmul %520, %522, %cst_259 {dimension_numbers = #tpu.dot_dimension_numbers<[1], [0], [0], [1], [0, 0, 1, 1], [], []>} : vector<16x128xf32>, vector<128x128xf32>, vector<16x128xf32> -> vector<16x128xf32>
    %c6_260 = arith.constant 6 : index
    %c0_261 = arith.constant 0 : index
    %c0_262 = arith.constant 0 : index
    %524 = vector.load %arg11[%c6_260, %c0_261, %c0_262] : memref<12x1x128xf32, #tpu.memory_space<vmem>>, vector<1x1x128xf32>
    %525 = vector.shape_cast %524 : vector<1x1x128xf32> to vector<1x128xf32>
    %526 = vector.broadcast %525 : vector<1x128xf32> to vector<16x128xf32>
    %527 = arith.addf %523, %526 : vector<16x128xf32>
    %c6_263 = arith.constant 6 : index
    %c0_264 = arith.constant 0 : index
    %c0_265 = arith.constant 0 : index
    %528 = vector.load %arg12[%c6_263, %c0_264, %c0_265] : memref<12x1x128xf32, #tpu.memory_space<vmem>>, vector<1x1x128xf32>
    %529 = vector.shape_cast %528 : vector<1x1x128xf32> to vector<1x128xf32>
    %c6_266 = arith.constant 6 : index
    %c0_267 = arith.constant 0 : index
    %c0_268 = arith.constant 0 : index
    %530 = vector.load %arg13[%c6_266, %c0_267, %c0_268] : memref<12x1x128xf32, #tpu.memory_space<vmem>>, vector<1x1x128xf32>
    %531 = vector.shape_cast %530 : vector<1x1x128xf32> to vector<1x128xf32>
    %cst_269 = arith.constant dense<0.000000e+00> : vector<128xf32>
    %532 = vector.multi_reduction <add>, %527, %cst_269 [0] : vector<16x128xf32> to vector<128xf32>
    %533 = vector.shape_cast %532 : vector<128xf32> to vector<1x128xf32>
    %cst_270 = arith.constant 1.600000e+01 : f32
    %534 = vector.broadcast %cst_270 : f32 to vector<1x128xf32>
    %535 = arith.divf %533, %534 : vector<1x128xf32>
    %536 = vector.broadcast %535 : vector<1x128xf32> to vector<16x128xf32>
    %537 = arith.subf %527, %536 : vector<16x128xf32>
    %538 = arith.mulf %537, %537 : vector<16x128xf32>
    %cst_271 = arith.constant dense<0.000000e+00> : vector<128xf32>
    %539 = vector.multi_reduction <add>, %538, %cst_271 [0] : vector<16x128xf32> to vector<128xf32>
    %540 = vector.shape_cast %539 : vector<128xf32> to vector<1x128xf32>
    %cst_272 = arith.constant 1.600000e+01 : f32
    %541 = vector.broadcast %cst_272 : f32 to vector<1x128xf32>
    %542 = arith.divf %540, %541 : vector<1x128xf32>
    %cst_273 = arith.constant 9.99999974E-6 : f32
    %543 = vector.broadcast %cst_273 : f32 to vector<1x128xf32>
    %544 = arith.addf %542, %543 : vector<1x128xf32>
    %545 = math.rsqrt %544 : vector<1x128xf32>
    %546 = arith.mulf %529, %545 : vector<1x128xf32>
    %547 = arith.mulf %535, %546 : vector<1x128xf32>
    %548 = arith.subf %531, %547 : vector<1x128xf32>
    %549 = vector.broadcast %546 : vector<1x128xf32> to vector<16x128xf32>
    %550 = arith.mulf %527, %549 : vector<16x128xf32>
    %551 = vector.broadcast %548 : vector<1x128xf32> to vector<16x128xf32>
    %552 = arith.addf %550, %551 : vector<16x128xf32>
    %553 = arith.addf %552, %483 : vector<16x128xf32>
    %554 = arith.negf %553 : vector<16x128xf32>
    %555 = math.exp %554 : vector<16x128xf32>
    %cst_274 = arith.constant 1.000000e+00 : f32
    %556 = vector.broadcast %cst_274 : f32 to vector<16x128xf32>
    %557 = arith.addf %556, %555 : vector<16x128xf32>
    %558 = arith.divf %556, %557 : vector<16x128xf32>
    %c7 = arith.constant 7 : index
    %c0_275 = arith.constant 0 : index
    %c0_276 = arith.constant 0 : index
    %559 = vector.load %arg6[%c7, %c0_275, %c0_276] : memref<12x128x128xf32, #tpu.memory_space<vmem>>, vector<1x128x128xf32>
    %560 = vector.shape_cast %559 : vector<1x128x128xf32> to vector<128x128xf32>
    %cst_277 = arith.constant dense<0.000000e+00> : vector<16x128xf32>
    %561 = tpu.matmul %558, %560, %cst_277 {dimension_numbers = #tpu.dot_dimension_numbers<[1], [0], [0], [1], [0, 0, 1, 1], [], []>} : vector<16x128xf32>, vector<128x128xf32>, vector<16x128xf32> -> vector<16x128xf32>
    %c7_278 = arith.constant 7 : index
    %c0_279 = arith.constant 0 : index
    %c0_280 = arith.constant 0 : index
    %562 = vector.load %arg7[%c7_278, %c0_279, %c0_280] : memref<12x1x128xf32, #tpu.memory_space<vmem>>, vector<1x1x128xf32>
    %563 = vector.shape_cast %562 : vector<1x1x128xf32> to vector<1x128xf32>
    %564 = vector.broadcast %563 : vector<1x128xf32> to vector<16x128xf32>
    %565 = arith.addf %561, %564 : vector<16x128xf32>
    %c7_281 = arith.constant 7 : index
    %c0_282 = arith.constant 0 : index
    %c0_283 = arith.constant 0 : index
    %566 = vector.load %arg8[%c7_281, %c0_282, %c0_283] : memref<12x1x128xf32, #tpu.memory_space<vmem>>, vector<1x1x128xf32>
    %567 = vector.shape_cast %566 : vector<1x1x128xf32> to vector<1x128xf32>
    %c7_284 = arith.constant 7 : index
    %c0_285 = arith.constant 0 : index
    %c0_286 = arith.constant 0 : index
    %568 = vector.load %arg9[%c7_284, %c0_285, %c0_286] : memref<12x1x128xf32, #tpu.memory_space<vmem>>, vector<1x1x128xf32>
    %569 = vector.shape_cast %568 : vector<1x1x128xf32> to vector<1x128xf32>
    %cst_287 = arith.constant dense<0.000000e+00> : vector<128xf32>
    %570 = vector.multi_reduction <add>, %565, %cst_287 [0] : vector<16x128xf32> to vector<128xf32>
    %571 = vector.shape_cast %570 : vector<128xf32> to vector<1x128xf32>
    %cst_288 = arith.constant 1.600000e+01 : f32
    %572 = vector.broadcast %cst_288 : f32 to vector<1x128xf32>
    %573 = arith.divf %571, %572 : vector<1x128xf32>
    %574 = vector.broadcast %573 : vector<1x128xf32> to vector<16x128xf32>
    %575 = arith.subf %565, %574 : vector<16x128xf32>
    %576 = arith.mulf %575, %575 : vector<16x128xf32>
    %cst_289 = arith.constant dense<0.000000e+00> : vector<128xf32>
    %577 = vector.multi_reduction <add>, %576, %cst_289 [0] : vector<16x128xf32> to vector<128xf32>
    %578 = vector.shape_cast %577 : vector<128xf32> to vector<1x128xf32>
    %cst_290 = arith.constant 1.600000e+01 : f32
    %579 = vector.broadcast %cst_290 : f32 to vector<1x128xf32>
    %580 = arith.divf %578, %579 : vector<1x128xf32>
    %cst_291 = arith.constant 9.99999974E-6 : f32
    %581 = vector.broadcast %cst_291 : f32 to vector<1x128xf32>
    %582 = arith.addf %580, %581 : vector<1x128xf32>
    %583 = math.rsqrt %582 : vector<1x128xf32>
    %584 = arith.mulf %567, %583 : vector<1x128xf32>
    %585 = arith.mulf %573, %584 : vector<1x128xf32>
    %586 = arith.subf %569, %585 : vector<1x128xf32>
    %587 = vector.broadcast %584 : vector<1x128xf32> to vector<16x128xf32>
    %588 = arith.mulf %565, %587 : vector<16x128xf32>
    %589 = vector.broadcast %586 : vector<1x128xf32> to vector<16x128xf32>
    %590 = arith.addf %588, %589 : vector<16x128xf32>
    %591 = arith.negf %590 : vector<16x128xf32>
    %592 = math.exp %591 : vector<16x128xf32>
    %cst_292 = arith.constant 1.000000e+00 : f32
    %593 = vector.broadcast %cst_292 : f32 to vector<16x128xf32>
    %594 = arith.addf %593, %592 : vector<16x128xf32>
    %595 = arith.divf %593, %594 : vector<16x128xf32>
    %c7_293 = arith.constant 7 : index
    %c0_294 = arith.constant 0 : index
    %c0_295 = arith.constant 0 : index
    %596 = vector.load %arg10[%c7_293, %c0_294, %c0_295] : memref<12x128x128xf32, #tpu.memory_space<vmem>>, vector<1x128x128xf32>
    %597 = vector.shape_cast %596 : vector<1x128x128xf32> to vector<128x128xf32>
    %cst_296 = arith.constant dense<0.000000e+00> : vector<16x128xf32>
    %598 = tpu.matmul %595, %597, %cst_296 {dimension_numbers = #tpu.dot_dimension_numbers<[1], [0], [0], [1], [0, 0, 1, 1], [], []>} : vector<16x128xf32>, vector<128x128xf32>, vector<16x128xf32> -> vector<16x128xf32>
    %c7_297 = arith.constant 7 : index
    %c0_298 = arith.constant 0 : index
    %c0_299 = arith.constant 0 : index
    %599 = vector.load %arg11[%c7_297, %c0_298, %c0_299] : memref<12x1x128xf32, #tpu.memory_space<vmem>>, vector<1x1x128xf32>
    %600 = vector.shape_cast %599 : vector<1x1x128xf32> to vector<1x128xf32>
    %601 = vector.broadcast %600 : vector<1x128xf32> to vector<16x128xf32>
    %602 = arith.addf %598, %601 : vector<16x128xf32>
    %c7_300 = arith.constant 7 : index
    %c0_301 = arith.constant 0 : index
    %c0_302 = arith.constant 0 : index
    %603 = vector.load %arg12[%c7_300, %c0_301, %c0_302] : memref<12x1x128xf32, #tpu.memory_space<vmem>>, vector<1x1x128xf32>
    %604 = vector.shape_cast %603 : vector<1x1x128xf32> to vector<1x128xf32>
    %c7_303 = arith.constant 7 : index
    %c0_304 = arith.constant 0 : index
    %c0_305 = arith.constant 0 : index
    %605 = vector.load %arg13[%c7_303, %c0_304, %c0_305] : memref<12x1x128xf32, #tpu.memory_space<vmem>>, vector<1x1x128xf32>
    %606 = vector.shape_cast %605 : vector<1x1x128xf32> to vector<1x128xf32>
    %cst_306 = arith.constant dense<0.000000e+00> : vector<128xf32>
    %607 = vector.multi_reduction <add>, %602, %cst_306 [0] : vector<16x128xf32> to vector<128xf32>
    %608 = vector.shape_cast %607 : vector<128xf32> to vector<1x128xf32>
    %cst_307 = arith.constant 1.600000e+01 : f32
    %609 = vector.broadcast %cst_307 : f32 to vector<1x128xf32>
    %610 = arith.divf %608, %609 : vector<1x128xf32>
    %611 = vector.broadcast %610 : vector<1x128xf32> to vector<16x128xf32>
    %612 = arith.subf %602, %611 : vector<16x128xf32>
    %613 = arith.mulf %612, %612 : vector<16x128xf32>
    %cst_308 = arith.constant dense<0.000000e+00> : vector<128xf32>
    %614 = vector.multi_reduction <add>, %613, %cst_308 [0] : vector<16x128xf32> to vector<128xf32>
    %615 = vector.shape_cast %614 : vector<128xf32> to vector<1x128xf32>
    %cst_309 = arith.constant 1.600000e+01 : f32
    %616 = vector.broadcast %cst_309 : f32 to vector<1x128xf32>
    %617 = arith.divf %615, %616 : vector<1x128xf32>
    %cst_310 = arith.constant 9.99999974E-6 : f32
    %618 = vector.broadcast %cst_310 : f32 to vector<1x128xf32>
    %619 = arith.addf %617, %618 : vector<1x128xf32>
    %620 = math.rsqrt %619 : vector<1x128xf32>
    %621 = arith.mulf %604, %620 : vector<1x128xf32>
    %622 = arith.mulf %610, %621 : vector<1x128xf32>
    %623 = arith.subf %606, %622 : vector<1x128xf32>
    %624 = vector.broadcast %621 : vector<1x128xf32> to vector<16x128xf32>
    %625 = arith.mulf %602, %624 : vector<16x128xf32>
    %626 = vector.broadcast %623 : vector<1x128xf32> to vector<16x128xf32>
    %627 = arith.addf %625, %626 : vector<16x128xf32>
    %628 = arith.addf %627, %558 : vector<16x128xf32>
    %629 = arith.negf %628 : vector<16x128xf32>
    %630 = math.exp %629 : vector<16x128xf32>
    %cst_311 = arith.constant 1.000000e+00 : f32
    %631 = vector.broadcast %cst_311 : f32 to vector<16x128xf32>
    %632 = arith.addf %631, %630 : vector<16x128xf32>
    %633 = arith.divf %631, %632 : vector<16x128xf32>
    %c8 = arith.constant 8 : index
    %c0_312 = arith.constant 0 : index
    %c0_313 = arith.constant 0 : index
    %634 = vector.load %arg6[%c8, %c0_312, %c0_313] : memref<12x128x128xf32, #tpu.memory_space<vmem>>, vector<1x128x128xf32>
    %635 = vector.shape_cast %634 : vector<1x128x128xf32> to vector<128x128xf32>
    %cst_314 = arith.constant dense<0.000000e+00> : vector<16x128xf32>
    %636 = tpu.matmul %633, %635, %cst_314 {dimension_numbers = #tpu.dot_dimension_numbers<[1], [0], [0], [1], [0, 0, 1, 1], [], []>} : vector<16x128xf32>, vector<128x128xf32>, vector<16x128xf32> -> vector<16x128xf32>
    %c8_315 = arith.constant 8 : index
    %c0_316 = arith.constant 0 : index
    %c0_317 = arith.constant 0 : index
    %637 = vector.load %arg7[%c8_315, %c0_316, %c0_317] : memref<12x1x128xf32, #tpu.memory_space<vmem>>, vector<1x1x128xf32>
    %638 = vector.shape_cast %637 : vector<1x1x128xf32> to vector<1x128xf32>
    %639 = vector.broadcast %638 : vector<1x128xf32> to vector<16x128xf32>
    %640 = arith.addf %636, %639 : vector<16x128xf32>
    %c8_318 = arith.constant 8 : index
    %c0_319 = arith.constant 0 : index
    %c0_320 = arith.constant 0 : index
    %641 = vector.load %arg8[%c8_318, %c0_319, %c0_320] : memref<12x1x128xf32, #tpu.memory_space<vmem>>, vector<1x1x128xf32>
    %642 = vector.shape_cast %641 : vector<1x1x128xf32> to vector<1x128xf32>
    %c8_321 = arith.constant 8 : index
    %c0_322 = arith.constant 0 : index
    %c0_323 = arith.constant 0 : index
    %643 = vector.load %arg9[%c8_321, %c0_322, %c0_323] : memref<12x1x128xf32, #tpu.memory_space<vmem>>, vector<1x1x128xf32>
    %644 = vector.shape_cast %643 : vector<1x1x128xf32> to vector<1x128xf32>
    %cst_324 = arith.constant dense<0.000000e+00> : vector<128xf32>
    %645 = vector.multi_reduction <add>, %640, %cst_324 [0] : vector<16x128xf32> to vector<128xf32>
    %646 = vector.shape_cast %645 : vector<128xf32> to vector<1x128xf32>
    %cst_325 = arith.constant 1.600000e+01 : f32
    %647 = vector.broadcast %cst_325 : f32 to vector<1x128xf32>
    %648 = arith.divf %646, %647 : vector<1x128xf32>
    %649 = vector.broadcast %648 : vector<1x128xf32> to vector<16x128xf32>
    %650 = arith.subf %640, %649 : vector<16x128xf32>
    %651 = arith.mulf %650, %650 : vector<16x128xf32>
    %cst_326 = arith.constant dense<0.000000e+00> : vector<128xf32>
    %652 = vector.multi_reduction <add>, %651, %cst_326 [0] : vector<16x128xf32> to vector<128xf32>
    %653 = vector.shape_cast %652 : vector<128xf32> to vector<1x128xf32>
    %cst_327 = arith.constant 1.600000e+01 : f32
    %654 = vector.broadcast %cst_327 : f32 to vector<1x128xf32>
    %655 = arith.divf %653, %654 : vector<1x128xf32>
    %cst_328 = arith.constant 9.99999974E-6 : f32
    %656 = vector.broadcast %cst_328 : f32 to vector<1x128xf32>
    %657 = arith.addf %655, %656 : vector<1x128xf32>
    %658 = math.rsqrt %657 : vector<1x128xf32>
    %659 = arith.mulf %642, %658 : vector<1x128xf32>
    %660 = arith.mulf %648, %659 : vector<1x128xf32>
    %661 = arith.subf %644, %660 : vector<1x128xf32>
    %662 = vector.broadcast %659 : vector<1x128xf32> to vector<16x128xf32>
    %663 = arith.mulf %640, %662 : vector<16x128xf32>
    %664 = vector.broadcast %661 : vector<1x128xf32> to vector<16x128xf32>
    %665 = arith.addf %663, %664 : vector<16x128xf32>
    %666 = arith.negf %665 : vector<16x128xf32>
    %667 = math.exp %666 : vector<16x128xf32>
    %cst_329 = arith.constant 1.000000e+00 : f32
    %668 = vector.broadcast %cst_329 : f32 to vector<16x128xf32>
    %669 = arith.addf %668, %667 : vector<16x128xf32>
    %670 = arith.divf %668, %669 : vector<16x128xf32>
    %c8_330 = arith.constant 8 : index
    %c0_331 = arith.constant 0 : index
    %c0_332 = arith.constant 0 : index
    %671 = vector.load %arg10[%c8_330, %c0_331, %c0_332] : memref<12x128x128xf32, #tpu.memory_space<vmem>>, vector<1x128x128xf32>
    %672 = vector.shape_cast %671 : vector<1x128x128xf32> to vector<128x128xf32>
    %cst_333 = arith.constant dense<0.000000e+00> : vector<16x128xf32>
    %673 = tpu.matmul %670, %672, %cst_333 {dimension_numbers = #tpu.dot_dimension_numbers<[1], [0], [0], [1], [0, 0, 1, 1], [], []>} : vector<16x128xf32>, vector<128x128xf32>, vector<16x128xf32> -> vector<16x128xf32>
    %c8_334 = arith.constant 8 : index
    %c0_335 = arith.constant 0 : index
    %c0_336 = arith.constant 0 : index
    %674 = vector.load %arg11[%c8_334, %c0_335, %c0_336] : memref<12x1x128xf32, #tpu.memory_space<vmem>>, vector<1x1x128xf32>
    %675 = vector.shape_cast %674 : vector<1x1x128xf32> to vector<1x128xf32>
    %676 = vector.broadcast %675 : vector<1x128xf32> to vector<16x128xf32>
    %677 = arith.addf %673, %676 : vector<16x128xf32>
    %c8_337 = arith.constant 8 : index
    %c0_338 = arith.constant 0 : index
    %c0_339 = arith.constant 0 : index
    %678 = vector.load %arg12[%c8_337, %c0_338, %c0_339] : memref<12x1x128xf32, #tpu.memory_space<vmem>>, vector<1x1x128xf32>
    %679 = vector.shape_cast %678 : vector<1x1x128xf32> to vector<1x128xf32>
    %c8_340 = arith.constant 8 : index
    %c0_341 = arith.constant 0 : index
    %c0_342 = arith.constant 0 : index
    %680 = vector.load %arg13[%c8_340, %c0_341, %c0_342] : memref<12x1x128xf32, #tpu.memory_space<vmem>>, vector<1x1x128xf32>
    %681 = vector.shape_cast %680 : vector<1x1x128xf32> to vector<1x128xf32>
    %cst_343 = arith.constant dense<0.000000e+00> : vector<128xf32>
    %682 = vector.multi_reduction <add>, %677, %cst_343 [0] : vector<16x128xf32> to vector<128xf32>
    %683 = vector.shape_cast %682 : vector<128xf32> to vector<1x128xf32>
    %cst_344 = arith.constant 1.600000e+01 : f32
    %684 = vector.broadcast %cst_344 : f32 to vector<1x128xf32>
    %685 = arith.divf %683, %684 : vector<1x128xf32>
    %686 = vector.broadcast %685 : vector<1x128xf32> to vector<16x128xf32>
    %687 = arith.subf %677, %686 : vector<16x128xf32>
    %688 = arith.mulf %687, %687 : vector<16x128xf32>
    %cst_345 = arith.constant dense<0.000000e+00> : vector<128xf32>
    %689 = vector.multi_reduction <add>, %688, %cst_345 [0] : vector<16x128xf32> to vector<128xf32>
    %690 = vector.shape_cast %689 : vector<128xf32> to vector<1x128xf32>
    %cst_346 = arith.constant 1.600000e+01 : f32
    %691 = vector.broadcast %cst_346 : f32 to vector<1x128xf32>
    %692 = arith.divf %690, %691 : vector<1x128xf32>
    %cst_347 = arith.constant 9.99999974E-6 : f32
    %693 = vector.broadcast %cst_347 : f32 to vector<1x128xf32>
    %694 = arith.addf %692, %693 : vector<1x128xf32>
    %695 = math.rsqrt %694 : vector<1x128xf32>
    %696 = arith.mulf %679, %695 : vector<1x128xf32>
    %697 = arith.mulf %685, %696 : vector<1x128xf32>
    %698 = arith.subf %681, %697 : vector<1x128xf32>
    %699 = vector.broadcast %696 : vector<1x128xf32> to vector<16x128xf32>
    %700 = arith.mulf %677, %699 : vector<16x128xf32>
    %701 = vector.broadcast %698 : vector<1x128xf32> to vector<16x128xf32>
    %702 = arith.addf %700, %701 : vector<16x128xf32>
    %703 = arith.addf %702, %633 : vector<16x128xf32>
    %704 = arith.negf %703 : vector<16x128xf32>
    %705 = math.exp %704 : vector<16x128xf32>
    %cst_348 = arith.constant 1.000000e+00 : f32
    %706 = vector.broadcast %cst_348 : f32 to vector<16x128xf32>
    %707 = arith.addf %706, %705 : vector<16x128xf32>
    %708 = arith.divf %706, %707 : vector<16x128xf32>
    %c9 = arith.constant 9 : index
    %c0_349 = arith.constant 0 : index
    %c0_350 = arith.constant 0 : index
    %709 = vector.load %arg6[%c9, %c0_349, %c0_350] : memref<12x128x128xf32, #tpu.memory_space<vmem>>, vector<1x128x128xf32>
    %710 = vector.shape_cast %709 : vector<1x128x128xf32> to vector<128x128xf32>
    %cst_351 = arith.constant dense<0.000000e+00> : vector<16x128xf32>
    %711 = tpu.matmul %708, %710, %cst_351 {dimension_numbers = #tpu.dot_dimension_numbers<[1], [0], [0], [1], [0, 0, 1, 1], [], []>} : vector<16x128xf32>, vector<128x128xf32>, vector<16x128xf32> -> vector<16x128xf32>
    %c9_352 = arith.constant 9 : index
    %c0_353 = arith.constant 0 : index
    %c0_354 = arith.constant 0 : index
    %712 = vector.load %arg7[%c9_352, %c0_353, %c0_354] : memref<12x1x128xf32, #tpu.memory_space<vmem>>, vector<1x1x128xf32>
    %713 = vector.shape_cast %712 : vector<1x1x128xf32> to vector<1x128xf32>
    %714 = vector.broadcast %713 : vector<1x128xf32> to vector<16x128xf32>
    %715 = arith.addf %711, %714 : vector<16x128xf32>
    %c9_355 = arith.constant 9 : index
    %c0_356 = arith.constant 0 : index
    %c0_357 = arith.constant 0 : index
    %716 = vector.load %arg8[%c9_355, %c0_356, %c0_357] : memref<12x1x128xf32, #tpu.memory_space<vmem>>, vector<1x1x128xf32>
    %717 = vector.shape_cast %716 : vector<1x1x128xf32> to vector<1x128xf32>
    %c9_358 = arith.constant 9 : index
    %c0_359 = arith.constant 0 : index
    %c0_360 = arith.constant 0 : index
    %718 = vector.load %arg9[%c9_358, %c0_359, %c0_360] : memref<12x1x128xf32, #tpu.memory_space<vmem>>, vector<1x1x128xf32>
    %719 = vector.shape_cast %718 : vector<1x1x128xf32> to vector<1x128xf32>
    %cst_361 = arith.constant dense<0.000000e+00> : vector<128xf32>
    %720 = vector.multi_reduction <add>, %715, %cst_361 [0] : vector<16x128xf32> to vector<128xf32>
    %721 = vector.shape_cast %720 : vector<128xf32> to vector<1x128xf32>
    %cst_362 = arith.constant 1.600000e+01 : f32
    %722 = vector.broadcast %cst_362 : f32 to vector<1x128xf32>
    %723 = arith.divf %721, %722 : vector<1x128xf32>
    %724 = vector.broadcast %723 : vector<1x128xf32> to vector<16x128xf32>
    %725 = arith.subf %715, %724 : vector<16x128xf32>
    %726 = arith.mulf %725, %725 : vector<16x128xf32>
    %cst_363 = arith.constant dense<0.000000e+00> : vector<128xf32>
    %727 = vector.multi_reduction <add>, %726, %cst_363 [0] : vector<16x128xf32> to vector<128xf32>
    %728 = vector.shape_cast %727 : vector<128xf32> to vector<1x128xf32>
    %cst_364 = arith.constant 1.600000e+01 : f32
    %729 = vector.broadcast %cst_364 : f32 to vector<1x128xf32>
    %730 = arith.divf %728, %729 : vector<1x128xf32>
    %cst_365 = arith.constant 9.99999974E-6 : f32
    %731 = vector.broadcast %cst_365 : f32 to vector<1x128xf32>
    %732 = arith.addf %730, %731 : vector<1x128xf32>
    %733 = math.rsqrt %732 : vector<1x128xf32>
    %734 = arith.mulf %717, %733 : vector<1x128xf32>
    %735 = arith.mulf %723, %734 : vector<1x128xf32>
    %736 = arith.subf %719, %735 : vector<1x128xf32>
    %737 = vector.broadcast %734 : vector<1x128xf32> to vector<16x128xf32>
    %738 = arith.mulf %715, %737 : vector<16x128xf32>
    %739 = vector.broadcast %736 : vector<1x128xf32> to vector<16x128xf32>
    %740 = arith.addf %738, %739 : vector<16x128xf32>
    %741 = arith.negf %740 : vector<16x128xf32>
    %742 = math.exp %741 : vector<16x128xf32>
    %cst_366 = arith.constant 1.000000e+00 : f32
    %743 = vector.broadcast %cst_366 : f32 to vector<16x128xf32>
    %744 = arith.addf %743, %742 : vector<16x128xf32>
    %745 = arith.divf %743, %744 : vector<16x128xf32>
    %c9_367 = arith.constant 9 : index
    %c0_368 = arith.constant 0 : index
    %c0_369 = arith.constant 0 : index
    %746 = vector.load %arg10[%c9_367, %c0_368, %c0_369] : memref<12x128x128xf32, #tpu.memory_space<vmem>>, vector<1x128x128xf32>
    %747 = vector.shape_cast %746 : vector<1x128x128xf32> to vector<128x128xf32>
    %cst_370 = arith.constant dense<0.000000e+00> : vector<16x128xf32>
    %748 = tpu.matmul %745, %747, %cst_370 {dimension_numbers = #tpu.dot_dimension_numbers<[1], [0], [0], [1], [0, 0, 1, 1], [], []>} : vector<16x128xf32>, vector<128x128xf32>, vector<16x128xf32> -> vector<16x128xf32>
    %c9_371 = arith.constant 9 : index
    %c0_372 = arith.constant 0 : index
    %c0_373 = arith.constant 0 : index
    %749 = vector.load %arg11[%c9_371, %c0_372, %c0_373] : memref<12x1x128xf32, #tpu.memory_space<vmem>>, vector<1x1x128xf32>
    %750 = vector.shape_cast %749 : vector<1x1x128xf32> to vector<1x128xf32>
    %751 = vector.broadcast %750 : vector<1x128xf32> to vector<16x128xf32>
    %752 = arith.addf %748, %751 : vector<16x128xf32>
    %c9_374 = arith.constant 9 : index
    %c0_375 = arith.constant 0 : index
    %c0_376 = arith.constant 0 : index
    %753 = vector.load %arg12[%c9_374, %c0_375, %c0_376] : memref<12x1x128xf32, #tpu.memory_space<vmem>>, vector<1x1x128xf32>
    %754 = vector.shape_cast %753 : vector<1x1x128xf32> to vector<1x128xf32>
    %c9_377 = arith.constant 9 : index
    %c0_378 = arith.constant 0 : index
    %c0_379 = arith.constant 0 : index
    %755 = vector.load %arg13[%c9_377, %c0_378, %c0_379] : memref<12x1x128xf32, #tpu.memory_space<vmem>>, vector<1x1x128xf32>
    %756 = vector.shape_cast %755 : vector<1x1x128xf32> to vector<1x128xf32>
    %cst_380 = arith.constant dense<0.000000e+00> : vector<128xf32>
    %757 = vector.multi_reduction <add>, %752, %cst_380 [0] : vector<16x128xf32> to vector<128xf32>
    %758 = vector.shape_cast %757 : vector<128xf32> to vector<1x128xf32>
    %cst_381 = arith.constant 1.600000e+01 : f32
    %759 = vector.broadcast %cst_381 : f32 to vector<1x128xf32>
    %760 = arith.divf %758, %759 : vector<1x128xf32>
    %761 = vector.broadcast %760 : vector<1x128xf32> to vector<16x128xf32>
    %762 = arith.subf %752, %761 : vector<16x128xf32>
    %763 = arith.mulf %762, %762 : vector<16x128xf32>
    %cst_382 = arith.constant dense<0.000000e+00> : vector<128xf32>
    %764 = vector.multi_reduction <add>, %763, %cst_382 [0] : vector<16x128xf32> to vector<128xf32>
    %765 = vector.shape_cast %764 : vector<128xf32> to vector<1x128xf32>
    %cst_383 = arith.constant 1.600000e+01 : f32
    %766 = vector.broadcast %cst_383 : f32 to vector<1x128xf32>
    %767 = arith.divf %765, %766 : vector<1x128xf32>
    %cst_384 = arith.constant 9.99999974E-6 : f32
    %768 = vector.broadcast %cst_384 : f32 to vector<1x128xf32>
    %769 = arith.addf %767, %768 : vector<1x128xf32>
    %770 = math.rsqrt %769 : vector<1x128xf32>
    %771 = arith.mulf %754, %770 : vector<1x128xf32>
    %772 = arith.mulf %760, %771 : vector<1x128xf32>
    %773 = arith.subf %756, %772 : vector<1x128xf32>
    %774 = vector.broadcast %771 : vector<1x128xf32> to vector<16x128xf32>
    %775 = arith.mulf %752, %774 : vector<16x128xf32>
    %776 = vector.broadcast %773 : vector<1x128xf32> to vector<16x128xf32>
    %777 = arith.addf %775, %776 : vector<16x128xf32>
    %778 = arith.addf %777, %708 : vector<16x128xf32>
    %779 = arith.negf %778 : vector<16x128xf32>
    %780 = math.exp %779 : vector<16x128xf32>
    %cst_385 = arith.constant 1.000000e+00 : f32
    %781 = vector.broadcast %cst_385 : f32 to vector<16x128xf32>
    %782 = arith.addf %781, %780 : vector<16x128xf32>
    %783 = arith.divf %781, %782 : vector<16x128xf32>
    %c10 = arith.constant 10 : index
    %c0_386 = arith.constant 0 : index
    %c0_387 = arith.constant 0 : index
    %784 = vector.load %arg6[%c10, %c0_386, %c0_387] : memref<12x128x128xf32, #tpu.memory_space<vmem>>, vector<1x128x128xf32>
    %785 = vector.shape_cast %784 : vector<1x128x128xf32> to vector<128x128xf32>
    %cst_388 = arith.constant dense<0.000000e+00> : vector<16x128xf32>
    %786 = tpu.matmul %783, %785, %cst_388 {dimension_numbers = #tpu.dot_dimension_numbers<[1], [0], [0], [1], [0, 0, 1, 1], [], []>} : vector<16x128xf32>, vector<128x128xf32>, vector<16x128xf32> -> vector<16x128xf32>
    %c10_389 = arith.constant 10 : index
    %c0_390 = arith.constant 0 : index
    %c0_391 = arith.constant 0 : index
    %787 = vector.load %arg7[%c10_389, %c0_390, %c0_391] : memref<12x1x128xf32, #tpu.memory_space<vmem>>, vector<1x1x128xf32>
    %788 = vector.shape_cast %787 : vector<1x1x128xf32> to vector<1x128xf32>
    %789 = vector.broadcast %788 : vector<1x128xf32> to vector<16x128xf32>
    %790 = arith.addf %786, %789 : vector<16x128xf32>
    %c10_392 = arith.constant 10 : index
    %c0_393 = arith.constant 0 : index
    %c0_394 = arith.constant 0 : index
    %791 = vector.load %arg8[%c10_392, %c0_393, %c0_394] : memref<12x1x128xf32, #tpu.memory_space<vmem>>, vector<1x1x128xf32>
    %792 = vector.shape_cast %791 : vector<1x1x128xf32> to vector<1x128xf32>
    %c10_395 = arith.constant 10 : index
    %c0_396 = arith.constant 0 : index
    %c0_397 = arith.constant 0 : index
    %793 = vector.load %arg9[%c10_395, %c0_396, %c0_397] : memref<12x1x128xf32, #tpu.memory_space<vmem>>, vector<1x1x128xf32>
    %794 = vector.shape_cast %793 : vector<1x1x128xf32> to vector<1x128xf32>
    %cst_398 = arith.constant dense<0.000000e+00> : vector<128xf32>
    %795 = vector.multi_reduction <add>, %790, %cst_398 [0] : vector<16x128xf32> to vector<128xf32>
    %796 = vector.shape_cast %795 : vector<128xf32> to vector<1x128xf32>
    %cst_399 = arith.constant 1.600000e+01 : f32
    %797 = vector.broadcast %cst_399 : f32 to vector<1x128xf32>
    %798 = arith.divf %796, %797 : vector<1x128xf32>
    %799 = vector.broadcast %798 : vector<1x128xf32> to vector<16x128xf32>
    %800 = arith.subf %790, %799 : vector<16x128xf32>
    %801 = arith.mulf %800, %800 : vector<16x128xf32>
    %cst_400 = arith.constant dense<0.000000e+00> : vector<128xf32>
    %802 = vector.multi_reduction <add>, %801, %cst_400 [0] : vector<16x128xf32> to vector<128xf32>
    %803 = vector.shape_cast %802 : vector<128xf32> to vector<1x128xf32>
    %cst_401 = arith.constant 1.600000e+01 : f32
    %804 = vector.broadcast %cst_401 : f32 to vector<1x128xf32>
    %805 = arith.divf %803, %804 : vector<1x128xf32>
    %cst_402 = arith.constant 9.99999974E-6 : f32
    %806 = vector.broadcast %cst_402 : f32 to vector<1x128xf32>
    %807 = arith.addf %805, %806 : vector<1x128xf32>
    %808 = math.rsqrt %807 : vector<1x128xf32>
    %809 = arith.mulf %792, %808 : vector<1x128xf32>
    %810 = arith.mulf %798, %809 : vector<1x128xf32>
    %811 = arith.subf %794, %810 : vector<1x128xf32>
    %812 = vector.broadcast %809 : vector<1x128xf32> to vector<16x128xf32>
    %813 = arith.mulf %790, %812 : vector<16x128xf32>
    %814 = vector.broadcast %811 : vector<1x128xf32> to vector<16x128xf32>
    %815 = arith.addf %813, %814 : vector<16x128xf32>
    %816 = arith.negf %815 : vector<16x128xf32>
    %817 = math.exp %816 : vector<16x128xf32>
    %cst_403 = arith.constant 1.000000e+00 : f32
    %818 = vector.broadcast %cst_403 : f32 to vector<16x128xf32>
    %819 = arith.addf %818, %817 : vector<16x128xf32>
    %820 = arith.divf %818, %819 : vector<16x128xf32>
    %c10_404 = arith.constant 10 : index
    %c0_405 = arith.constant 0 : index
    %c0_406 = arith.constant 0 : index
    %821 = vector.load %arg10[%c10_404, %c0_405, %c0_406] : memref<12x128x128xf32, #tpu.memory_space<vmem>>, vector<1x128x128xf32>
    %822 = vector.shape_cast %821 : vector<1x128x128xf32> to vector<128x128xf32>
    %cst_407 = arith.constant dense<0.000000e+00> : vector<16x128xf32>
    %823 = tpu.matmul %820, %822, %cst_407 {dimension_numbers = #tpu.dot_dimension_numbers<[1], [0], [0], [1], [0, 0, 1, 1], [], []>} : vector<16x128xf32>, vector<128x128xf32>, vector<16x128xf32> -> vector<16x128xf32>
    %c10_408 = arith.constant 10 : index
    %c0_409 = arith.constant 0 : index
    %c0_410 = arith.constant 0 : index
    %824 = vector.load %arg11[%c10_408, %c0_409, %c0_410] : memref<12x1x128xf32, #tpu.memory_space<vmem>>, vector<1x1x128xf32>
    %825 = vector.shape_cast %824 : vector<1x1x128xf32> to vector<1x128xf32>
    %826 = vector.broadcast %825 : vector<1x128xf32> to vector<16x128xf32>
    %827 = arith.addf %823, %826 : vector<16x128xf32>
    %c10_411 = arith.constant 10 : index
    %c0_412 = arith.constant 0 : index
    %c0_413 = arith.constant 0 : index
    %828 = vector.load %arg12[%c10_411, %c0_412, %c0_413] : memref<12x1x128xf32, #tpu.memory_space<vmem>>, vector<1x1x128xf32>
    %829 = vector.shape_cast %828 : vector<1x1x128xf32> to vector<1x128xf32>
    %c10_414 = arith.constant 10 : index
    %c0_415 = arith.constant 0 : index
    %c0_416 = arith.constant 0 : index
    %830 = vector.load %arg13[%c10_414, %c0_415, %c0_416] : memref<12x1x128xf32, #tpu.memory_space<vmem>>, vector<1x1x128xf32>
    %831 = vector.shape_cast %830 : vector<1x1x128xf32> to vector<1x128xf32>
    %cst_417 = arith.constant dense<0.000000e+00> : vector<128xf32>
    %832 = vector.multi_reduction <add>, %827, %cst_417 [0] : vector<16x128xf32> to vector<128xf32>
    %833 = vector.shape_cast %832 : vector<128xf32> to vector<1x128xf32>
    %cst_418 = arith.constant 1.600000e+01 : f32
    %834 = vector.broadcast %cst_418 : f32 to vector<1x128xf32>
    %835 = arith.divf %833, %834 : vector<1x128xf32>
    %836 = vector.broadcast %835 : vector<1x128xf32> to vector<16x128xf32>
    %837 = arith.subf %827, %836 : vector<16x128xf32>
    %838 = arith.mulf %837, %837 : vector<16x128xf32>
    %cst_419 = arith.constant dense<0.000000e+00> : vector<128xf32>
    %839 = vector.multi_reduction <add>, %838, %cst_419 [0] : vector<16x128xf32> to vector<128xf32>
    %840 = vector.shape_cast %839 : vector<128xf32> to vector<1x128xf32>
    %cst_420 = arith.constant 1.600000e+01 : f32
    %841 = vector.broadcast %cst_420 : f32 to vector<1x128xf32>
    %842 = arith.divf %840, %841 : vector<1x128xf32>
    %cst_421 = arith.constant 9.99999974E-6 : f32
    %843 = vector.broadcast %cst_421 : f32 to vector<1x128xf32>
    %844 = arith.addf %842, %843 : vector<1x128xf32>
    %845 = math.rsqrt %844 : vector<1x128xf32>
    %846 = arith.mulf %829, %845 : vector<1x128xf32>
    %847 = arith.mulf %835, %846 : vector<1x128xf32>
    %848 = arith.subf %831, %847 : vector<1x128xf32>
    %849 = vector.broadcast %846 : vector<1x128xf32> to vector<16x128xf32>
    %850 = arith.mulf %827, %849 : vector<16x128xf32>
    %851 = vector.broadcast %848 : vector<1x128xf32> to vector<16x128xf32>
    %852 = arith.addf %850, %851 : vector<16x128xf32>
    %853 = arith.addf %852, %783 : vector<16x128xf32>
    %854 = arith.negf %853 : vector<16x128xf32>
    %855 = math.exp %854 : vector<16x128xf32>
    %cst_422 = arith.constant 1.000000e+00 : f32
    %856 = vector.broadcast %cst_422 : f32 to vector<16x128xf32>
    %857 = arith.addf %856, %855 : vector<16x128xf32>
    %858 = arith.divf %856, %857 : vector<16x128xf32>
    %c11 = arith.constant 11 : index
    %c0_423 = arith.constant 0 : index
    %c0_424 = arith.constant 0 : index
    %859 = vector.load %arg6[%c11, %c0_423, %c0_424] : memref<12x128x128xf32, #tpu.memory_space<vmem>>, vector<1x128x128xf32>
    %860 = vector.shape_cast %859 : vector<1x128x128xf32> to vector<128x128xf32>
    %cst_425 = arith.constant dense<0.000000e+00> : vector<16x128xf32>
    %861 = tpu.matmul %858, %860, %cst_425 {dimension_numbers = #tpu.dot_dimension_numbers<[1], [0], [0], [1], [0, 0, 1, 1], [], []>} : vector<16x128xf32>, vector<128x128xf32>, vector<16x128xf32> -> vector<16x128xf32>
    %c11_426 = arith.constant 11 : index
    %c0_427 = arith.constant 0 : index
    %c0_428 = arith.constant 0 : index
    %862 = vector.load %arg7[%c11_426, %c0_427, %c0_428] : memref<12x1x128xf32, #tpu.memory_space<vmem>>, vector<1x1x128xf32>
    %863 = vector.shape_cast %862 : vector<1x1x128xf32> to vector<1x128xf32>
    %864 = vector.broadcast %863 : vector<1x128xf32> to vector<16x128xf32>
    %865 = arith.addf %861, %864 : vector<16x128xf32>
    %c11_429 = arith.constant 11 : index
    %c0_430 = arith.constant 0 : index
    %c0_431 = arith.constant 0 : index
    %866 = vector.load %arg8[%c11_429, %c0_430, %c0_431] : memref<12x1x128xf32, #tpu.memory_space<vmem>>, vector<1x1x128xf32>
    %867 = vector.shape_cast %866 : vector<1x1x128xf32> to vector<1x128xf32>
    %c11_432 = arith.constant 11 : index
    %c0_433 = arith.constant 0 : index
    %c0_434 = arith.constant 0 : index
    %868 = vector.load %arg9[%c11_432, %c0_433, %c0_434] : memref<12x1x128xf32, #tpu.memory_space<vmem>>, vector<1x1x128xf32>
    %869 = vector.shape_cast %868 : vector<1x1x128xf32> to vector<1x128xf32>
    %cst_435 = arith.constant dense<0.000000e+00> : vector<128xf32>
    %870 = vector.multi_reduction <add>, %865, %cst_435 [0] : vector<16x128xf32> to vector<128xf32>
    %871 = vector.shape_cast %870 : vector<128xf32> to vector<1x128xf32>
    %cst_436 = arith.constant 1.600000e+01 : f32
    %872 = vector.broadcast %cst_436 : f32 to vector<1x128xf32>
    %873 = arith.divf %871, %872 : vector<1x128xf32>
    %874 = vector.broadcast %873 : vector<1x128xf32> to vector<16x128xf32>
    %875 = arith.subf %865, %874 : vector<16x128xf32>
    %876 = arith.mulf %875, %875 : vector<16x128xf32>
    %cst_437 = arith.constant dense<0.000000e+00> : vector<128xf32>
    %877 = vector.multi_reduction <add>, %876, %cst_437 [0] : vector<16x128xf32> to vector<128xf32>
    %878 = vector.shape_cast %877 : vector<128xf32> to vector<1x128xf32>
    %cst_438 = arith.constant 1.600000e+01 : f32
    %879 = vector.broadcast %cst_438 : f32 to vector<1x128xf32>
    %880 = arith.divf %878, %879 : vector<1x128xf32>
    %cst_439 = arith.constant 9.99999974E-6 : f32
    %881 = vector.broadcast %cst_439 : f32 to vector<1x128xf32>
    %882 = arith.addf %880, %881 : vector<1x128xf32>
    %883 = math.rsqrt %882 : vector<1x128xf32>
    %884 = arith.mulf %867, %883 : vector<1x128xf32>
    %885 = arith.mulf %873, %884 : vector<1x128xf32>
    %886 = arith.subf %869, %885 : vector<1x128xf32>
    %887 = vector.broadcast %884 : vector<1x128xf32> to vector<16x128xf32>
    %888 = arith.mulf %865, %887 : vector<16x128xf32>
    %889 = vector.broadcast %886 : vector<1x128xf32> to vector<16x128xf32>
    %890 = arith.addf %888, %889 : vector<16x128xf32>
    %891 = arith.negf %890 : vector<16x128xf32>
    %892 = math.exp %891 : vector<16x128xf32>
    %cst_440 = arith.constant 1.000000e+00 : f32
    %893 = vector.broadcast %cst_440 : f32 to vector<16x128xf32>
    %894 = arith.addf %893, %892 : vector<16x128xf32>
    %895 = arith.divf %893, %894 : vector<16x128xf32>
    %c11_441 = arith.constant 11 : index
    %c0_442 = arith.constant 0 : index
    %c0_443 = arith.constant 0 : index
    %896 = vector.load %arg10[%c11_441, %c0_442, %c0_443] : memref<12x128x128xf32, #tpu.memory_space<vmem>>, vector<1x128x128xf32>
    %897 = vector.shape_cast %896 : vector<1x128x128xf32> to vector<128x128xf32>
    %cst_444 = arith.constant dense<0.000000e+00> : vector<16x128xf32>
    %898 = tpu.matmul %895, %897, %cst_444 {dimension_numbers = #tpu.dot_dimension_numbers<[1], [0], [0], [1], [0, 0, 1, 1], [], []>} : vector<16x128xf32>, vector<128x128xf32>, vector<16x128xf32> -> vector<16x128xf32>
    %c11_445 = arith.constant 11 : index
    %c0_446 = arith.constant 0 : index
    %c0_447 = arith.constant 0 : index
    %899 = vector.load %arg11[%c11_445, %c0_446, %c0_447] : memref<12x1x128xf32, #tpu.memory_space<vmem>>, vector<1x1x128xf32>
    %900 = vector.shape_cast %899 : vector<1x1x128xf32> to vector<1x128xf32>
    %901 = vector.broadcast %900 : vector<1x128xf32> to vector<16x128xf32>
    %902 = arith.addf %898, %901 : vector<16x128xf32>
    %c11_448 = arith.constant 11 : index
    %c0_449 = arith.constant 0 : index
    %c0_450 = arith.constant 0 : index
    %903 = vector.load %arg12[%c11_448, %c0_449, %c0_450] : memref<12x1x128xf32, #tpu.memory_space<vmem>>, vector<1x1x128xf32>
    %904 = vector.shape_cast %903 : vector<1x1x128xf32> to vector<1x128xf32>
    %c11_451 = arith.constant 11 : index
    %c0_452 = arith.constant 0 : index
    %c0_453 = arith.constant 0 : index
    %905 = vector.load %arg13[%c11_451, %c0_452, %c0_453] : memref<12x1x128xf32, #tpu.memory_space<vmem>>, vector<1x1x128xf32>
    %906 = vector.shape_cast %905 : vector<1x1x128xf32> to vector<1x128xf32>
    %cst_454 = arith.constant dense<0.000000e+00> : vector<128xf32>
    %907 = vector.multi_reduction <add>, %902, %cst_454 [0] : vector<16x128xf32> to vector<128xf32>
    %908 = vector.shape_cast %907 : vector<128xf32> to vector<1x128xf32>
    %cst_455 = arith.constant 1.600000e+01 : f32
    %909 = vector.broadcast %cst_455 : f32 to vector<1x128xf32>
    %910 = arith.divf %908, %909 : vector<1x128xf32>
    %911 = vector.broadcast %910 : vector<1x128xf32> to vector<16x128xf32>
    %912 = arith.subf %902, %911 : vector<16x128xf32>
    %913 = arith.mulf %912, %912 : vector<16x128xf32>
    %cst_456 = arith.constant dense<0.000000e+00> : vector<128xf32>
    %914 = vector.multi_reduction <add>, %913, %cst_456 [0] : vector<16x128xf32> to vector<128xf32>
    %915 = vector.shape_cast %914 : vector<128xf32> to vector<1x128xf32>
    %cst_457 = arith.constant 1.600000e+01 : f32
    %916 = vector.broadcast %cst_457 : f32 to vector<1x128xf32>
    %917 = arith.divf %915, %916 : vector<1x128xf32>
    %cst_458 = arith.constant 9.99999974E-6 : f32
    %918 = vector.broadcast %cst_458 : f32 to vector<1x128xf32>
    %919 = arith.addf %917, %918 : vector<1x128xf32>
    %920 = math.rsqrt %919 : vector<1x128xf32>
    %921 = arith.mulf %904, %920 : vector<1x128xf32>
    %922 = arith.mulf %910, %921 : vector<1x128xf32>
    %923 = arith.subf %906, %922 : vector<1x128xf32>
    %924 = vector.broadcast %921 : vector<1x128xf32> to vector<16x128xf32>
    %925 = arith.mulf %902, %924 : vector<16x128xf32>
    %926 = vector.broadcast %923 : vector<1x128xf32> to vector<16x128xf32>
    %927 = arith.addf %925, %926 : vector<16x128xf32>
    %928 = arith.addf %927, %858 : vector<16x128xf32>
    %929 = arith.negf %928 : vector<16x128xf32>
    %930 = math.exp %929 : vector<16x128xf32>
    %cst_459 = arith.constant 1.000000e+00 : f32
    %931 = vector.broadcast %cst_459 : f32 to vector<16x128xf32>
    %932 = arith.addf %931, %930 : vector<16x128xf32>
    %933 = arith.divf %931, %932 : vector<16x128xf32>
    %c0_460 = arith.constant 0 : index
    %c0_461 = arith.constant 0 : index
    %934 = vector.load %arg14[%c0_460, %c0_461] : memref<128x512xf32, #tpu.memory_space<vmem>>, vector<128x512xf32>
    %cst_462 = arith.constant dense<0.000000e+00> : vector<16x512xf32>
    %935 = tpu.matmul %933, %934, %cst_462 {dimension_numbers = #tpu.dot_dimension_numbers<[1], [0], [0], [1], [0, 0, 1, 1], [], []>} : vector<16x128xf32>, vector<128x512xf32>, vector<16x512xf32> -> vector<16x512xf32>
    %c0_463 = arith.constant 0 : index
    %c0_464 = arith.constant 0 : index
    %936 = vector.load %arg15[%c0_463, %c0_464] : memref<1x512xf32, #tpu.memory_space<vmem>>, vector<1x512xf32>
    %937 = vector.broadcast %936 : vector<1x512xf32> to vector<16x512xf32>
    %938 = arith.addf %935, %937 : vector<16x512xf32>
    %939 = arith.negf %938 : vector<16x512xf32>
    %940 = math.exp %939 : vector<16x512xf32>
    %cst_465 = arith.constant 1.000000e+00 : f32
    %941 = vector.broadcast %cst_465 : f32 to vector<16x512xf32>
    %942 = arith.addf %941, %940 : vector<16x512xf32>
    %943 = arith.divf %941, %942 : vector<16x512xf32>
    %c0_466 = arith.constant 0 : index
    %c0_467 = arith.constant 0 : index
    %944 = vector.load %arg16[%c0_466, %c0_467] : memref<16x512xf32, #tpu.memory_space<vmem>>, vector<16x512xf32>
    tpu.vector_store %arg16[%c0_466, %c0_467], %943 {strides = array<i32>} : memref<16x512xf32, #tpu.memory_space<vmem>>, vector<16x512xf32>,
    return
  }
  func.func @transform_0(%arg0: i32) -> (i32, i32) {
    %c0_i32 = arith.constant 0 : i32
    %c0_i32_0 = arith.constant 0 : i32
    %c0_i32_1 = arith.constant 0 : i32
    return %c0_i32, %c0_i32_0 : i32, i32
  }
  func.func @transform_1(%arg0: i32) -> (i32, i32) {
    %c0_i32 = arith.constant 0 : i32
    %c0_i32_0 = arith.constant 0 : i32
    %c0_i32_1 = arith.constant 0 : i32
    return %c0_i32, %c0_i32_0 : i32, i32
  }
  func.func @transform_2(%arg0: i32) -> (i32, i32) {
    %c0_i32 = arith.constant 0 : i32
    %c0_i32_0 = arith.constant 0 : i32
    %c0_i32_1 = arith.constant 0 : i32
    return %c0_i32, %c0_i32_0 : i32, i32
  }
  func.func @transform_3(%arg0: i32) -> (i32, i32) {
    %c0_i32 = arith.constant 0 : i32
    %c0_i32_0 = arith.constant 0 : i32
    %c0_i32_1 = arith.constant 0 : i32
    return %c0_i32, %c0_i32_0 : i32, i32
  }
  func.func @transform_4(%arg0: i32) -> (i32, i32) {
    %c0_i32 = arith.constant 0 : i32
    %c0_i32_0 = arith.constant 0 : i32
    %c0_i32_1 = arith.constant 0 : i32
    return %c0_i32, %c0_i32_0 : i32, i32
  }
  func.func @transform_5(%arg0: i32) -> (i32, i32, i32) {
    %c0_i32 = arith.constant 0 : i32
    %c0_i32_0 = arith.constant 0 : i32
    %c0_i32_1 = arith.constant 0 : i32
    %c0_i32_2 = arith.constant 0 : i32
    return %c0_i32, %c0_i32_0, %c0_i32_1 : i32, i32, i32
  }
  func.func @transform_6(%arg0: i32) -> (i32, i32, i32) {
    %c0_i32 = arith.constant 0 : i32
    %c0_i32_0 = arith.constant 0 : i32
    %c0_i32_1 = arith.constant 0 : i32
    %c0_i32_2 = arith.constant 0 : i32
    return %c0_i32, %c0_i32_0, %c0_i32_1 : i32, i32, i32
  }
  func.func @transform_7(%arg0: i32) -> (i32, i32, i32) {
    %c0_i32 = arith.constant 0 : i32
    %c0_i32_0 = arith.constant 0 : i32
    %c0_i32_1 = arith.constant 0 : i32
    %c0_i32_2 = arith.constant 0 : i32
    return %c0_i32, %c0_i32_0, %c0_i32_1 : i32, i32, i32
  }
  func.func @transform_8(%arg0: i32) -> (i32, i32, i32) {
    %c0_i32 = arith.constant 0 : i32
    %c0_i32_0 = arith.constant 0 : i32
    %c0_i32_1 = arith.constant 0 : i32
    %c0_i32_2 = arith.constant 0 : i32
    return %c0_i32, %c0_i32_0, %c0_i32_1 : i32, i32, i32
  }
  func.func @transform_9(%arg0: i32) -> (i32, i32, i32) {
    %c0_i32 = arith.constant 0 : i32
    %c0_i32_0 = arith.constant 0 : i32
    %c0_i32_1 = arith.constant 0 : i32
    %c0_i32_2 = arith.constant 0 : i32
    return %c0_i32, %c0_i32_0, %c0_i32_1 : i32, i32, i32
  }
  func.func @transform_10(%arg0: i32) -> (i32, i32, i32) {
    %c0_i32 = arith.constant 0 : i32
    %c0_i32_0 = arith.constant 0 : i32
    %c0_i32_1 = arith.constant 0 : i32
    %c0_i32_2 = arith.constant 0 : i32
    return %c0_i32, %c0_i32_0, %c0_i32_1 : i32, i32, i32
  }
  func.func @transform_11(%arg0: i32) -> (i32, i32, i32) {
    %c0_i32 = arith.constant 0 : i32
    %c0_i32_0 = arith.constant 0 : i32
    %c0_i32_1 = arith.constant 0 : i32
    %c0_i32_2 = arith.constant 0 : i32
    return %c0_i32, %c0_i32_0, %c0_i32_1 : i32, i32, i32
  }
  func.func @transform_12(%arg0: i32) -> (i32, i32, i32) {
    %c0_i32 = arith.constant 0 : i32
    %c0_i32_0 = arith.constant 0 : i32
    %c0_i32_1 = arith.constant 0 : i32
    %c0_i32_2 = arith.constant 0 : i32
    return %c0_i32, %c0_i32_0, %c0_i32_1 : i32, i32, i32
  }
  func.func @transform_13(%arg0: i32) -> (i32, i32) {
    %c0_i32 = arith.constant 0 : i32
    %c0_i32_0 = arith.constant 0 : i32
    %c0_i32_1 = arith.constant 0 : i32
    return %c0_i32, %c0_i32_0 : i32, i32
  }
  func.func @transform_14(%arg0: i32) -> (i32, i32) {
    %c0_i32 = arith.constant 0 : i32
    %c0_i32_0 = arith.constant 0 : i32
    %c0_i32_1 = arith.constant 0 : i32
    return %c0_i32, %c0_i32_0 : i32, i32
  }
  func.func @transform_15(%arg0: i32) -> (i32, i32) {
    %c0_i32 = arith.constant 0 : i32
    %c0_i32_0 = arith.constant 0 : i32
    %c0_i32_1 = arith.constant 0 : i32
    return %c0_i32, %c0_i32_0 : i32, i32
  }
}

</mosaic_0001>

<llo_original>
// kernel: tpu_custom_call.1
$region0: #{tpu_custom_call.1}
  #allocation0 [shape = 'u32[]', space=smem, size = 0x4, offset = 0x4, fixed_abs, tag = 'smem constant byte address 0x4 - core index']
  #allocation1 [shape = 'u32[144,128]{1,0:T(1,128)}', space=vmem, size = 0x12000, scoped, tag = 'internal scratch']
  %s0 = inlined_call_operand.hbm [shape: f32[16,256], index: 0, kind: input, shape index: {}]
  %s1 = inlined_call_operand.hbm [shape: f32[256,128], index: 1, kind: input, shape index: {}]
  %s2 = inlined_call_operand.vmem [shape: f32[1,128], index: 2, kind: input, shape index: {}]
  %s3 = inlined_call_operand.hbm [shape: f32[1,128], index: 3, kind: input, shape index: {}]
  %s4 = inlined_call_operand.hbm [shape: f32[1,128], index: 4, kind: input, shape index: {}]
  %s5 = inlined_call_operand.hbm [shape: f32[12,128,128], index: 5, kind: input, shape index: {}]
  %s6 = inlined_call_operand.vmem [shape: f32[12,1,128], index: 6, kind: input, shape index: {}]
  %s7 = inlined_call_operand.vmem [shape: f32[12,1,128], index: 7, kind: input, shape index: {}]
  %s8 = inlined_call_operand.hbm [shape: f32[12,1,128], index: 8, kind: input, shape index: {}]
  %s9 = inlined_call_operand.hbm [shape: f32[12,128,128], index: 9, kind: input, shape index: {}]
  %s10 = inlined_call_operand.vmem [shape: f32[12,1,128], index: 10, kind: input, shape index: {}]
  %s11 = inlined_call_operand.hbm [shape: f32[12,1,128], index: 11, kind: input, shape index: {}]
  %s12 = inlined_call_operand.hbm [shape: f32[12,1,128], index: 12, kind: input, shape index: {}]
  %s13 = inlined_call_operand.hbm [shape: f32[128,512], index: 13, kind: input, shape index: {}]
  %s14 = inlined_call_operand.vmem [shape: f32[1,512], index: 14, kind: input, shape index: {}]
  %s15 = inlined_call_operand.hbm [shape: f32[16,512], index: 15, kind: output, shape index: {}]
  %s16 = sld [smem:[#allocation0]]
  $region110: #{tpu_custom_call.1} parent=0
    _
  %s18 = ssub.s32 1, %s16
  %s19 = scalar_select 0, %s18, %s16
  $region1: #{tpu_custom_call.1} parent=0
    #allocation2 [shape = 'u8[16384]{0}', space=vmem, size = 0x4000, scoped, tag = 'input window, operand 0, single buffered']
    #allocation3 [shape = 's32[1]{0}', space=sflag, size = 0x4, scoped, tag = 'scoped memory for tpu_custom_call.1']
    #allocation4 [shape = 's32[1]{0}', space=sflag, size = 0x4, scoped, tag = 'scoped memory for tpu_custom_call.1']
    #allocation5 [shape = 'u8[131072]{0}', space=vmem, size = 0x20000, scoped, tag = 'input window, operand 1, single buffered']
    #allocation6 [shape = 's32[1]{0}', space=sflag, size = 0x4, scoped, tag = 'scoped memory for tpu_custom_call.1']
    #allocation7 [shape = 'u8[512]{0}', space=vmem, size = 0x400, scoped, tag = 'input window, operand 3, single buffered']
    #allocation8 [shape = 'u8[512]{0}', space=vmem, size = 0x400, scoped, tag = 'input window, operand 4, single buffered']
    #allocation9 [shape = 's32[1]{0}', space=sflag, size = 0x4, scoped, tag = 'scoped memory for tpu_custom_call.1']
    #allocation10 [shape = 'u8[786432]{0}', space=vmem, size = 0xc0000, scoped, tag = 'input window, operand 5, single buffered']
    #allocation11 [shape = 'u8[6144]{0}', space=vmem, size = 0x1800, scoped, tag = 'input window, operand 8, single buffered']
    #allocation12 [shape = 's32[1]{0}', space=sflag, size = 0x4, scoped, tag = 'scoped memory for tpu_custom_call.1']
    #allocation13 [shape = 'u8[786432]{0}', space=vmem, size = 0xc0000, scoped, tag = 'input window, operand 9, single buffered']
    #allocation14 [shape = 'u8[6144]{0}', space=vmem, size = 0x1800, scoped, tag = 'input window, operand 11, single buffered']
    #allocation15 [shape = 's32[1]{0}', space=sflag, size = 0x4, scoped, tag = 'scoped memory for tpu_custom_call.1']
    #allocation16 [shape = 'u8[6144]{0}', space=vmem, size = 0x1800, scoped, tag = 'input window, operand 12, single buffered']
    #allocation17 [shape = 'u8[262144]{0}', space=vmem, size = 0x40000, scoped, tag = 'input window, operand 13, single buffered']
    #allocation18 [shape = 's32[1]{0}', space=sflag, size = 0x4, scoped, tag = 'scoped memory for tpu_custom_call.1']
    #allocation19 [shape = 'u8[32768]{0}', space=vmem, size = 0x8000, scoped, tag = 'output window, operand 0, single buffered']
    %20 = vsyncpa [#allocation3], 0
    %21 = vsyncpa [#allocation6], 0
    %22 = vsyncpa [#allocation9], 0
    %23 = vsyncpa [#allocation12], 0
    %24 = vsyncpa [#allocation15], 0
    %25 = vsyncpa [#allocation18], 0
    %26 = vsyncpa [#allocation4], 0
    // Predicated region
    $region2: #{tpu_custom_call.1} parent=1 // pred_check
      _
    $region3: #{tpu_custom_call.1} parent=1 // pred_check_branch
      %28 = sbr.rel (0) target = $region5
    $region4: #{tpu_custom_call.1} parent=1 // pred_region
      %s30 = ssub.s32 512, 512
      %31 = vsyncadd [#allocation3], %s30
      %s32 = sshll.u32 [#allocation2], 4
      %s33 = int_to_ptr.vmem [resolvable:$true] %s32
      %38 = dma.hbm_to_vmem [thread:$0]  %s0, 512, %s33, [#allocation3], 256, 256, 16
    $region5: #{tpu_custom_call.1} parent=1 // pred_fallthru
      _
    // Predicated region
    $region6: #{tpu_custom_call.1} parent=1 // pred_check
      _
    $region7: #{tpu_custom_call.1} parent=1 // pred_check_branch
      %40 = sbr.rel (0) target = $region9
    $region8: #{tpu_custom_call.1} parent=1 // pred_region
      %s42 = ssub.s32 4096, 4096
      %43 = vsyncadd [#allocation6], %s42
      %s44 = sshll.u32 [#allocation5], 4
      %s45 = int_to_ptr.vmem [resolvable:$true] %s44
      %50 = dma.hbm_to_vmem [thread:$0]  %s1, 4096, %s45, [#allocation6], 128, 128, 8
    $region9: #{tpu_custom_call.1} parent=1 // pred_fallthru
      _
    // Predicated region
    $region10: #{tpu_custom_call.1} parent=1 // pred_check
      _
    $region11: #{tpu_custom_call.1} parent=1 // pred_check_branch
      %52 = sbr.rel (0) target = $region13
    $region12: #{tpu_custom_call.1} parent=1 // pred_region
      _
    $region13: #{tpu_custom_call.1} parent=1 // pred_fallthru
      _
    // Predicated region
    $region14: #{tpu_custom_call.1} parent=1 // pred_check
      _
    $region15: #{tpu_custom_call.1} parent=1 // pred_check_branch
      %54 = sbr.rel (0) target = $region17
    $region16: #{tpu_custom_call.1} parent=1 // pred_region
      %s56 = ssub.s32 16, 16
      %57 = vsyncadd [#allocation6], %s56
      %s59 = sshll.u32 [#allocation7], 4
      %s60 = int_to_ptr.vmem [resolvable:$true] %s59
      %62 = dma.hbm_to_vmem [thread:$0]  %s3, 16, %s60, [#allocation6]
    $region17: #{tpu_custom_call.1} parent=1 // pred_fallthru
      _
    // Predicated region
    $region18: #{tpu_custom_call.1} parent=1 // pred_check
      _
    $region19: #{tpu_custom_call.1} parent=1 // pred_check_branch
      %64 = sbr.rel (0) target = $region21
    $region20: #{tpu_custom_call.1} parent=1 // pred_region
      %s66 = ssub.s32 16, 16
      %67 = vsyncadd [#allocation9], %s66
      %s69 = sshll.u32 [#allocation8], 4
      %s70 = int_to_ptr.vmem [resolvable:$true] %s69
      %72 = dma.hbm_to_vmem [thread:$0]  %s4, 16, %s70, [#allocation9]
    $region21: #{tpu_custom_call.1} parent=1 // pred_fallthru
      _
    // Predicated region
    $region22: #{tpu_custom_call.1} parent=1 // pred_check
      _
    $region23: #{tpu_custom_call.1} parent=1 // pred_check_branch
      %74 = sbr.rel (0) target = $region25
    $region24: #{tpu_custom_call.1} parent=1 // pred_region
      %s76 = ssub.s32 24576, 24576
      %77 = vsyncadd [#allocation9], %s76
      %s78 = sshll.u32 [#allocation10], 4
      %s79 = int_to_ptr.vmem [resolvable:$true] %s78
      %84 = dma.hbm_to_vmem [thread:$0]  %s5, 24576, %s79, [#allocation9], 128, 128, 8
    $region25: #{tpu_custom_call.1} parent=1 // pred_fallthru
      _
    // Predicated region
    $region26: #{tpu_custom_call.1} parent=1 // pred_check
      _
    $region27: #{tpu_custom_call.1} parent=1 // pred_check_branch
      %86 = sbr.rel (0) target = $region29
    $region28: #{tpu_custom_call.1} parent=1 // pred_region
      _
    $region29: #{tpu_custom_call.1} parent=1 // pred_fallthru
      _
    // Predicated region
    $region30: #{tpu_custom_call.1} parent=1 // pred_check
      _
    $region31: #{tpu_custom_call.1} parent=1 // pred_check_branch
      %88 = sbr.rel (0) target = $region33
    $region32: #{tpu_custom_call.1} parent=1 // pred_region
      _
    $region33: #{tpu_custom_call.1} parent=1 // pred_fallthru
      _
    // Predicated region
    $region34: #{tpu_custom_call.1} parent=1 // pred_check
      _
    $region35: #{tpu_custom_call.1} parent=1 // pred_check_branch
      %90 = sbr.rel (0) target = $region37
    $region36: #{tpu_custom_call.1} parent=1 // pred_region
      %s92 = ssub.s32 192, 192
      %93 = vsyncadd [#allocation12], %s92
      %s94 = sshll.u32 [#allocation11], 4
      %s95 = int_to_ptr.vmem [resolvable:$true] %s94
      %100 = dma.hbm_to_vmem [thread:$0]  %s8, 192, %s95, [#allocation12], 16, 16, 1
    $region37: #{tpu_custom_call.1} parent=1 // pred_fallthru
      _
    // Predicated region
    $region38: #{tpu_custom_call.1} parent=1 // pred_check
      _
    $region39: #{tpu_custom_call.1} parent=1 // pred_check_branch
      %102 = sbr.rel (0) target = $region41
    $region40: #{tpu_custom_call.1} parent=1 // pred_region
      %s104 = ssub.s32 24576, 24576
      %105 = vsyncadd [#allocation12], %s104
      %s106 = sshll.u32 [#allocation13], 4
      %s107 = int_to_ptr.vmem [resolvable:$true] %s106
      %112 = dma.hbm_to_vmem [thread:$0]  %s9, 24576, %s107, [#allocation12], 128, 128, 8
    $region41: #{tpu_custom_call.1} parent=1 // pred_fallthru
      _
    // Predicated region
    $region42: #{tpu_custom_call.1} parent=1 // pred_check
      _
    $region43: #{tpu_custom_call.1} parent=1 // pred_check_branch
      %114 = sbr.rel (0) target = $region45
    $region44: #{tpu_custom_call.1} parent=1 // pred_region
      _
    $region45: #{tpu_custom_call.1} parent=1 // pred_fallthru
      _
    // Predicated region
    $region46: #{tpu_custom_call.1} parent=1 // pred_check
      _
    $region47: #{tpu_custom_call.1} parent=1 // pred_check_branch
      %116 = sbr.rel (0) target = $region49
    $region48: #{tpu_custom_call.1} parent=1 // pred_region
      %s118 = ssub.s32 192, 192
      %119 = vsyncadd [#allocation15], %s118
      %s120 = sshll.u32 [#allocation14], 4
      %s121 = int_to_ptr.vmem [resolvable:$true] %s120
      %126 = dma.hbm_to_vmem [thread:$0]  %s11, 192, %s121, [#allocation15], 16, 16, 1
    $region49: #{tpu_custom_call.1} parent=1 // pred_fallthru
      _
    // Predicated region
    $region50: #{tpu_custom_call.1} parent=1 // pred_check
      _
    $region51: #{tpu_custom_call.1} parent=1 // pred_check_branch
      %128 = sbr.rel (0) target = $region53
    $region52: #{tpu_custom_call.1} parent=1 // pred_region
      %s130 = ssub.s32 192, 192
      %131 = vsyncadd [#allocation15], %s130
      %s132 = sshll.u32 [#allocation16], 4
      %s133 = int_to_ptr.vmem [resolvable:$true] %s132
      %138 = dma.hbm_to_vmem [thread:$0]  %s12, 192, %s133, [#allocation15], 16, 16, 1
    $region53: #{tpu_custom_call.1} parent=1 // pred_fallthru
      _
    // Predicated region
    $region54: #{tpu_custom_call.1} parent=1 // pred_check
      _
    $region55: #{tpu_custom_call.1} parent=1 // pred_check_branch
      %140 = sbr.rel (0) target = $region57
    $region56: #{tpu_custom_call.1} parent=1 // pred_region
      %s142 = ssub.s32 8192, 8192
      %143 = vsyncadd [#allocation18], %s142
      %s144 = sshll.u32 [#allocation17], 4
      %s145 = int_to_ptr.vmem [resolvable:$true] %s144
      %150 = dma.hbm_to_vmem [thread:$0]  %s13, 8192, %s145, [#allocation18], 512, 512, 32
    $region57: #{tpu_custom_call.1} parent=1 // pred_fallthru
      _
    // Predicated region
    $region58: #{tpu_custom_call.1} parent=1 // pred_check
      _
    $region59: #{tpu_custom_call.1} parent=1 // pred_check_branch
      %152 = sbr.rel (0) target = $region61
    $region60: #{tpu_custom_call.1} parent=1 // pred_region
      _
    $region61: #{tpu_custom_call.1} parent=1 // pred_fallthru
      _
    // Predicated region
    $region62: #{tpu_custom_call.1} parent=1 // pred_check
      _
    $region63: #{tpu_custom_call.1} parent=1 // pred_check_branch
      %154 = sbr.rel (0) target = $region65
    $region64: #{tpu_custom_call.1} parent=1 // pred_region
      %155 = dma.done [#allocation3], 512
    $region65: #{tpu_custom_call.1} parent=1 // pred_fallthru
      _
    // Predicated region
    $region66: #{tpu_custom_call.1} parent=1 // pred_check
      _
    $region67: #{tpu_custom_call.1} parent=1 // pred_check_branch
      %157 = sbr.rel (0) target = $region69
    $region68: #{tpu_custom_call.1} parent=1 // pred_region
      %158 = dma.done [#allocation6], 4096
    $region69: #{tpu_custom_call.1} parent=1 // pred_fallthru
      _
    // Predicated region
    $region70: #{tpu_custom_call.1} parent=1 // pred_check
      _
    $region71: #{tpu_custom_call.1} parent=1 // pred_check_branch
      %160 = sbr.rel (0) target = $region73
    $region72: #{tpu_custom_call.1} parent=1 // pred_region
      %161 = dma.done [#allocation6], 16
    $region73: #{tpu_custom_call.1} parent=1 // pred_fallthru
      _
    // Predicated region
    $region74: #{tpu_custom_call.1} parent=1 // pred_check
      _
    $region75: #{tpu_custom_call.1} parent=1 // pred_check_branch
      %163 = sbr.rel (0) target = $region77
    $region76: #{tpu_custom_call.1} parent=1 // pred_region
      %164 = dma.done [#allocation9], 16
    $region77: #{tpu_custom_call.1} parent=1 // pred_fallthru
      _
    // Predicated region
    $region78: #{tpu_custom_call.1} parent=1 // pred_check
      _
    $region79: #{tpu_custom_call.1} parent=1 // pred_check_branch
      %166 = sbr.rel (0) target = $region81
    $region80: #{tpu_custom_call.1} parent=1 // pred_region
      %167 = dma.done [#allocation9], 24576
    $region81: #{tpu_custom_call.1} parent=1 // pred_fallthru
      _
    // Predicated region
    $region82: #{tpu_custom_call.1} parent=1 // pred_check
      _
    $region83: #{tpu_custom_call.1} parent=1 // pred_check_branch
      %169 = sbr.rel (0) target = $region85
    $region84: #{tpu_custom_call.1} parent=1 // pred_region
      %170 = dma.done [#allocation12], 192
    $region85: #{tpu_custom_call.1} parent=1 // pred_fallthru
      _
    // Predicated region
    $region86: #{tpu_custom_call.1} parent=1 // pred_check
      _
    $region87: #{tpu_custom_call.1} parent=1 // pred_check_branch
      %172 = sbr.rel (0) target = $region89
    $region88: #{tpu_custom_call.1} parent=1 // pred_region
      %173 = dma.done [#allocation12], 24576
    $region89: #{tpu_custom_call.1} parent=1 // pred_fallthru
      _
    // Predicated region
    $region90: #{tpu_custom_call.1} parent=1 // pred_check
      _
    $region91: #{tpu_custom_call.1} parent=1 // pred_check_branch
      %175 = sbr.rel (0) target = $region93
    $region92: #{tpu_custom_call.1} parent=1 // pred_region
      %176 = dma.done [#allocation15], 192
    $region93: #{tpu_custom_call.1} parent=1 // pred_fallthru
      _
    // Predicated region
    $region94: #{tpu_custom_call.1} parent=1 // pred_check
      _
    $region95: #{tpu_custom_call.1} parent=1 // pred_check_branch
      %178 = sbr.rel (0) target = $region97
    $region96: #{tpu_custom_call.1} parent=1 // pred_region
      %179 = dma.done [#allocation15], 192
    $region97: #{tpu_custom_call.1} parent=1 // pred_fallthru
      _
    // Predicated region
    $region98: #{tpu_custom_call.1} parent=1 // pred_check
      _
    $region99: #{tpu_custom_call.1} parent=1 // pred_check_branch
      %181 = sbr.rel (0) target = $region101
    $region100: #{tpu_custom_call.1} parent=1 // pred_region
      %182 = dma.done [#allocation18], 8192
    $region101: #{tpu_custom_call.1} parent=1 // pred_fallthru
      _
    %v183 = vld [vmem:[#allocation2] sm:$0xff]
    %v184 = vld [vmem:[#allocation2 + $0x8] sm:$0xff]
    %v185 = vld [vmem:[#allocation2 + $0x10] sm:$0xff]
    %v186 = vld [vmem:[#allocation2 + $0x18] sm:$0xff]
    %v187 = vld [vmem:[#allocation5] sm:$0xff]
    %v188 = vld [vmem:[#allocation5 + $0x8] sm:$0xff]
    %v189 = vld [vmem:[#allocation5 + $0x10] sm:$0xff]
    %v190 = vld [vmem:[#allocation5 + $0x18] sm:$0xff]
    %v191 = vld [vmem:[#allocation5 + $0x20] sm:$0xff]
    %v192 = vld [vmem:[#allocation5 + $0x28] sm:$0xff]
    %v193 = vld [vmem:[#allocation5 + $0x30] sm:$0xff]
    %v194 = vld [vmem:[#allocation5 + $0x38] sm:$0xff]
    %v195 = vld [vmem:[#allocation5 + $0x40] sm:$0xff]
    %v196 = vld [vmem:[#allocation5 + $0x48] sm:$0xff]
    %v197 = vld [vmem:[#allocation5 + $0x50] sm:$0xff]
    %v198 = vld [vmem:[#allocation5 + $0x58] sm:$0xff]
    %v199 = vld [vmem:[#allocation5 + $0x60] sm:$0xff]
    %v200 = vld [vmem:[#allocation5 + $0x68] sm:$0xff]
    %v201 = vld [vmem:[#allocation5 + $0x70] sm:$0xff]
    %v202 = vld [vmem:[#allocation5 + $0x78] sm:$0xff]
    %v203 = vld [vmem:[#allocation5 + $0x80] sm:$0xff]
    %v204 = vld [vmem:[#allocation5 + $0x88] sm:$0xff]
    %v205 = vld [vmem:[#allocation5 + $0x90] sm:$0xff]
    %v206 = vld [vmem:[#allocation5 + $0x98] sm:$0xff]
    %v207 = vld [vmem:[#allocation5 + $0xa0] sm:$0xff]
    %v208 = vld [vmem:[#allocation5 + $0xa8] sm:$0xff]
    %v209 = vld [vmem:[#allocation5 + $0xb0] sm:$0xff]
    %v210 = vld [vmem:[#allocation5 + $0xb8] sm:$0xff]
    %v211 = vld [vmem:[#allocation5 + $0xc0] sm:$0xff]
    %v212 = vld [vmem:[#allocation5 + $0xc8] sm:$0xff]
    %v213 = vld [vmem:[#allocation5 + $0xd0] sm:$0xff]
    %v214 = vld [vmem:[#allocation5 + $0xd8] sm:$0xff]
    %v215 = vld [vmem:[#allocation5 + $0xe0] sm:$0xff]
    %v216 = vld [vmem:[#allocation5 + $0xe8] sm:$0xff]
    %v217 = vld [vmem:[#allocation5 + $0xf0] sm:$0xff]
    %v218 = vld [vmem:[#allocation5 + $0xf8] sm:$0xff]
    %v219 = vld [vmem:[%s2] sm:$0x1]
    %v221 = vlaneseq
    %v222 = vshrl.u32 %v221, 7
    %v223 = vsub.s32 0, %v222
    %v224 = vrot.slane %v219, %v223
    %226 = vmatprep.subr.mxu0 0.0
    %227 = vmatpush1.msra.mxu0 %v187
    %228 = vmatprep.subr.mxu0 0.0
    %229 = vmatpush1.msra.mxu0 %v188
    %230 = vmatprep.subr.mxu0 0.0
    %231 = vmatpush1.msra.mxu0 %v189
    %232 = vmatprep.subr.mxu0 0.0
    %233 = vmatpush1.msra.mxu0 %v190
    %234 = vmatprep.subr.mxu0 0.0
    %235 = vmatpush1.msra.mxu0 %v191
    %236 = vmatprep.subr.mxu0 0.0
    %237 = vmatpush1.msra.mxu0 %v192
    %238 = vmatprep.subr.mxu0 0.0
    %239 = vmatpush1.msra.mxu0 %v193
    %240 = vmatprep.subr.mxu0 0.0
    %241 = vmatpush1.msra.mxu0 %v194
    %242 = vmatprep.subr.mxu0 0.0
    %243 = vmatpush1.msra.mxu0 %v195
    %244 = vmatprep.subr.mxu0 0.0
    %245 = vmatpush1.msra.mxu0 %v196
    %246 = vmatprep.subr.mxu0 0.0
    %247 = vmatpush1.msra.mxu0 %v197
    %248 = vmatprep.subr.mxu0 0.0
    %249 = vmatpush1.msra.mxu0 %v198
    %250 = vmatprep.subr.mxu0 0.0
    %251 = vmatpush1.msra.mxu0 %v199
    %252 = vmatprep.subr.mxu0 0.0
    %253 = vmatpush1.msra.mxu0 %v200
    %254 = vmatprep.subr.mxu0 0.0
    %255 = vmatpush1.msra.mxu0 %v201
    %256 = vmatprep.subr.mxu0 0.0
    %257 = vmatpush1.msra.mxu0 %v202
    %258 = vmatprep.subr.mxu0 0.0
    %259 = vmatpush1.msra.mxu0 %v203
    %260 = vmatprep.subr.mxu0 0.0
    %261 = vmatpush1.msra.mxu0 %v204
    %262 = vmatprep.subr.mxu0 0.0
    %263 = vmatpush1.msra.mxu0 %v205
    %264 = vmatprep.subr.mxu0 0.0
    %265 = vmatpush1.msra.mxu0 %v206
    %266 = vmatprep.subr.mxu0 0.0
    %267 = vmatpush1.msra.mxu0 %v207
    %268 = vmatprep.subr.mxu0 0.0
    %269 = vmatpush1.msra.mxu0 %v208
    %270 = vmatprep.subr.mxu0 0.0
    %271 = vmatpush1.msra.mxu0 %v209
    %272 = vmatprep.subr.mxu0 0.0
    %273 = vmatpush1.msra.mxu0 %v210
    %274 = vmatprep.subr.mxu0 0.0
    %275 = vmatpush1.msra.mxu0 %v211
    %276 = vmatprep.subr.mxu0 0.0
    %277 = vmatpush1.msra.mxu0 %v212
    %278 = vmatprep.subr.mxu0 0.0
    %279 = vmatpush1.msra.mxu0 %v213
    %280 = vmatprep.subr.mxu0 0.0
    %281 = vmatpush1.msra.mxu0 %v214
    %282 = vmatprep.subr.mxu0 0.0
    %283 = vmatpush1.msra.mxu0 %v215
    %284 = vmatprep.subr.mxu0 0.0
    %285 = vmatpush1.msra.mxu0 %v216
    %286 = vmatprep.subr.mxu0 0.0
    %287 = vmatpush1.msra.mxu0 %v217
    %288 = vmatprep.subr.mxu0 0.0
    %289 = vmatpush1.msra.mxu0 %v218
    %290 = vmatprep.mubr.f32.mxu0 %v184
    %291 = vmatmul.mubr.f32.gmra.mrb[0].mxu0 %v183
    %v292 = vpop.f32.mrb[0].mxu0
    %v293 = vadd.f32 %v224, %v292
    %v294 = vpop.f32.mrb[0].mxu0
    %295 = vmatprep.mubr.f32.mxu0 %v186
    %296 = vmatmul.mubr.f32.gmra.mrb[0].mxu0 %v185
    %v297 = vpop.f32.mrb[0].mxu0
    %v298 = vadd.f32 %v224, %v297
    %v299 = vpop.f32.mrb[0].mxu0
    %300 = vdwg.mxu0
    %v301 = vld [vmem:[#allocation7] sm:$0x1]
    %v302 = vld [vmem:[#allocation8] sm:$0x1]
    %v303 = vadd.f32 %v293, %v298
    %v304 = vrot.slane %v303, 4
    %v305 = vadd.f32 %v303, %v304
    %v306 = vrot.slane %v305, 2
    %v307 = vadd.f32 %v305, %v306
    %v308 = vrot.slane %v307, 1
    %v309 = vadd.f32 %v307, %v308
    %v310 = vrcp.pop 16.0
    %v311 = vmul.f32 %v309, %v310
    %v312 = vsub.f32 %v293, %v311
    %v313 = vsub.f32 %v298, %v311
    %v314 = vmul.f32 %v312, %v312
    %v315 = vmul.f32 %v313, %v313
    %v316 = vadd.f32 %v314, %v315
    %v317 = vrot.slane %v316, 4
    %v318 = vadd.f32 %v316, %v317
    %v319 = vrot.slane %v318, 2
    %v320 = vadd.f32 %v318, %v319
    %v321 = vrot.slane %v320, 1
    %v322 = vadd.f32 %v320, %v321
    %v323 = vmul.f32 %v322, %v310
    %v324 = vadd.f32 %v323, 1e-05
    %v325 = vrsqrt.pop %v324
    %v326 = vmul.f32 %v301, %v325
    %v327 = vmul.f32 %v311, %v326
    %v328 = vsub.f32 %v302, %v327
    %v330 = vlaneseq
    %v331 = vshrl.u32 %v330, 7
    %v332 = vsub.s32 0, %v331
    %v333 = vrot.slane %v326, %v332
    %v335 = vmul.f32 %v293, %v333
    %v336 = vmul.f32 %v298, %v333
    %v338 = vlaneseq
    %v339 = vshrl.u32 %v338, 7
    %v340 = vsub.s32 0, %v339
    %v341 = vrot.slane %v328, %v340
    %v343 = vadd.f32 %v335, %v341
    %v344 = vadd.f32 %v336, %v341
    %v345 = vxor.u32 %v343, 2147483648
    %v346 = vxor.u32 %v344, 2147483648
    %v347 = vmul.f32 %v345, 1.442695
    %v348 = vpow.pop %v347
    %v349 = vmul.f32 %v346, 1.442695
    %v350 = vpow.pop %v349
    %v351 = vadd.f32 %v348, 1.0
    %v352 = vadd.f32 %v350, 1.0
    %v353 = vrcp.pop %v351
    %v354 = vmul.f32 1.0, %v353
    %v355 = vrcp.pop %v352
    %v356 = vmul.f32 1.0, %v355
    %v357 = vld [vmem:[#allocation10] sm:$0xff]
    %v358 = vld [vmem:[#allocation10 + $0x8] sm:$0xff]
    %v359 = vld [vmem:[#allocation10 + $0x10] sm:$0xff]
    %v360 = vld [vmem:[#allocation10 + $0x18] sm:$0xff]
    %v361 = vld [vmem:[#allocation10 + $0x20] sm:$0xff]
    %v362 = vld [vmem:[#allocation10 + $0x28] sm:$0xff]
    %v363 = vld [vmem:[#allocation10 + $0x30] sm:$0xff]
    %v364 = vld [vmem:[#allocation10 + $0x38] sm:$0xff]
    %v365 = vld [vmem:[#allocation10 + $0x40] sm:$0xff]
    %v366 = vld [vmem:[#allocation10 + $0x48] sm:$0xff]
    %v367 = vld [vmem:[#allocation10 + $0x50] sm:$0xff]
    %v368 = vld [vmem:[#allocation10 + $0x58] sm:$0xff]
    %v369 = vld [vmem:[#allocation10 + $0x60] sm:$0xff]
    %v370 = vld [vmem:[#allocation10 + $0x68] sm:$0xff]
    %v371 = vld [vmem:[#allocation10 + $0x70] sm:$0xff]
    %v372 = vld [vmem:[#allocation10 + $0x78] sm:$0xff]
    %v373 = vld [vmem:[%s6] sm:$0x1]
    %v375 = vlaneseq
    %v376 = vshrl.u32 %v375, 7
    %v377 = vsub.s32 0, %v376
    %v378 = vrot.slane %v373, %v377
    %380 = vmatprep.subr.mxu0 0.0
    %381 = vmatpush1.msra.mxu0 %v357
    %382 = vmatprep.subr.mxu0 0.0
    %383 = vmatpush1.msra.mxu0 %v358
    %384 = vmatprep.subr.mxu0 0.0
    %385 = vmatpush1.msra.mxu0 %v359
    %386 = vmatprep.subr.mxu0 0.0
    %387 = vmatpush1.msra.mxu0 %v360
    %388 = vmatprep.subr.mxu0 0.0
    %389 = vmatpush1.msra.mxu0 %v361
    %390 = vmatprep.subr.mxu0 0.0
    %391 = vmatpush1.msra.mxu0 %v362
    %392 = vmatprep.subr.mxu0 0.0
    %393 = vmatpush1.msra.mxu0 %v363
    %394 = vmatprep.subr.mxu0 0.0
    %395 = vmatpush1.msra.mxu0 %v364
    %396 = vmatprep.subr.mxu0 0.0
    %397 = vmatpush1.msra.mxu0 %v365
    %398 = vmatprep.subr.mxu0 0.0
    %399 = vmatpush1.msra.mxu0 %v366
    %400 = vmatprep.subr.mxu0 0.0
    %401 = vmatpush1.msra.mxu0 %v367
    %402 = vmatprep.subr.mxu0 0.0
    %403 = vmatpush1.msra.mxu0 %v368
    %404 = vmatprep.subr.mxu0 0.0
    %405 = vmatpush1.msra.mxu0 %v369
    %406 = vmatprep.subr.mxu0 0.0
    %407 = vmatpush1.msra.mxu0 %v370
    %408 = vmatprep.subr.mxu0 0.0
    %409 = vmatpush1.msra.mxu0 %v371
    %410 = vmatprep.subr.mxu0 0.0
    %411 = vmatpush1.msra.mxu0 %v372
    %412 = vmatprep.subr.mxu0 0.0
    %413 = vmatpush1.msra.mxu0 0.0
    %414 = vmatprep.subr.mxu0 0.0
    %415 = vmatpush1.msra.mxu0 0.0
    %416 = vmatprep.subr.mxu0 0.0
    %417 = vmatpush1.msra.mxu0 0.0
    %418 = vmatprep.subr.mxu0 0.0
    %419 = vmatpush1.msra.mxu0 0.0
    %420 = vmatprep.subr.mxu0 0.0
    %421 = vmatpush1.msra.mxu0 0.0
    %422 = vmatprep.subr.mxu0 0.0
    %423 = vmatpush1.msra.mxu0 0.0
    %424 = vmatprep.subr.mxu0 0.0
    %425 = vmatpush1.msra.mxu0 0.0
    %426 = vmatprep.subr.mxu0 0.0
    %427 = vmatpush1.msra.mxu0 0.0
    %428 = vmatprep.subr.mxu0 0.0
    %429 = vmatpush1.msra.mxu0 0.0
    %430 = vmatprep.subr.mxu0 0.0
    %431 = vmatpush1.msra.mxu0 0.0
    %432 = vmatprep.subr.mxu0 0.0
    %433 = vmatpush1.msra.mxu0 0.0
    %434 = vmatprep.subr.mxu0 0.0
    %435 = vmatpush1.msra.mxu0 0.0
    %436 = vmatprep.subr.mxu0 0.0
    %437 = vmatpush1.msra.mxu0 0.0
    %438 = vmatprep.subr.mxu0 0.0
    %439 = vmatpush1.msra.mxu0 0.0
    %440 = vmatprep.subr.mxu0 0.0
    %441 = vmatpush1.msra.mxu0 0.0
    %442 = vmatprep.subr.mxu0 0.0
    %443 = vmatpush1.msra.mxu0 0.0
    %444 = vmatprep.mubr.f32.mxu0 0.0
    %445 = vmatmul.mubr.f32.gmra.mrb[0].mxu0 %v354
    %v446 = vpop.f32.mrb[0].mxu0
    %v447 = vadd.f32 %v378, %v446
    %v448 = vpop.f32.mrb[0].mxu0
    %449 = vmatprep.mubr.f32.mxu0 0.0
    %450 = vmatmul.mubr.f32.gmra.mrb[0].mxu0 %v356
    %v451 = vpop.f32.mrb[0].mxu0
    %v452 = vadd.f32 %v378, %v451
    %v453 = vpop.f32.mrb[0].mxu0
    %454 = vdwg.mxu0
    %v455 = vld [vmem:[%s7] sm:$0x1]
    %v456 = vld [vmem:[#allocation11] sm:$0x1]
    %v457 = vadd.f32 %v447, %v452
    %v458 = vrot.slane %v457, 4
    %v459 = vadd.f32 %v457, %v458
    %v460 = vrot.slane %v459, 2
    %v461 = vadd.f32 %v459, %v460
    %v462 = vrot.slane %v461, 1
    %v463 = vadd.f32 %v461, %v462
    %v464 = vmul.f32 %v463, %v310
    %v465 = vsub.f32 %v447, %v464
    %v466 = vsub.f32 %v452, %v464
    %v467 = vmul.f32 %v465, %v465
    %v468 = vmul.f32 %v466, %v466
    %v469 = vadd.f32 %v467, %v468
    %v470 = vrot.slane %v469, 4
    %v471 = vadd.f32 %v469, %v470
    %v472 = vrot.slane %v471, 2
    %v473 = vadd.f32 %v471, %v472
    %v474 = vrot.slane %v473, 1
    %v475 = vadd.f32 %v473, %v474
    %v476 = vmul.f32 %v475, %v310
    %v477 = vadd.f32 %v476, 1e-05
    %v478 = vrsqrt.pop %v477
    %v479 = vmul.f32 %v455, %v478
    %v480 = vmul.f32 %v464, %v479
    %v481 = vsub.f32 %v456, %v480
    %v483 = vlaneseq
    %v484 = vshrl.u32 %v483, 7
    %v485 = vsub.s32 0, %v484
    %v486 = vrot.slane %v479, %v485
    %v488 = vmul.f32 %v447, %v486
    %v489 = vmul.f32 %v452, %v486
    %v491 = vlaneseq
    %v492 = vshrl.u32 %v491, 7
    %v493 = vsub.s32 0, %v492
    %v494 = vrot.slane %v481, %v493
    %v496 = vadd.f32 %v488, %v494
    %v497 = vadd.f32 %v489, %v494
    %v498 = vxor.u32 %v496, 2147483648
    %v499 = vxor.u32 %v497, 2147483648
    %v500 = vmul.f32 %v498, 1.442695
    %v501 = vpow.pop %v500
    %v502 = vmul.f32 %v499, 1.442695
    %v503 = vpow.pop %v502
    %v504 = vadd.f32 %v501, 1.0
    %v505 = vadd.f32 %v503, 1.0
    %v506 = vrcp.pop %v504
    %v507 = vmul.f32 1.0, %v506
    %v508 = vrcp.pop %v505
    %v509 = vmul.f32 1.0, %v508
    %v510 = vld [vmem:[#allocation13] sm:$0xff]
    %v511 = vld [vmem:[#allocation13 + $0x8] sm:$0xff]
    %v512 = vld [vmem:[#allocation13 + $0x10] sm:$0xff]
    %v513 = vld [vmem:[#allocation13 + $0x18] sm:$0xff]
    %v514 = vld [vmem:[#allocation13 + $0x20] sm:$0xff]
    %v515 = vld [vmem:[#allocation13 + $0x28] sm:$0xff]
    %v516 = vld [vmem:[#allocation13 + $0x30] sm:$0xff]
    %v517 = vld [vmem:[#allocation13 + $0x38] sm:$0xff]
    %v518 = vld [vmem:[#allocation13 + $0x40] sm:$0xff]
    %v519 = vld [vmem:[#allocation13 + $0x48] sm:$0xff]
    %v520 = vld [vmem:[#allocation13 + $0x50] sm:$0xff]
    %v521 = vld [vmem:[#allocation13 + $0x58] sm:$0xff]
    %v522 = vld [vmem:[#allocation13 + $0x60] sm:$0xff]
    %v523 = vld [vmem:[#allocation13 + $0x68] sm:$0xff]
    %v524 = vld [vmem:[#allocation13 + $0x70] sm:$0xff]
    %v525 = vld [vmem:[#allocation13 + $0x78] sm:$0xff]
    %v526 = vld [vmem:[%s10] sm:$0x1]
    %v528 = vlaneseq
    %v529 = vshrl.u32 %v528, 7
    %v530 = vsub.s32 0, %v529
    %v531 = vrot.slane %v526, %v530
    %533 = vmatprep.subr.mxu0 0.0
    %534 = vmatpush1.msra.mxu0 %v510
    %535 = vmatprep.subr.mxu0 0.0
    %536 = vmatpush1.msra.mxu0 %v511
    %537 = vmatprep.subr.mxu0 0.0
    %538 = vmatpush1.msra.mxu0 %v512
    %539 = vmatprep.subr.mxu0 0.0
    %540 = vmatpush1.msra.mxu0 %v513
    %541 = vmatprep.subr.mxu0 0.0
    %542 = vmatpush1.msra.mxu0 %v514
    %543 = vmatprep.subr.mxu0 0.0
    %544 = vmatpush1.msra.mxu0 %v515
    %545 = vmatprep.subr.mxu0 0.0
    %546 = vmatpush1.msra.mxu0 %v516
    %547 = vmatprep.subr.mxu0 0.0
    %548 = vmatpush1.msra.mxu0 %v517
    %549 = vmatprep.subr.mxu0 0.0
    %550 = vmatpush1.msra.mxu0 %v518
    %551 = vmatprep.subr.mxu0 0.0
    %552 = vmatpush1.msra.mxu0 %v519
    %553 = vmatprep.subr.mxu0 0.0
    %554 = vmatpush1.msra.mxu0 %v520
    %555 = vmatprep.subr.mxu0 0.0
    %556 = vmatpush1.msra.mxu0 %v521
    %557 = vmatprep.subr.mxu0 0.0
    %558 = vmatpush1.msra.mxu0 %v522
    %559 = vmatprep.subr.mxu0 0.0
    %560 = vmatpush1.msra.mxu0 %v523
    %561 = vmatprep.subr.mxu0 0.0
    %562 = vmatpush1.msra.mxu0 %v524
    %563 = vmatprep.subr.mxu0 0.0
    %564 = vmatpush1.msra.mxu0 %v525
    %565 = vmatprep.subr.mxu0 0.0
    %566 = vmatpush1.msra.mxu0 0.0
    %567 = vmatprep.subr.mxu0 0.0
    %568 = vmatpush1.msra.mxu0 0.0
    %569 = vmatprep.subr.mxu0 0.0
    %570 = vmatpush1.msra.mxu0 0.0
    %571 = vmatprep.subr.mxu0 0.0
    %572 = vmatpush1.msra.mxu0 0.0
    %573 = vmatprep.subr.mxu0 0.0
    %574 = vmatpush1.msra.mxu0 0.0
    %575 = vmatprep.subr.mxu0 0.0
    %576 = vmatpush1.msra.mxu0 0.0
    %577 = vmatprep.subr.mxu0 0.0
    %578 = vmatpush1.msra.mxu0 0.0
    %579 = vmatprep.subr.mxu0 0.0
    %580 = vmatpush1.msra.mxu0 0.0
    %581 = vmatprep.subr.mxu0 0.0
    %582 = vmatpush1.msra.mxu0 0.0
    %583 = vmatprep.subr.mxu0 0.0
    %584 = vmatpush1.msra.mxu0 0.0
    %585 = vmatprep.subr.mxu0 0.0
    %586 = vmatpush1.msra.mxu0 0.0
    %587 = vmatprep.subr.mxu0 0.0
    %588 = vmatpush1.msra.mxu0 0.0
    %589 = vmatprep.subr.mxu0 0.0
    %590 = vmatpush1.msra.mxu0 0.0
    %591 = vmatprep.subr.mxu0 0.0
    %592 = vmatpush1.msra.mxu0 0.0
    %593 = vmatprep.subr.mxu0 0.0
    %594 = vmatpush1.msra.mxu0 0.0
    %595 = vmatprep.subr.mxu0 0.0
    %596 = vmatpush1.msra.mxu0 0.0
    %597 = vmatprep.mubr.f32.mxu0 0.0
    %598 = vmatmul.mubr.f32.gmra.mrb[0].mxu0 %v507
    %v599 = vpop.f32.mrb[0].mxu0
    %v600 = vadd.f32 %v531, %v599
    %v601 = vpop.f32.mrb[0].mxu0
    %602 = vmatprep.mubr.f32.mxu0 0.0
    %603 = vmatmul.mubr.f32.gmra.mrb[0].mxu0 %v509
    %v604 = vpop.f32.mrb[0].mxu0
    %v605 = vadd.f32 %v531, %v604
    %v606 = vpop.f32.mrb[0].mxu0
    %607 = vdwg.mxu0
    %v608 = vld [vmem:[#allocation14] sm:$0x1]
    %v609 = vld [vmem:[#allocation16] sm:$0x1]
    %v610 = vadd.f32 %v600, %v605
    %v611 = vrot.slane %v610, 4
    %v612 = vadd.f32 %v610, %v611
    %v613 = vrot.slane %v612, 2
    %v614 = vadd.f32 %v612, %v613
    %v615 = vrot.slane %v614, 1
    %v616 = vadd.f32 %v614, %v615
    %v617 = vmul.f32 %v616, %v310
    %v618 = vsub.f32 %v600, %v617
    %v619 = vsub.f32 %v605, %v617
    %v620 = vmul.f32 %v618, %v618
    %v621 = vmul.f32 %v619, %v619
    %v622 = vadd.f32 %v620, %v621
    %v623 = vrot.slane %v622, 4
    %v624 = vadd.f32 %v622, %v623
    %v625 = vrot.slane %v624, 2
    %v626 = vadd.f32 %v624, %v625
    %v627 = vrot.slane %v626, 1
    %v628 = vadd.f32 %v626, %v627
    %v629 = vmul.f32 %v628, %v310
    %v630 = vadd.f32 %v629, 1e-05
    %v631 = vrsqrt.pop %v630
    %v632 = vmul.f32 %v608, %v631
    %v633 = vmul.f32 %v617, %v632
    %v634 = vsub.f32 %v609, %v633
    %v636 = vlaneseq
    %v637 = vshrl.u32 %v636, 7
    %v638 = vsub.s32 0, %v637
    %v639 = vrot.slane %v632, %v638
    %v641 = vmul.f32 %v600, %v639
    %v642 = vmul.f32 %v605, %v639
    %v644 = vlaneseq
    %v645 = vshrl.u32 %v644, 7
    %v646 = vsub.s32 0, %v645
    %v647 = vrot.slane %v634, %v646
    %v649 = vadd.f32 %v641, %v647
    %v650 = vadd.f32 %v642, %v647
    %v651 = vadd.f32 %v649, %v354
    %v652 = vadd.f32 %v650, %v356
    %v653 = vxor.u32 %v651, 2147483648
    %v654 = vxor.u32 %v652, 2147483648
    %v655 = vmul.f32 %v653, 1.442695
    %v656 = vpow.pop %v655
    %v657 = vmul.f32 %v654, 1.442695
    %v658 = vpow.pop %v657
    %v659 = vadd.f32 %v656, 1.0
    %v660 = vadd.f32 %v658, 1.0
    %v661 = vrcp.pop %v659
    %v662 = vmul.f32 1.0, %v661
    %v663 = vrcp.pop %v660
    %v664 = vmul.f32 1.0, %v663
    %s665 = scalar_lea.vmem [#allocation10], 128
    %v666 = vld [vmem:[%s665] sm:$0xff]
    %v667 = vld [vmem:[%s665 + $0x8] sm:$0xff]
    %v668 = vld [vmem:[%s665 + $0x10] sm:$0xff]
    %v669 = vld [vmem:[%s665 + $0x18] sm:$0xff]
    %v670 = vld [vmem:[%s665 + $0x20] sm:$0xff]
    %v671 = vld [vmem:[%s665 + $0x28] sm:$0xff]
    %v672 = vld [vmem:[%s665 + $0x30] sm:$0xff]
    %v673 = vld [vmem:[%s665 + $0x38] sm:$0xff]
    %v674 = vld [vmem:[%s665 + $0x40] sm:$0xff]
    %v675 = vld [vmem:[%s665 + $0x48] sm:$0xff]
    %v676 = vld [vmem:[%s665 + $0x50] sm:$0xff]
    %v677 = vld [vmem:[%s665 + $0x58] sm:$0xff]
    %v678 = vld [vmem:[%s665 + $0x60] sm:$0xff]
    %v679 = vld [vmem:[%s665 + $0x68] sm:$0xff]
    %v680 = vld [vmem:[%s665 + $0x70] sm:$0xff]
    %v681 = vld [vmem:[%s665 + $0x78] sm:$0xff]
    %s682 = scalar_lea.vmem %s6, 1
    %v683 = vld [vmem:[%s682] sm:$0x1]
    %v685 = vlaneseq
    %v686 = vshrl.u32 %v685, 7
    %v687 = vsub.s32 0, %v686
    %v688 = vrot.slane %v683, %v687
    %690 = vmatprep.subr.mxu0 0.0
    %691 = vmatpush1.msra.mxu0 %v666
    %692 = vmatprep.subr.mxu0 0.0
    %693 = vmatpush1.msra.mxu0 %v667
    %694 = vmatprep.subr.mxu0 0.0
    %695 = vmatpush1.msra.mxu0 %v668
    %696 = vmatprep.subr.mxu0 0.0
    %697 = vmatpush1.msra.mxu0 %v669
    %698 = vmatprep.subr.mxu0 0.0
    %699 = vmatpush1.msra.mxu0 %v670
    %700 = vmatprep.subr.mxu0 0.0
    %701 = vmatpush1.msra.mxu0 %v671
    %702 = vmatprep.subr.mxu0 0.0
    %703 = vmatpush1.msra.mxu0 %v672
    %704 = vmatprep.subr.mxu0 0.0
    %705 = vmatpush1.msra.mxu0 %v673
    %706 = vmatprep.subr.mxu0 0.0
    %707 = vmatpush1.msra.mxu0 %v674
    %708 = vmatprep.subr.mxu0 0.0
    %709 = vmatpush1.msra.mxu0 %v675
    %710 = vmatprep.subr.mxu0 0.0
    %711 = vmatpush1.msra.mxu0 %v676
    %712 = vmatprep.subr.mxu0 0.0
    %713 = vmatpush1.msra.mxu0 %v677
    %714 = vmatprep.subr.mxu0 0.0
    %715 = vmatpush1.msra.mxu0 %v678
    %716 = vmatprep.subr.mxu0 0.0
    %717 = vmatpush1.msra.mxu0 %v679
    %718 = vmatprep.subr.mxu0 0.0
    %719 = vmatpush1.msra.mxu0 %v680
    %720 = vmatprep.subr.mxu0 0.0
    %721 = vmatpush1.msra.mxu0 %v681
    %722 = vmatprep.subr.mxu0 0.0
    %723 = vmatpush1.msra.mxu0 0.0
    %724 = vmatprep.subr.mxu0 0.0
    %725 = vmatpush1.msra.mxu0 0.0
    %726 = vmatprep.subr.mxu0 0.0
    %727 = vmatpush1.msra.mxu0 0.0
    %728 = vmatprep.subr.mxu0 0.0
    %729 = vmatpush1.msra.mxu0 0.0
    %730 = vmatprep.subr.mxu0 0.0
    %731 = vmatpush1.msra.mxu0 0.0
    %732 = vmatprep.subr.mxu0 0.0
    %733 = vmatpush1.msra.mxu0 0.0
    %734 = vmatprep.subr.mxu0 0.0
    %735 = vmatpush1.msra.mxu0 0.0
    %736 = vmatprep.subr.mxu0 0.0
    %737 = vmatpush1.msra.mxu0 0.0
    %738 = vmatprep.subr.mxu0 0.0
    %739 = vmatpush1.msra.mxu0 0.0
    %740 = vmatprep.subr.mxu0 0.0
    %741 = vmatpush1.msra.mxu0 0.0
    %742 = vmatprep.subr.mxu0 0.0
    %743 = vmatpush1.msra.mxu0 0.0
    %744 = vmatprep.subr.mxu0 0.0
    %745 = vmatpush1.msra.mxu0 0.0
    %746 = vmatprep.subr.mxu0 0.0
    %747 = vmatpush1.msra.mxu0 0.0
    %748 = vmatprep.subr.mxu0 0.0
    %749 = vmatpush1.msra.mxu0 0.0
    %750 = vmatprep.subr.mxu0 0.0
    %751 = vmatpush1.msra.mxu0 0.0
    %752 = vmatprep.subr.mxu0 0.0
    %753 = vmatpush1.msra.mxu0 0.0
    %754 = vmatprep.mubr.f32.mxu0 0.0
    %755 = vmatmul.mubr.f32.gmra.mrb[0].mxu0 %v662
    %v756 = vpop.f32.mrb[0].mxu0
    %v757 = vadd.f32 %v688, %v756
    %v758 = vpop.f32.mrb[0].mxu0
    %759 = vmatprep.mubr.f32.mxu0 0.0
    %760 = vmatmul.mubr.f32.gmra.mrb[0].mxu0 %v664
    %v761 = vpop.f32.mrb[0].mxu0
    %v762 = vadd.f32 %v688, %v761
    %v763 = vpop.f32.mrb[0].mxu0
    %764 = vdwg.mxu0
    %s765 = scalar_lea.vmem %s7, 1
    %v766 = vld [vmem:[%s765] sm:$0x1]
    %s767 = scalar_lea.vmem [#allocation11], 1
    %v768 = vld [vmem:[%s767] sm:$0x1]
    %v769 = vadd.f32 %v757, %v762
    %v770 = vrot.slane %v769, 4
    %v771 = vadd.f32 %v769, %v770
    %v772 = vrot.slane %v771, 2
    %v773 = vadd.f32 %v771, %v772
    %v774 = vrot.slane %v773, 1
    %v775 = vadd.f32 %v773, %v774
    %v776 = vmul.f32 %v775, %v310
    %v777 = vsub.f32 %v757, %v776
    %v778 = vsub.f32 %v762, %v776
    %v779 = vmul.f32 %v777, %v777
    %v780 = vmul.f32 %v778, %v778
    %v781 = vadd.f32 %v779, %v780
    %v782 = vrot.slane %v781, 4
    %v783 = vadd.f32 %v781, %v782
    %v784 = vrot.slane %v783, 2
    %v785 = vadd.f32 %v783, %v784
    %v786 = vrot.slane %v785, 1
    %v787 = vadd.f32 %v785, %v786
    %v788 = vmul.f32 %v787, %v310
    %v789 = vadd.f32 %v788, 1e-05
    %v790 = vrsqrt.pop %v789
    %v791 = vmul.f32 %v766, %v790
    %v792 = vmul.f32 %v776, %v791
    %v793 = vsub.f32 %v768, %v792
    %v795 = vlaneseq
    %v796 = vshrl.u32 %v795, 7
    %v797 = vsub.s32 0, %v796
    %v798 = vrot.slane %v791, %v797
    %v800 = vmul.f32 %v757, %v798
    %v801 = vmul.f32 %v762, %v798
    %v803 = vlaneseq
    %v804 = vshrl.u32 %v803, 7
    %v805 = vsub.s32 0, %v804
    %v806 = vrot.slane %v793, %v805
    %v808 = vadd.f32 %v800, %v806
    %v809 = vadd.f32 %v801, %v806
    %v810 = vxor.u32 %v808, 2147483648
    %v811 = vxor.u32 %v809, 2147483648
    %v812 = vmul.f32 %v810, 1.442695
    %v813 = vpow.pop %v812
    %v814 = vmul.f32 %v811, 1.442695
    %v815 = vpow.pop %v814
    %v816 = vadd.f32 %v813, 1.0
    %v817 = vadd.f32 %v815, 1.0
    %v818 = vrcp.pop %v816
    %v819 = vmul.f32 1.0, %v818
    %v820 = vrcp.pop %v817
    %v821 = vmul.f32 1.0, %v820
    %s822 = scalar_lea.vmem [#allocation13], 128
    %v823 = vld [vmem:[%s822] sm:$0xff]
    %v824 = vld [vmem:[%s822 + $0x8] sm:$0xff]
    %v825 = vld [vmem:[%s822 + $0x10] sm:$0xff]
    %v826 = vld [vmem:[%s822 + $0x18] sm:$0xff]
    %v827 = vld [vmem:[%s822 + $0x20] sm:$0xff]
    %v828 = vld [vmem:[%s822 + $0x28] sm:$0xff]
    %v829 = vld [vmem:[%s822 + $0x30] sm:$0xff]
    %v830 = vld [vmem:[%s822 + $0x38] sm:$0xff]
    %v831 = vld [vmem:[%s822 + $0x40] sm:$0xff]
    %v832 = vld [vmem:[%s822 + $0x48] sm:$0xff]
    %v833 = vld [vmem:[%s822 + $0x50] sm:$0xff]
    %v834 = vld [vmem:[%s822 + $0x58] sm:$0xff]
    %v835 = vld [vmem:[%s822 + $0x60] sm:$0xff]
    %v836 = vld [vmem:[%s822 + $0x68] sm:$0xff]
    %v837 = vld [vmem:[%s822 + $0x70] sm:$0xff]
    %v838 = vld [vmem:[%s822 + $0x78] sm:$0xff]
    %s839 = scalar_lea.vmem %s10, 1
    %v840 = vld [vmem:[%s839] sm:$0x1]
    %v842 = vlaneseq
    %v843 = vshrl.u32 %v842, 7
    %v844 = vsub.s32 0, %v843
    %v845 = vrot.slane %v840, %v844
    %847 = vmatprep.subr.mxu0 0.0
    %848 = vmatpush1.msra.mxu0 %v823
    %849 = vmatprep.subr.mxu0 0.0
    %850 = vmatpush1.msra.mxu0 %v824
    %851 = vmatprep.subr.mxu0 0.0
    %852 = vmatpush1.msra.mxu0 %v825
    %853 = vmatprep.subr.mxu0 0.0
    %854 = vmatpush1.msra.mxu0 %v826
    %855 = vmatprep.subr.mxu0 0.0
    %856 = vmatpush1.msra.mxu0 %v827
    %857 = vmatprep.subr.mxu0 0.0
    %858 = vmatpush1.msra.mxu0 %v828
    %859 = vmatprep.subr.mxu0 0.0
    %860 = vmatpush1.msra.mxu0 %v829
    %861 = vmatprep.subr.mxu0 0.0
    %862 = vmatpush1.msra.mxu0 %v830
    %863 = vmatprep.subr.mxu0 0.0
    %864 = vmatpush1.msra.mxu0 %v831
    %865 = vmatprep.subr.mxu0 0.0
    %866 = vmatpush1.msra.mxu0 %v832
    %867 = vmatprep.subr.mxu0 0.0
    %868 = vmatpush1.msra.mxu0 %v833
    %869 = vmatprep.subr.mxu0 0.0
    %870 = vmatpush1.msra.mxu0 %v834
    %871 = vmatprep.subr.mxu0 0.0
    %872 = vmatpush1.msra.mxu0 %v835
    %873 = vmatprep.subr.mxu0 0.0
    %874 = vmatpush1.msra.mxu0 %v836
    %875 = vmatprep.subr.mxu0 0.0
    %876 = vmatpush1.msra.mxu0 %v837
    %877 = vmatprep.subr.mxu0 0.0
    %878 = vmatpush1.msra.mxu0 %v838
    %879 = vmatprep.subr.mxu0 0.0
    %880 = vmatpush1.msra.mxu0 0.0
    %881 = vmatprep.subr.mxu0 0.0
    %882 = vmatpush1.msra.mxu0 0.0
    %883 = vmatprep.subr.mxu0 0.0
    %884 = vmatpush1.msra.mxu0 0.0
    %885 = vmatprep.subr.mxu0 0.0
    %886 = vmatpush1.msra.mxu0 0.0
    %887 = vmatprep.subr.mxu0 0.0
    %888 = vmatpush1.msra.mxu0 0.0
    %889 = vmatprep.subr.mxu0 0.0
    %890 = vmatpush1.msra.mxu0 0.0
    %891 = vmatprep.subr.mxu0 0.0
    %892 = vmatpush1.msra.mxu0 0.0
    %893 = vmatprep.subr.mxu0 0.0
    %894 = vmatpush1.msra.mxu0 0.0
    %895 = vmatprep.subr.mxu0 0.0
    %896 = vmatpush1.msra.mxu0 0.0
    %897 = vmatprep.subr.mxu0 0.0
    %898 = vmatpush1.msra.mxu0 0.0
    %899 = vmatprep.subr.mxu0 0.0
    %900 = vmatpush1.msra.mxu0 0.0
    %901 = vmatprep.subr.mxu0 0.0
    %902 = vmatpush1.msra.mxu0 0.0
    %903 = vmatprep.subr.mxu0 0.0
    %904 = vmatpush1.msra.mxu0 0.0
    %905 = vmatprep.subr.mxu0 0.0
    %906 = vmatpush1.msra.mxu0 0.0
    %907 = vmatprep.subr.mxu0 0.0
    %908 = vmatpush1.msra.mxu0 0.0
    %909 = vmatprep.subr.mxu0 0.0
    %910 = vmatpush1.msra.mxu0 0.0
    %911 = vmatprep.mubr.f32.mxu0 0.0
    %912 = vmatmul.mubr.f32.gmra.mrb[0].mxu0 %v819
    %v913 = vpop.f32.mrb[0].mxu0
    %v914 = vadd.f32 %v845, %v913
    %v915 = vpop.f32.mrb[0].mxu0
    %916 = vmatprep.mubr.f32.mxu0 0.0
    %917 = vmatmul.mubr.f32.gmra.mrb[0].mxu0 %v821
    %v918 = vpop.f32.mrb[0].mxu0
    %v919 = vadd.f32 %v845, %v918
    %v920 = vpop.f32.mrb[0].mxu0
    %921 = vdwg.mxu0
    %s922 = scalar_lea.vmem [#allocation14], 1
    %v923 = vld [vmem:[%s922] sm:$0x1]
    %s924 = scalar_lea.vmem [#allocation16], 1
    %v925 = vld [vmem:[%s924] sm:$0x1]
    %v926 = vadd.f32 %v914, %v919
    %v927 = vrot.slane %v926, 4
    %v928 = vadd.f32 %v926, %v927
    %v929 = vrot.slane %v928, 2
    %v930 = vadd.f32 %v928, %v929
    %v931 = vrot.slane %v930, 1
    %v932 = vadd.f32 %v930, %v931
    %v933 = vmul.f32 %v932, %v310
    %v934 = vsub.f32 %v914, %v933
    %v935 = vsub.f32 %v919, %v933
    %v936 = vmul.f32 %v934, %v934
    %v937 = vmul.f32 %v935, %v935
    %v938 = vadd.f32 %v936, %v937
    %v939 = vrot.slane %v938, 4
    %v940 = vadd.f32 %v938, %v939
    %v941 = vrot.slane %v940, 2
    %v942 = vadd.f32 %v940, %v941
    %v943 = vrot.slane %v942, 1
    %v944 = vadd.f32 %v942, %v943
    %v945 = vmul.f32 %v944, %v310
    %v946 = vadd.f32 %v945, 1e-05
    %v947 = vrsqrt.pop %v946
    %v948 = vmul.f32 %v923, %v947
    %v949 = vmul.f32 %v933, %v948
    %v950 = vsub.f32 %v925, %v949
    %v952 = vlaneseq
    %v953 = vshrl.u32 %v952, 7
    %v954 = vsub.s32 0, %v953
    %v955 = vrot.slane %v948, %v954
    %v957 = vmul.f32 %v914, %v955
    %v958 = vmul.f32 %v919, %v955
    %v960 = vlaneseq
    %v961 = vshrl.u32 %v960, 7
    %v962 = vsub.s32 0, %v961
    %v963 = vrot.slane %v950, %v962
    %v965 = vadd.f32 %v957, %v963
    %v966 = vadd.f32 %v958, %v963
    %v967 = vadd.f32 %v965, %v662
    %v968 = vadd.f32 %v966, %v664
    %v969 = vxor.u32 %v967, 2147483648
    %v970 = vxor.u32 %v968, 2147483648
    %v971 = vmul.f32 %v969, 1.442695
    %v972 = vpow.pop %v971
    %v973 = vmul.f32 %v970, 1.442695
    %v974 = vpow.pop %v973
    %v975 = vadd.f32 %v972, 1.0
    %v976 = vadd.f32 %v974, 1.0
    %v977 = vrcp.pop %v975
    %v978 = vmul.f32 1.0, %v977
    %v979 = vrcp.pop %v976
    %v980 = vmul.f32 1.0, %v979
    %s981 = scalar_lea.vmem [#allocation10], 256
    %v982 = vld [vmem:[%s981] sm:$0xff]
    %v983 = vld [vmem:[%s981 + $0x8] sm:$0xff]
    %v984 = vld [vmem:[%s981 + $0x10] sm:$0xff]
    %v985 = vld [vmem:[%s981 + $0x18] sm:$0xff]
    %v986 = vld [vmem:[%s981 + $0x20] sm:$0xff]
    %v987 = vld [vmem:[%s981 + $0x28] sm:$0xff]
    %v988 = vld [vmem:[%s981 + $0x30] sm:$0xff]
    %v989 = vld [vmem:[%s981 + $0x38] sm:$0xff]
    %v990 = vld [vmem:[%s981 + $0x40] sm:$0xff]
    %v991 = vld [vmem:[%s981 + $0x48] sm:$0xff]
    %v992 = vld [vmem:[%s981 + $0x50] sm:$0xff]
    %v993 = vld [vmem:[%s981 + $0x58] sm:$0xff]
    %v994 = vld [vmem:[%s981 + $0x60] sm:$0xff]
    %v995 = vld [vmem:[%s981 + $0x68] sm:$0xff]
    %v996 = vld [vmem:[%s981 + $0x70] sm:$0xff]
    %v997 = vld [vmem:[%s981 + $0x78] sm:$0xff]
    %s998 = scalar_lea.vmem %s6, 2
    %v999 = vld [vmem:[%s998] sm:$0x1]
    %v1001 = vlaneseq
    %v1002 = vshrl.u32 %v1001, 7
    %v1003 = vsub.s32 0, %v1002
    %v1004 = vrot.slane %v999, %v1003
    %1006 = vmatprep.subr.mxu0 0.0
    %1007 = vmatpush1.msra.mxu0 %v982
    %1008 = vmatprep.subr.mxu0 0.0
    %1009 = vmatpush1.msra.mxu0 %v983
    %1010 = vmatprep.subr.mxu0 0.0
    %1011 = vmatpush1.msra.mxu0 %v984
    %1012 = vmatprep.subr.mxu0 0.0
    %1013 = vmatpush1.msra.mxu0 %v985
    %1014 = vmatprep.subr.mxu0 0.0
    %1015 = vmatpush1.msra.mxu0 %v986
    %1016 = vmatprep.subr.mxu0 0.0
    %1017 = vmatpush1.msra.mxu0 %v987
    %1018 = vmatprep.subr.mxu0 0.0
    %1019 = vmatpush1.msra.mxu0 %v988
    %1020 = vmatprep.subr.mxu0 0.0
    %1021 = vmatpush1.msra.mxu0 %v989
    %1022 = vmatprep.subr.mxu0 0.0
    %1023 = vmatpush1.msra.mxu0 %v990
    %1024 = vmatprep.subr.mxu0 0.0
    %1025 = vmatpush1.msra.mxu0 %v991
    %1026 = vmatprep.subr.mxu0 0.0
    %1027 = vmatpush1.msra.mxu0 %v992
    %1028 = vmatprep.subr.mxu0 0.0
    %1029 = vmatpush1.msra.mxu0 %v993
    %1030 = vmatprep.subr.mxu0 0.0
    %1031 = vmatpush1.msra.mxu0 %v994
    %1032 = vmatprep.subr.mxu0 0.0
    %1033 = vmatpush1.msra.mxu0 %v995
    %1034 = vmatprep.subr.mxu0 0.0
    %1035 = vmatpush1.msra.mxu0 %v996
    %1036 = vmatprep.subr.mxu0 0.0
    %1037 = vmatpush1.msra.mxu0 %v997
    %1038 = vmatprep.subr.mxu0 0.0
    %1039 = vmatpush1.msra.mxu0 0.0
    %1040 = vmatprep.subr.mxu0 0.0
    %1041 = vmatpush1.msra.mxu0 0.0
    %1042 = vmatprep.subr.mxu0 0.0
    %1043 = vmatpush1.msra.mxu0 0.0
    %1044 = vmatprep.subr.mxu0 0.0
    %1045 = vmatpush1.msra.mxu0 0.0
    %1046 = vmatprep.subr.mxu0 0.0
    %1047 = vmatpush1.msra.mxu0 0.0
    %1048 = vmatprep.subr.mxu0 0.0
    %1049 = vmatpush1.msra.mxu0 0.0
    %1050 = vmatprep.subr.mxu0 0.0
    %1051 = vmatpush1.msra.mxu0 0.0
    %1052 = vmatprep.subr.mxu0 0.0
    %1053 = vmatpush1.msra.mxu0 0.0
    %1054 = vmatprep.subr.mxu0 0.0
    %1055 = vmatpush1.msra.mxu0 0.0
    %1056 = vmatprep.subr.mxu0 0.0
    %1057 = vmatpush1.msra.mxu0 0.0
    %1058 = vmatprep.subr.mxu0 0.0
    %1059 = vmatpush1.msra.mxu0 0.0
    %1060 = vmatprep.subr.mxu0 0.0
    %1061 = vmatpush1.msra.mxu0 0.0
    %1062 = vmatprep.subr.mxu0 0.0
    %1063 = vmatpush1.msra.mxu0 0.0
    %1064 = vmatprep.subr.mxu0 0.0
    %1065 = vmatpush1.msra.mxu0 0.0
    %1066 = vmatprep.subr.mxu0 0.0
    %1067 = vmatpush1.msra.mxu0 0.0
    %1068 = vmatprep.subr.mxu0 0.0
    %1069 = vmatpush1.msra.mxu0 0.0
    %1070 = vmatprep.mubr.f32.mxu0 0.0
    %1071 = vmatmul.mubr.f32.gmra.mrb[0].mxu0 %v978
    %v1072 = vpop.f32.mrb[0].mxu0
    %v1073 = vadd.f32 %v1004, %v1072
    %v1074 = vpop.f32.mrb[0].mxu0
    %1075 = vmatprep.mubr.f32.mxu0 0.0
    %1076 = vmatmul.mubr.f32.gmra.mrb[0].mxu0 %v980
    %v1077 = vpop.f32.mrb[0].mxu0
    %v1078 = vadd.f32 %v1004, %v1077
    %v1079 = vpop.f32.mrb[0].mxu0
    %1080 = vdwg.mxu0
    %s1081 = scalar_lea.vmem %s7, 2
    %v1082 = vld [vmem:[%s1081] sm:$0x1]
    %s1083 = scalar_lea.vmem [#allocation11], 2
    %v1084 = vld [vmem:[%s1083] sm:$0x1]
    %v1085 = vadd.f32 %v1073, %v1078
    %v1086 = vrot.slane %v1085, 4
    %v1087 = vadd.f32 %v1085, %v1086
    %v1088 = vrot.slane %v1087, 2
    %v1089 = vadd.f32 %v1087, %v1088
    %v1090 = vrot.slane %v1089, 1
    %v1091 = vadd.f32 %v1089, %v1090
    %v1092 = vmul.f32 %v1091, %v310
    %v1093 = vsub.f32 %v1073, %v1092
    %v1094 = vsub.f32 %v1078, %v1092
    %v1095 = vmul.f32 %v1093, %v1093
    %v1096 = vmul.f32 %v1094, %v1094
    %v1097 = vadd.f32 %v1095, %v1096
    %v1098 = vrot.slane %v1097, 4
    %v1099 = vadd.f32 %v1097, %v1098
    %v1100 = vrot.slane %v1099, 2
    %v1101 = vadd.f32 %v1099, %v1100
    %v1102 = vrot.slane %v1101, 1
    %v1103 = vadd.f32 %v1101, %v1102
    %v1104 = vmul.f32 %v1103, %v310
    %v1105 = vadd.f32 %v1104, 1e-05
    %v1106 = vrsqrt.pop %v1105
    %v1107 = vmul.f32 %v1082, %v1106
    %v1108 = vmul.f32 %v1092, %v1107
    %v1109 = vsub.f32 %v1084, %v1108
    %v1111 = vlaneseq
    %v1112 = vshrl.u32 %v1111, 7
    %v1113 = vsub.s32 0, %v1112
    %v1114 = vrot.slane %v1107, %v1113
    %v1116 = vmul.f32 %v1073, %v1114
    %v1117 = vmul.f32 %v1078, %v1114
    %v1119 = vlaneseq
    %v1120 = vshrl.u32 %v1119, 7
    %v1121 = vsub.s32 0, %v1120
    %v1122 = vrot.slane %v1109, %v1121
    %v1124 = vadd.f32 %v1116, %v1122
    %v1125 = vadd.f32 %v1117, %v1122
    %v1126 = vxor.u32 %v1124, 2147483648
    %v1127 = vxor.u32 %v1125, 2147483648
    %v1128 = vmul.f32 %v1126, 1.442695
    %v1129 = vpow.pop %v1128
    %v1130 = vmul.f32 %v1127, 1.442695
    %v1131 = vpow.pop %v1130
    %v1132 = vadd.f32 %v1129, 1.0
    %v1133 = vadd.f32 %v1131, 1.0
    %v1134 = vrcp.pop %v1132
    %v1135 = vmul.f32 1.0, %v1134
    %v1136 = vrcp.pop %v1133
    %v1137 = vmul.f32 1.0, %v1136
    %s1138 = scalar_lea.vmem [#allocation13], 256
    %v1139 = vld [vmem:[%s1138] sm:$0xff]
    %v1140 = vld [vmem:[%s1138 + $0x8] sm:$0xff]
    %v1141 = vld [vmem:[%s1138 + $0x10] sm:$0xff]
    %v1142 = vld [vmem:[%s1138 + $0x18] sm:$0xff]
    %v1143 = vld [vmem:[%s1138 + $0x20] sm:$0xff]
    %v1144 = vld [vmem:[%s1138 + $0x28] sm:$0xff]
    %v1145 = vld [vmem:[%s1138 + $0x30] sm:$0xff]
    %v1146 = vld [vmem:[%s1138 + $0x38] sm:$0xff]
    %v1147 = vld [vmem:[%s1138 + $0x40] sm:$0xff]
    %v1148 = vld [vmem:[%s1138 + $0x48] sm:$0xff]
    %v1149 = vld [vmem:[%s1138 + $0x50] sm:$0xff]
    %v1150 = vld [vmem:[%s1138 + $0x58] sm:$0xff]
    %v1151 = vld [vmem:[%s1138 + $0x60] sm:$0xff]
    %v1152 = vld [vmem:[%s1138 + $0x68] sm:$0xff]
    %v1153 = vld [vmem:[%s1138 + $0x70] sm:$0xff]
    %v1154 = vld [vmem:[%s1138 + $0x78] sm:$0xff]
    %s1155 = scalar_lea.vmem %s10, 2
    %v1156 = vld [vmem:[%s1155] sm:$0x1]
    %v1158 = vlaneseq
    %v1159 = vshrl.u32 %v1158, 7
    %v1160 = vsub.s32 0, %v1159
    %v1161 = vrot.slane %v1156, %v1160
    %1163 = vmatprep.subr.mxu0 0.0
    %1164 = vmatpush1.msra.mxu0 %v1139
    %1165 = vmatprep.subr.mxu0 0.0
    %1166 = vmatpush1.msra.mxu0 %v1140
    %1167 = vmatprep.subr.mxu0 0.0
    %1168 = vmatpush1.msra.mxu0 %v1141
    %1169 = vmatprep.subr.mxu0 0.0
    %1170 = vmatpush1.msra.mxu0 %v1142
    %1171 = vmatprep.subr.mxu0 0.0
    %1172 = vmatpush1.msra.mxu0 %v1143
    %1173 = vmatprep.subr.mxu0 0.0
    %1174 = vmatpush1.msra.mxu0 %v1144
    %1175 = vmatprep.subr.mxu0 0.0
    %1176 = vmatpush1.msra.mxu0 %v1145
    %1177 = vmatprep.subr.mxu0 0.0
    %1178 = vmatpush1.msra.mxu0 %v1146
    %1179 = vmatprep.subr.mxu0 0.0
    %1180 = vmatpush1.msra.mxu0 %v1147
    %1181 = vmatprep.subr.mxu0 0.0
    %1182 = vmatpush1.msra.mxu0 %v1148
    %1183 = vmatprep.subr.mxu0 0.0
    %1184 = vmatpush1.msra.mxu0 %v1149
    %1185 = vmatprep.subr.mxu0 0.0
    %1186 = vmatpush1.msra.mxu0 %v1150
    %1187 = vmatprep.subr.mxu0 0.0
    %1188 = vmatpush1.msra.mxu0 %v1151
    %1189 = vmatprep.subr.mxu0 0.0
    %1190 = vmatpush1.msra.mxu0 %v1152
    %1191 = vmatprep.subr.mxu0 0.0
    %1192 = vmatpush1.msra.mxu0 %v1153
    %1193 = vmatprep.subr.mxu0 0.0
    %1194 = vmatpush1.msra.mxu0 %v1154
    %1195 = vmatprep.subr.mxu0 0.0
    %1196 = vmatpush1.msra.mxu0 0.0
    %1197 = vmatprep.subr.mxu0 0.0
    %1198 = vmatpush1.msra.mxu0 0.0
    %1199 = vmatprep.subr.mxu0 0.0
    %1200 = vmatpush1.msra.mxu0 0.0
    %1201 = vmatprep.subr.mxu0 0.0
    %1202 = vmatpush1.msra.mxu0 0.0
    %1203 = vmatprep.subr.mxu0 0.0
    %1204 = vmatpush1.msra.mxu0 0.0
    %1205 = vmatprep.subr.mxu0 0.0
    %1206 = vmatpush1.msra.mxu0 0.0
    %1207 = vmatprep.subr.mxu0 0.0
    %1208 = vmatpush1.msra.mxu0 0.0
    %1209 = vmatprep.subr.mxu0 0.0
    %1210 = vmatpush1.msra.mxu0 0.0
    %1211 = vmatprep.subr.mxu0 0.0
    %1212 = vmatpush1.msra.mxu0 0.0
    %1213 = vmatprep.subr.mxu0 0.0
    %1214 = vmatpush1.msra.mxu0 0.0
    %1215 = vmatprep.subr.mxu0 0.0
    %1216 = vmatpush1.msra.mxu0 0.0
    %1217 = vmatprep.subr.mxu0 0.0
    %1218 = vmatpush1.msra.mxu0 0.0
    %1219 = vmatprep.subr.mxu0 0.0
    %1220 = vmatpush1.msra.mxu0 0.0
    %1221 = vmatprep.subr.mxu0 0.0
    %1222 = vmatpush1.msra.mxu0 0.0
    %1223 = vmatprep.subr.mxu0 0.0
    %1224 = vmatpush1.msra.mxu0 0.0
    %1225 = vmatprep.subr.mxu0 0.0
    %1226 = vmatpush1.msra.mxu0 0.0
    %1227 = vmatprep.mubr.f32.mxu0 0.0
    %1228 = vmatmul.mubr.f32.gmra.mrb[0].mxu0 %v1135
    %v1229 = vpop.f32.mrb[0].mxu0
    %v1230 = vadd.f32 %v1161, %v1229
    %v1231 = vpop.f32.mrb[0].mxu0
    %1232 = vmatprep.mubr.f32.mxu0 0.0
    %1233 = vmatmul.mubr.f32.gmra.mrb[0].mxu0 %v1137
    %v1234 = vpop.f32.mrb[0].mxu0
    %v1235 = vadd.f32 %v1161, %v1234
    %v1236 = vpop.f32.mrb[0].mxu0
    %1237 = vdwg.mxu0
    %s1238 = scalar_lea.vmem [#allocation14], 2
    %v1239 = vld [vmem:[%s1238] sm:$0x1]
    %s1240 = scalar_lea.vmem [#allocation16], 2
    %v1241 = vld [vmem:[%s1240] sm:$0x1]
    %v1242 = vadd.f32 %v1230, %v1235
    %v1243 = vrot.slane %v1242, 4
    %v1244 = vadd.f32 %v1242, %v1243
    %v1245 = vrot.slane %v1244, 2
    %v1246 = vadd.f32 %v1244, %v1245
    %v1247 = vrot.slane %v1246, 1
    %v1248 = vadd.f32 %v1246, %v1247
    %v1249 = vmul.f32 %v1248, %v310
    %v1250 = vsub.f32 %v1230, %v1249
    %v1251 = vsub.f32 %v1235, %v1249
    %v1252 = vmul.f32 %v1250, %v1250
    %v1253 = vmul.f32 %v1251, %v1251
    %v1254 = vadd.f32 %v1252, %v1253
    %v1255 = vrot.slane %v1254, 4
    %v1256 = vadd.f32 %v1254, %v1255
    %v1257 = vrot.slane %v1256, 2
    %v1258 = vadd.f32 %v1256, %v1257
    %v1259 = vrot.slane %v1258, 1
    %v1260 = vadd.f32 %v1258, %v1259
    %v1261 = vmul.f32 %v1260, %v310
    %v1262 = vadd.f32 %v1261, 1e-05
    %v1263 = vrsqrt.pop %v1262
    %v1264 = vmul.f32 %v1239, %v1263
    %v1265 = vmul.f32 %v1249, %v1264
    %v1266 = vsub.f32 %v1241, %v1265
    %v1268 = vlaneseq
    %v1269 = vshrl.u32 %v1268, 7
    %v1270 = vsub.s32 0, %v1269
    %v1271 = vrot.slane %v1264, %v1270
    %v1273 = vmul.f32 %v1230, %v1271
    %v1274 = vmul.f32 %v1235, %v1271
    %v1276 = vlaneseq
    %v1277 = vshrl.u32 %v1276, 7
    %v1278 = vsub.s32 0, %v1277
    %v1279 = vrot.slane %v1266, %v1278
    %v1281 = vadd.f32 %v1273, %v1279
    %v1282 = vadd.f32 %v1274, %v1279
    %v1283 = vadd.f32 %v1281, %v978
    %v1284 = vadd.f32 %v1282, %v980
    %v1285 = vxor.u32 %v1283, 2147483648
    %v1286 = vxor.u32 %v1284, 2147483648
    %v1287 = vmul.f32 %v1285, 1.442695
    %v1288 = vpow.pop %v1287
    %v1289 = vmul.f32 %v1286, 1.442695
    %v1290 = vpow.pop %v1289
    %v1291 = vadd.f32 %v1288, 1.0
    %v1292 = vadd.f32 %v1290, 1.0
    %v1293 = vrcp.pop %v1291
    %v1294 = vmul.f32 1.0, %v1293
    %v1295 = vrcp.pop %v1292
    %v1296 = vmul.f32 1.0, %v1295
    %s1297 = scalar_lea.vmem [#allocation10], 384
    %v1298 = vld [vmem:[%s1297] sm:$0xff]
    %v1299 = vld [vmem:[%s1297 + $0x8] sm:$0xff]
    %v1300 = vld [vmem:[%s1297 + $0x10] sm:$0xff]
    %v1301 = vld [vmem:[%s1297 + $0x18] sm:$0xff]
    %v1302 = vld [vmem:[%s1297 + $0x20] sm:$0xff]
    %v1303 = vld [vmem:[%s1297 + $0x28] sm:$0xff]
    %v1304 = vld [vmem:[%s1297 + $0x30] sm:$0xff]
    %v1305 = vld [vmem:[%s1297 + $0x38] sm:$0xff]
    %v1306 = vld [vmem:[%s1297 + $0x40] sm:$0xff]
    %v1307 = vld [vmem:[%s1297 + $0x48] sm:$0xff]
    %v1308 = vld [vmem:[%s1297 + $0x50] sm:$0xff]
    %v1309 = vld [vmem:[%s1297 + $0x58] sm:$0xff]
    %v1310 = vld [vmem:[%s1297 + $0x60] sm:$0xff]
    %v1311 = vld [vmem:[%s1297 + $0x68] sm:$0xff]
    %v1312 = vld [vmem:[%s1297 + $0x70] sm:$0xff]
    %v1313 = vld [vmem:[%s1297 + $0x78] sm:$0xff]
    %s1314 = scalar_lea.vmem %s6, 3
    %v1315 = vld [vmem:[%s1314] sm:$0x1]
    %v1317 = vlaneseq
    %v1318 = vshrl.u32 %v1317, 7
    %v1319 = vsub.s32 0, %v1318
    %v1320 = vrot.slane %v1315, %v1319
    %1322 = vmatprep.subr.mxu0 0.0
    %1323 = vmatpush1.msra.mxu0 %v1298
    %1324 = vmatprep.subr.mxu0 0.0
    %1325 = vmatpush1.msra.mxu0 %v1299
    %1326 = vmatprep.subr.mxu0 0.0
    %1327 = vmatpush1.msra.mxu0 %v1300
    %1328 = vmatprep.subr.mxu0 0.0
    %1329 = vmatpush1.msra.mxu0 %v1301
    %1330 = vmatprep.subr.mxu0 0.0
    %1331 = vmatpush1.msra.mxu0 %v1302
    %1332 = vmatprep.subr.mxu0 0.0
    %1333 = vmatpush1.msra.mxu0 %v1303
    %1334 = vmatprep.subr.mxu0 0.0
    %1335 = vmatpush1.msra.mxu0 %v1304
    %1336 = vmatprep.subr.mxu0 0.0
    %1337 = vmatpush1.msra.mxu0 %v1305
    %1338 = vmatprep.subr.mxu0 0.0
    %1339 = vmatpush1.msra.mxu0 %v1306
    %1340 = vmatprep.subr.mxu0 0.0
    %1341 = vmatpush1.msra.mxu0 %v1307
    %1342 = vmatprep.subr.mxu0 0.0
    %1343 = vmatpush1.msra.mxu0 %v1308
    %1344 = vmatprep.subr.mxu0 0.0
    %1345 = vmatpush1.msra.mxu0 %v1309
    %1346 = vmatprep.subr.mxu0 0.0
    %1347 = vmatpush1.msra.mxu0 %v1310
    %1348 = vmatprep.subr.mxu0 0.0
    %1349 = vmatpush1.msra.mxu0 %v1311
    %1350 = vmatprep.subr.mxu0 0.0
    %1351 = vmatpush1.msra.mxu0 %v1312
    %1352 = vmatprep.subr.mxu0 0.0
    %1353 = vmatpush1.msra.mxu0 %v1313
    %1354 = vmatprep.subr.mxu0 0.0
    %1355 = vmatpush1.msra.mxu0 0.0
    %1356 = vmatprep.subr.mxu0 0.0
    %1357 = vmatpush1.msra.mxu0 0.0
    %1358 = vmatprep.subr.mxu0 0.0
    %1359 = vmatpush1.msra.mxu0 0.0
    %1360 = vmatprep.subr.mxu0 0.0
    %1361 = vmatpush1.msra.mxu0 0.0
    %1362 = vmatprep.subr.mxu0 0.0
    %1363 = vmatpush1.msra.mxu0 0.0
    %1364 = vmatprep.subr.mxu0 0.0
    %1365 = vmatpush1.msra.mxu0 0.0
    %1366 = vmatprep.subr.mxu0 0.0
    %1367 = vmatpush1.msra.mxu0 0.0
    %1368 = vmatprep.subr.mxu0 0.0
    %1369 = vmatpush1.msra.mxu0 0.0
    %1370 = vmatprep.subr.mxu0 0.0
    %1371 = vmatpush1.msra.mxu0 0.0
    %1372 = vmatprep.subr.mxu0 0.0
    %1373 = vmatpush1.msra.mxu0 0.0
    %1374 = vmatprep.subr.mxu0 0.0
    %1375 = vmatpush1.msra.mxu0 0.0
    %1376 = vmatprep.subr.mxu0 0.0
    %1377 = vmatpush1.msra.mxu0 0.0
    %1378 = vmatprep.subr.mxu0 0.0
    %1379 = vmatpush1.msra.mxu0 0.0
    %1380 = vmatprep.subr.mxu0 0.0
    %1381 = vmatpush1.msra.mxu0 0.0
    %1382 = vmatprep.subr.mxu0 0.0
    %1383 = vmatpush1.msra.mxu0 0.0
    %1384 = vmatprep.subr.mxu0 0.0
    %1385 = vmatpush1.msra.mxu0 0.0
    %1386 = vmatprep.mubr.f32.mxu0 0.0
    %1387 = vmatmul.mubr.f32.gmra.mrb[0].mxu0 %v1294
    %v1388 = vpop.f32.mrb[0].mxu0
    %v1389 = vadd.f32 %v1320, %v1388
    %v1390 = vpop.f32.mrb[0].mxu0
    %1391 = vmatprep.mubr.f32.mxu0 0.0
    %1392 = vmatmul.mubr.f32.gmra.mrb[0].mxu0 %v1296
    %v1393 = vpop.f32.mrb[0].mxu0
    %v1394 = vadd.f32 %v1320, %v1393
    %v1395 = vpop.f32.mrb[0].mxu0
    %1396 = vdwg.mxu0
    %s1397 = scalar_lea.vmem %s7, 3
    %v1398 = vld [vmem:[%s1397] sm:$0x1]
    %s1399 = scalar_lea.vmem [#allocation11], 3
    %v1400 = vld [vmem:[%s1399] sm:$0x1]
    %v1401 = vadd.f32 %v1389, %v1394
    %v1402 = vrot.slane %v1401, 4
    %v1403 = vadd.f32 %v1401, %v1402
    %v1404 = vrot.slane %v1403, 2
    %v1405 = vadd.f32 %v1403, %v1404
    %v1406 = vrot.slane %v1405, 1
    %v1407 = vadd.f32 %v1405, %v1406
    %v1408 = vmul.f32 %v1407, %v310
    %v1409 = vsub.f32 %v1389, %v1408
    %v1410 = vsub.f32 %v1394, %v1408
    %v1411 = vmul.f32 %v1409, %v1409
    %v1412 = vmul.f32 %v1410, %v1410
    %v1413 = vadd.f32 %v1411, %v1412
    %v1414 = vrot.slane %v1413, 4
    %v1415 = vadd.f32 %v1413, %v1414
    %v1416 = vrot.slane %v1415, 2
    %v1417 = vadd.f32 %v1415, %v1416
    %v1418 = vrot.slane %v1417, 1
    %v1419 = vadd.f32 %v1417, %v1418
    %v1420 = vmul.f32 %v1419, %v310
    %v1421 = vadd.f32 %v1420, 1e-05
    %v1422 = vrsqrt.pop %v1421
    %v1423 = vmul.f32 %v1398, %v1422
    %v1424 = vmul.f32 %v1408, %v1423
    %v1425 = vsub.f32 %v1400, %v1424
    %v1427 = vlaneseq
    %v1428 = vshrl.u32 %v1427, 7
    %v1429 = vsub.s32 0, %v1428
    %v1430 = vrot.slane %v1423, %v1429
    %v1432 = vmul.f32 %v1389, %v1430
    %v1433 = vmul.f32 %v1394, %v1430
    %v1435 = vlaneseq
    %v1436 = vshrl.u32 %v1435, 7
    %v1437 = vsub.s32 0, %v1436
    %v1438 = vrot.slane %v1425, %v1437
    %v1440 = vadd.f32 %v1432, %v1438
    %v1441 = vadd.f32 %v1433, %v1438
    %v1442 = vxor.u32 %v1440, 2147483648
    %v1443 = vxor.u32 %v1441, 2147483648
    %v1444 = vmul.f32 %v1442, 1.442695
    %v1445 = vpow.pop %v1444
    %v1446 = vmul.f32 %v1443, 1.442695
    %v1447 = vpow.pop %v1446
    %v1448 = vadd.f32 %v1445, 1.0
    %v1449 = vadd.f32 %v1447, 1.0
    %v1450 = vrcp.pop %v1448
    %v1451 = vmul.f32 1.0, %v1450
    %v1452 = vrcp.pop %v1449
    %v1453 = vmul.f32 1.0, %v1452
    %s1454 = scalar_lea.vmem [#allocation13], 384
    %v1455 = vld [vmem:[%s1454] sm:$0xff]
    %v1456 = vld [vmem:[%s1454 + $0x8] sm:$0xff]
    %v1457 = vld [vmem:[%s1454 + $0x10] sm:$0xff]
    %v1458 = vld [vmem:[%s1454 + $0x18] sm:$0xff]
    %v1459 = vld [vmem:[%s1454 + $0x20] sm:$0xff]
    %v1460 = vld [vmem:[%s1454 + $0x28] sm:$0xff]
    %v1461 = vld [vmem:[%s1454 + $0x30] sm:$0xff]
    %v1462 = vld [vmem:[%s1454 + $0x38] sm:$0xff]
    %v1463 = vld [vmem:[%s1454 + $0x40] sm:$0xff]
    %v1464 = vld [vmem:[%s1454 + $0x48] sm:$0xff]
    %v1465 = vld [vmem:[%s1454 + $0x50] sm:$0xff]
    %v1466 = vld [vmem:[%s1454 + $0x58] sm:$0xff]
    %v1467 = vld [vmem:[%s1454 + $0x60] sm:$0xff]
    %v1468 = vld [vmem:[%s1454 + $0x68] sm:$0xff]
    %v1469 = vld [vmem:[%s1454 + $0x70] sm:$0xff]
    %v1470 = vld [vmem:[%s1454 + $0x78] sm:$0xff]
    %s1471 = scalar_lea.vmem %s10, 3
    %v1472 = vld [vmem:[%s1471] sm:$0x1]
    %v1474 = vlaneseq
    %v1475 = vshrl.u32 %v1474, 7
    %v1476 = vsub.s32 0, %v1475
    %v1477 = vrot.slane %v1472, %v1476
    %1479 = vmatprep.subr.mxu0 0.0
    %1480 = vmatpush1.msra.mxu0 %v1455
    %1481 = vmatprep.subr.mxu0 0.0
    %1482 = vmatpush1.msra.mxu0 %v1456
    %1483 = vmatprep.subr.mxu0 0.0
    %1484 = vmatpush1.msra.mxu0 %v1457
    %1485 = vmatprep.subr.mxu0 0.0
    %1486 = vmatpush1.msra.mxu0 %v1458
    %1487 = vmatprep.subr.mxu0 0.0
    %1488 = vmatpush1.msra.mxu0 %v1459
    %1489 = vmatprep.subr.mxu0 0.0
    %1490 = vmatpush1.msra.mxu0 %v1460
    %1491 = vmatprep.subr.mxu0 0.0
    %1492 = vmatpush1.msra.mxu0 %v1461
    %1493 = vmatprep.subr.mxu0 0.0
    %1494 = vmatpush1.msra.mxu0 %v1462
    %1495 = vmatprep.subr.mxu0 0.0
    %1496 = vmatpush1.msra.mxu0 %v1463
    %1497 = vmatprep.subr.mxu0 0.0
    %1498 = vmatpush1.msra.mxu0 %v1464
    %1499 = vmatprep.subr.mxu0 0.0
    %1500 = vmatpush1.msra.mxu0 %v1465
    %1501 = vmatprep.subr.mxu0 0.0
    %1502 = vmatpush1.msra.mxu0 %v1466
    %1503 = vmatprep.subr.mxu0 0.0
    %1504 = vmatpush1.msra.mxu0 %v1467
    %1505 = vmatprep.subr.mxu0 0.0
    %1506 = vmatpush1.msra.mxu0 %v1468
    %1507 = vmatprep.subr.mxu0 0.0
    %1508 = vmatpush1.msra.mxu0 %v1469
    %1509 = vmatprep.subr.mxu0 0.0
    %1510 = vmatpush1.msra.mxu0 %v1470
    %1511 = vmatprep.subr.mxu0 0.0
    %1512 = vmatpush1.msra.mxu0 0.0
    %1513 = vmatprep.subr.mxu0 0.0
    %1514 = vmatpush1.msra.mxu0 0.0
    %1515 = vmatprep.subr.mxu0 0.0
    %1516 = vmatpush1.msra.mxu0 0.0
    %1517 = vmatprep.subr.mxu0 0.0
    %1518 = vmatpush1.msra.mxu0 0.0
    %1519 = vmatprep.subr.mxu0 0.0
    %1520 = vmatpush1.msra.mxu0 0.0
    %1521 = vmatprep.subr.mxu0 0.0
    %1522 = vmatpush1.msra.mxu0 0.0
    %1523 = vmatprep.subr.mxu0 0.0
    %1524 = vmatpush1.msra.mxu0 0.0
    %1525 = vmatprep.subr.mxu0 0.0
    %1526 = vmatpush1.msra.mxu0 0.0
    %1527 = vmatprep.subr.mxu0 0.0
    %1528 = vmatpush1.msra.mxu0 0.0
    %1529 = vmatprep.subr.mxu0 0.0
    %1530 = vmatpush1.msra.mxu0 0.0
    %1531 = vmatprep.subr.mxu0 0.0
    %1532 = vmatpush1.msra.mxu0 0.0
    %1533 = vmatprep.subr.mxu0 0.0
    %1534 = vmatpush1.msra.mxu0 0.0
    %1535 = vmatprep.subr.mxu0 0.0
    %1536 = vmatpush1.msra.mxu0 0.0
    %1537 = vmatprep.subr.mxu0 0.0
    %1538 = vmatpush1.msra.mxu0 0.0
    %1539 = vmatprep.subr.mxu0 0.0
    %1540 = vmatpush1.msra.mxu0 0.0
    %1541 = vmatprep.subr.mxu0 0.0
    %1542 = vmatpush1.msra.mxu0 0.0
    %1543 = vmatprep.mubr.f32.mxu0 0.0
    %1544 = vmatmul.mubr.f32.gmra.mrb[0].mxu0 %v1451
    %v1545 = vpop.f32.mrb[0].mxu0
    %v1546 = vadd.f32 %v1477, %v1545
    %v1547 = vpop.f32.mrb[0].mxu0
    %1548 = vmatprep.mubr.f32.mxu0 0.0
    %1549 = vmatmul.mubr.f32.gmra.mrb[0].mxu0 %v1453
    %v1550 = vpop.f32.mrb[0].mxu0
    %v1551 = vadd.f32 %v1477, %v1550
    %v1552 = vpop.f32.mrb[0].mxu0
    %1553 = vdwg.mxu0
    %s1554 = scalar_lea.vmem [#allocation14], 3
    %v1555 = vld [vmem:[%s1554] sm:$0x1]
    %s1556 = scalar_lea.vmem [#allocation16], 3
    %v1557 = vld [vmem:[%s1556] sm:$0x1]
    %v1558 = vadd.f32 %v1546, %v1551
    %v1559 = vrot.slane %v1558, 4
    %v1560 = vadd.f32 %v1558, %v1559
    %v1561 = vrot.slane %v1560, 2
    %v1562 = vadd.f32 %v1560, %v1561
    %v1563 = vrot.slane %v1562, 1
    %v1564 = vadd.f32 %v1562, %v1563
    %v1565 = vmul.f32 %v1564, %v310
    %v1566 = vsub.f32 %v1546, %v1565
    %v1567 = vsub.f32 %v1551, %v1565
    %v1568 = vmul.f32 %v1566, %v1566
    %v1569 = vmul.f32 %v1567, %v1567
    %v1570 = vadd.f32 %v1568, %v1569
    %v1571 = vrot.slane %v1570, 4
    %v1572 = vadd.f32 %v1570, %v1571
    %v1573 = vrot.slane %v1572, 2
    %v1574 = vadd.f32 %v1572, %v1573
    %v1575 = vrot.slane %v1574, 1
    %v1576 = vadd.f32 %v1574, %v1575
    %v1577 = vmul.f32 %v1576, %v310
    %v1578 = vadd.f32 %v1577, 1e-05
    %v1579 = vrsqrt.pop %v1578
    %v1580 = vmul.f32 %v1555, %v1579
    %v1581 = vmul.f32 %v1565, %v1580
    %v1582 = vsub.f32 %v1557, %v1581
    %v1584 = vlaneseq
    %v1585 = vshrl.u32 %v1584, 7
    %v1586 = vsub.s32 0, %v1585
    %v1587 = vrot.slane %v1580, %v1586
    %v1589 = vmul.f32 %v1546, %v1587
    %v1590 = vmul.f32 %v1551, %v1587
    %v1592 = vlaneseq
    %v1593 = vshrl.u32 %v1592, 7
    %v1594 = vsub.s32 0, %v1593
    %v1595 = vrot.slane %v1582, %v1594
    %v1597 = vadd.f32 %v1589, %v1595
    %v1598 = vadd.f32 %v1590, %v1595
    %v1599 = vadd.f32 %v1597, %v1294
    %v1600 = vadd.f32 %v1598, %v1296
    %v1601 = vxor.u32 %v1599, 2147483648
    %v1602 = vxor.u32 %v1600, 2147483648
    %v1603 = vmul.f32 %v1601, 1.442695
    %v1604 = vpow.pop %v1603
    %v1605 = vmul.f32 %v1602, 1.442695
    %v1606 = vpow.pop %v1605
    %v1607 = vadd.f32 %v1604, 1.0
    %v1608 = vadd.f32 %v1606, 1.0
    %v1609 = vrcp.pop %v1607
    %v1610 = vmul.f32 1.0, %v1609
    %v1611 = vrcp.pop %v1608
    %v1612 = vmul.f32 1.0, %v1611
    %s1613 = scalar_lea.vmem [#allocation10], 512
    %v1614 = vld [vmem:[%s1613] sm:$0xff]
    %v1615 = vld [vmem:[%s1613 + $0x8] sm:$0xff]
    %v1616 = vld [vmem:[%s1613 + $0x10] sm:$0xff]
    %v1617 = vld [vmem:[%s1613 + $0x18] sm:$0xff]
    %v1618 = vld [vmem:[%s1613 + $0x20] sm:$0xff]
    %v1619 = vld [vmem:[%s1613 + $0x28] sm:$0xff]
    %v1620 = vld [vmem:[%s1613 + $0x30] sm:$0xff]
    %v1621 = vld [vmem:[%s1613 + $0x38] sm:$0xff]
    %v1622 = vld [vmem:[%s1613 + $0x40] sm:$0xff]
    %v1623 = vld [vmem:[%s1613 + $0x48] sm:$0xff]
    %v1624 = vld [vmem:[%s1613 + $0x50] sm:$0xff]
    %v1625 = vld [vmem:[%s1613 + $0x58] sm:$0xff]
    %v1626 = vld [vmem:[%s1613 + $0x60] sm:$0xff]
    %v1627 = vld [vmem:[%s1613 + $0x68] sm:$0xff]
    %v1628 = vld [vmem:[%s1613 + $0x70] sm:$0xff]
    %v1629 = vld [vmem:[%s1613 + $0x78] sm:$0xff]
    %s1630 = scalar_lea.vmem %s6, 4
    %v1631 = vld [vmem:[%s1630] sm:$0x1]
    %v1633 = vlaneseq
    %v1634 = vshrl.u32 %v1633, 7
    %v1635 = vsub.s32 0, %v1634
    %v1636 = vrot.slane %v1631, %v1635
    %1638 = vmatprep.subr.mxu0 0.0
    %1639 = vmatpush1.msra.mxu0 %v1614
    %1640 = vmatprep.subr.mxu0 0.0
    %1641 = vmatpush1.msra.mxu0 %v1615
    %1642 = vmatprep.subr.mxu0 0.0
    %1643 = vmatpush1.msra.mxu0 %v1616
    %1644 = vmatprep.subr.mxu0 0.0
    %1645 = vmatpush1.msra.mxu0 %v1617
    %1646 = vmatprep.subr.mxu0 0.0
    %1647 = vmatpush1.msra.mxu0 %v1618
    %1648 = vmatprep.subr.mxu0 0.0
    %1649 = vmatpush1.msra.mxu0 %v1619
    %1650 = vmatprep.subr.mxu0 0.0
    %1651 = vmatpush1.msra.mxu0 %v1620
    %1652 = vmatprep.subr.mxu0 0.0
    %1653 = vmatpush1.msra.mxu0 %v1621
    %1654 = vmatprep.subr.mxu0 0.0
    %1655 = vmatpush1.msra.mxu0 %v1622
    %1656 = vmatprep.subr.mxu0 0.0
    %1657 = vmatpush1.msra.mxu0 %v1623
    %1658 = vmatprep.subr.mxu0 0.0
    %1659 = vmatpush1.msra.mxu0 %v1624
    %1660 = vmatprep.subr.mxu0 0.0
    %1661 = vmatpush1.msra.mxu0 %v1625
    %1662 = vmatprep.subr.mxu0 0.0
    %1663 = vmatpush1.msra.mxu0 %v1626
    %1664 = vmatprep.subr.mxu0 0.0
    %1665 = vmatpush1.msra.mxu0 %v1627
    %1666 = vmatprep.subr.mxu0 0.0
    %1667 = vmatpush1.msra.mxu0 %v1628
    %1668 = vmatprep.subr.mxu0 0.0
    %1669 = vmatpush1.msra.mxu0 %v1629
    %1670 = vmatprep.subr.mxu0 0.0
    %1671 = vmatpush1.msra.mxu0 0.0
    %1672 = vmatprep.subr.mxu0 0.0
    %1673 = vmatpush1.msra.mxu0 0.0
    %1674 = vmatprep.subr.mxu0 0.0
    %1675 = vmatpush1.msra.mxu0 0.0
    %1676 = vmatprep.subr.mxu0 0.0
    %1677 = vmatpush1.msra.mxu0 0.0
    %1678 = vmatprep.subr.mxu0 0.0
    %1679 = vmatpush1.msra.mxu0 0.0
    %1680 = vmatprep.subr.mxu0 0.0
    %1681 = vmatpush1.msra.mxu0 0.0
    %1682 = vmatprep.subr.mxu0 0.0
    %1683 = vmatpush1.msra.mxu0 0.0
    %1684 = vmatprep.subr.mxu0 0.0
    %1685 = vmatpush1.msra.mxu0 0.0
    %1686 = vmatprep.subr.mxu0 0.0
    %1687 = vmatpush1.msra.mxu0 0.0
    %1688 = vmatprep.subr.mxu0 0.0
    %1689 = vmatpush1.msra.mxu0 0.0
    %1690 = vmatprep.subr.mxu0 0.0
    %1691 = vmatpush1.msra.mxu0 0.0
    %1692 = vmatprep.subr.mxu0 0.0
    %1693 = vmatpush1.msra.mxu0 0.0
    %1694 = vmatprep.subr.mxu0 0.0
    %1695 = vmatpush1.msra.mxu0 0.0
    %1696 = vmatprep.subr.mxu0 0.0
    %1697 = vmatpush1.msra.mxu0 0.0
    %1698 = vmatprep.subr.mxu0 0.0
    %1699 = vmatpush1.msra.mxu0 0.0
    %1700 = vmatprep.subr.mxu0 0.0
    %1701 = vmatpush1.msra.mxu0 0.0
    %1702 = vmatprep.mubr.f32.mxu0 0.0
    %1703 = vmatmul.mubr.f32.gmra.mrb[0].mxu0 %v1610
    %v1704 = vpop.f32.mrb[0].mxu0
    %v1705 = vadd.f32 %v1636, %v1704
    %v1706 = vpop.f32.mrb[0].mxu0
    %1707 = vmatprep.mubr.f32.mxu0 0.0
    %1708 = vmatmul.mubr.f32.gmra.mrb[0].mxu0 %v1612
    %v1709 = vpop.f32.mrb[0].mxu0
    %v1710 = vadd.f32 %v1636, %v1709
    %v1711 = vpop.f32.mrb[0].mxu0
    %1712 = vdwg.mxu0
    %s1713 = scalar_lea.vmem %s7, 4
    %v1714 = vld [vmem:[%s1713] sm:$0x1]
    %s1715 = scalar_lea.vmem [#allocation11], 4
    %v1716 = vld [vmem:[%s1715] sm:$0x1]
    %v1717 = vadd.f32 %v1705, %v1710
    %v1718 = vrot.slane %v1717, 4
    %v1719 = vadd.f32 %v1717, %v1718
    %v1720 = vrot.slane %v1719, 2
    %v1721 = vadd.f32 %v1719, %v1720
    %v1722 = vrot.slane %v1721, 1
    %v1723 = vadd.f32 %v1721, %v1722
    %v1724 = vmul.f32 %v1723, %v310
    %v1725 = vsub.f32 %v1705, %v1724
    %v1726 = vsub.f32 %v1710, %v1724
    %v1727 = vmul.f32 %v1725, %v1725
    %v1728 = vmul.f32 %v1726, %v1726
    %v1729 = vadd.f32 %v1727, %v1728
    %v1730 = vrot.slane %v1729, 4
    %v1731 = vadd.f32 %v1729, %v1730
    %v1732 = vrot.slane %v1731, 2
    %v1733 = vadd.f32 %v1731, %v1732
    %v1734 = vrot.slane %v1733, 1
    %v1735 = vadd.f32 %v1733, %v1734
    %v1736 = vmul.f32 %v1735, %v310
    %v1737 = vadd.f32 %v1736, 1e-05
    %v1738 = vrsqrt.pop %v1737
    %v1739 = vmul.f32 %v1714, %v1738
    %v1740 = vmul.f32 %v1724, %v1739
    %v1741 = vsub.f32 %v1716, %v1740
    %v1743 = vlaneseq
    %v1744 = vshrl.u32 %v1743, 7
    %v1745 = vsub.s32 0, %v1744
    %v1746 = vrot.slane %v1739, %v1745
    %v1748 = vmul.f32 %v1705, %v1746
    %v1749 = vmul.f32 %v1710, %v1746
    %v1751 = vlaneseq
    %v1752 = vshrl.u32 %v1751, 7
    %v1753 = vsub.s32 0, %v1752
    %v1754 = vrot.slane %v1741, %v1753
    %v1756 = vadd.f32 %v1748, %v1754
    %v1757 = vadd.f32 %v1749, %v1754
    %v1758 = vxor.u32 %v1756, 2147483648
    %v1759 = vxor.u32 %v1757, 2147483648
    %v1760 = vmul.f32 %v1758, 1.442695
    %v1761 = vpow.pop %v1760
    %v1762 = vmul.f32 %v1759, 1.442695
    %v1763 = vpow.pop %v1762
    %v1764 = vadd.f32 %v1761, 1.0
    %v1765 = vadd.f32 %v1763, 1.0
    %v1766 = vrcp.pop %v1764
    %v1767 = vmul.f32 1.0, %v1766
    %v1768 = vrcp.pop %v1765
    %v1769 = vmul.f32 1.0, %v1768
    %s1770 = scalar_lea.vmem [#allocation13], 512
    %v1771 = vld [vmem:[%s1770] sm:$0xff]
    %v1772 = vld [vmem:[%s1770 + $0x8] sm:$0xff]
    %v1773 = vld [vmem:[%s1770 + $0x10] sm:$0xff]
    %v1774 = vld [vmem:[%s1770 + $0x18] sm:$0xff]
    %v1775 = vld [vmem:[%s1770 + $0x20] sm:$0xff]
    %v1776 = vld [vmem:[%s1770 + $0x28] sm:$0xff]
    %v1777 = vld [vmem:[%s1770 + $0x30] sm:$0xff]
    %v1778 = vld [vmem:[%s1770 + $0x38] sm:$0xff]
    %v1779 = vld [vmem:[%s1770 + $0x40] sm:$0xff]
    %v1780 = vld [vmem:[%s1770 + $0x48] sm:$0xff]
    %v1781 = vld [vmem:[%s1770 + $0x50] sm:$0xff]
    %v1782 = vld [vmem:[%s1770 + $0x58] sm:$0xff]
    %v1783 = vld [vmem:[%s1770 + $0x60] sm:$0xff]
    %v1784 = vld [vmem:[%s1770 + $0x68] sm:$0xff]
    %v1785 = vld [vmem:[%s1770 + $0x70] sm:$0xff]
    %v1786 = vld [vmem:[%s1770 + $0x78] sm:$0xff]
    %s1787 = scalar_lea.vmem %s10, 4
    %v1788 = vld [vmem:[%s1787] sm:$0x1]
    %v1790 = vlaneseq
    %v1791 = vshrl.u32 %v1790, 7
    %v1792 = vsub.s32 0, %v1791
    %v1793 = vrot.slane %v1788, %v1792
    %1795 = vmatprep.subr.mxu0 0.0
    %1796 = vmatpush1.msra.mxu0 %v1771
    %1797 = vmatprep.subr.mxu0 0.0
    %1798 = vmatpush1.msra.mxu0 %v1772
    %1799 = vmatprep.subr.mxu0 0.0
    %1800 = vmatpush1.msra.mxu0 %v1773
    %1801 = vmatprep.subr.mxu0 0.0
    %1802 = vmatpush1.msra.mxu0 %v1774
    %1803 = vmatprep.subr.mxu0 0.0
    %1804 = vmatpush1.msra.mxu0 %v1775
    %1805 = vmatprep.subr.mxu0 0.0
    %1806 = vmatpush1.msra.mxu0 %v1776
    %1807 = vmatprep.subr.mxu0 0.0
    %1808 = vmatpush1.msra.mxu0 %v1777
    %1809 = vmatprep.subr.mxu0 0.0
    %1810 = vmatpush1.msra.mxu0 %v1778
    %1811 = vmatprep.subr.mxu0 0.0
    %1812 = vmatpush1.msra.mxu0 %v1779
    %1813 = vmatprep.subr.mxu0 0.0
    %1814 = vmatpush1.msra.mxu0 %v1780
    %1815 = vmatprep.subr.mxu0 0.0
    %1816 = vmatpush1.msra.mxu0 %v1781
    %1817 = vmatprep.subr.mxu0 0.0
    %1818 = vmatpush1.msra.mxu0 %v1782
    %1819 = vmatprep.subr.mxu0 0.0
    %1820 = vmatpush1.msra.mxu0 %v1783
    %1821 = vmatprep.subr.mxu0 0.0
    %1822 = vmatpush1.msra.mxu0 %v1784
    %1823 = vmatprep.subr.mxu0 0.0
    %1824 = vmatpush1.msra.mxu0 %v1785
    %1825 = vmatprep.subr.mxu0 0.0
    %1826 = vmatpush1.msra.mxu0 %v1786
    %1827 = vmatprep.subr.mxu0 0.0
    %1828 = vmatpush1.msra.mxu0 0.0
    %1829 = vmatprep.subr.mxu0 0.0
    %1830 = vmatpush1.msra.mxu0 0.0
    %1831 = vmatprep.subr.mxu0 0.0
    %1832 = vmatpush1.msra.mxu0 0.0
    %1833 = vmatprep.subr.mxu0 0.0
    %1834 = vmatpush1.msra.mxu0 0.0
    %1835 = vmatprep.subr.mxu0 0.0
    %1836 = vmatpush1.msra.mxu0 0.0
    %1837 = vmatprep.subr.mxu0 0.0
    %1838 = vmatpush1.msra.mxu0 0.0
    %1839 = vmatprep.subr.mxu0 0.0
    %1840 = vmatpush1.msra.mxu0 0.0
    %1841 = vmatprep.subr.mxu0 0.0
    %1842 = vmatpush1.msra.mxu0 0.0
    %1843 = vmatprep.subr.mxu0 0.0
    %1844 = vmatpush1.msra.mxu0 0.0
    %1845 = vmatprep.subr.mxu0 0.0
    %1846 = vmatpush1.msra.mxu0 0.0
    %1847 = vmatprep.subr.mxu0 0.0
    %1848 = vmatpush1.msra.mxu0 0.0
    %1849 = vmatprep.subr.mxu0 0.0
    %1850 = vmatpush1.msra.mxu0 0.0
    %1851 = vmatprep.subr.mxu0 0.0
    %1852 = vmatpush1.msra.mxu0 0.0
    %1853 = vmatprep.subr.mxu0 0.0
    %1854 = vmatpush1.msra.mxu0 0.0
    %1855 = vmatprep.subr.mxu0 0.0
    %1856 = vmatpush1.msra.mxu0 0.0
    %1857 = vmatprep.subr.mxu0 0.0
    %1858 = vmatpush1.msra.mxu0 0.0
    %1859 = vmatprep.mubr.f32.mxu0 0.0
    %1860 = vmatmul.mubr.f32.gmra.mrb[0].mxu0 %v1767
    %v1861 = vpop.f32.mrb[0].mxu0
    %v1862 = vadd.f32 %v1793, %v1861
    %v1863 = vpop.f32.mrb[0].mxu0
    %1864 = vmatprep.mubr.f32.mxu0 0.0
    %1865 = vmatmul.mubr.f32.gmra.mrb[0].mxu0 %v1769
    %v1866 = vpop.f32.mrb[0].mxu0
    %v1867 = vadd.f32 %v1793, %v1866
    %v1868 = vpop.f32.mrb[0].mxu0
    %1869 = vdwg.mxu0
    %s1870 = scalar_lea.vmem [#allocation14], 4
    %v1871 = vld [vmem:[%s1870] sm:$0x1]
    %s1872 = scalar_lea.vmem [#allocation16], 4
    %v1873 = vld [vmem:[%s1872] sm:$0x1]
    %v1874 = vadd.f32 %v1862, %v1867
    %v1875 = vrot.slane %v1874, 4
    %v1876 = vadd.f32 %v1874, %v1875
    %v1877 = vrot.slane %v1876, 2
    %v1878 = vadd.f32 %v1876, %v1877
    %v1879 = vrot.slane %v1878, 1
    %v1880 = vadd.f32 %v1878, %v1879
    %v1881 = vmul.f32 %v1880, %v310
    %v1882 = vsub.f32 %v1862, %v1881
    %v1883 = vsub.f32 %v1867, %v1881
    %v1884 = vmul.f32 %v1882, %v1882
    %v1885 = vmul.f32 %v1883, %v1883
    %v1886 = vadd.f32 %v1884, %v1885
    %v1887 = vrot.slane %v1886, 4
    %v1888 = vadd.f32 %v1886, %v1887
    %v1889 = vrot.slane %v1888, 2
    %v1890 = vadd.f32 %v1888, %v1889
    %v1891 = vrot.slane %v1890, 1
    %v1892 = vadd.f32 %v1890, %v1891
    %v1893 = vmul.f32 %v1892, %v310
    %v1894 = vadd.f32 %v1893, 1e-05
    %v1895 = vrsqrt.pop %v1894
    %v1896 = vmul.f32 %v1871, %v1895
    %v1897 = vmul.f32 %v1881, %v1896
    %v1898 = vsub.f32 %v1873, %v1897
    %v1900 = vlaneseq
    %v1901 = vshrl.u32 %v1900, 7
    %v1902 = vsub.s32 0, %v1901
    %v1903 = vrot.slane %v1896, %v1902
    %v1905 = vmul.f32 %v1862, %v1903
    %v1906 = vmul.f32 %v1867, %v1903
    %v1908 = vlaneseq
    %v1909 = vshrl.u32 %v1908, 7
    %v1910 = vsub.s32 0, %v1909
    %v1911 = vrot.slane %v1898, %v1910
    %v1913 = vadd.f32 %v1905, %v1911
    %v1914 = vadd.f32 %v1906, %v1911
    %v1915 = vadd.f32 %v1913, %v1610
    %v1916 = vadd.f32 %v1914, %v1612
    %v1917 = vxor.u32 %v1915, 2147483648
    %v1918 = vxor.u32 %v1916, 2147483648
    %v1919 = vmul.f32 %v1917, 1.442695
    %v1920 = vpow.pop %v1919
    %v1921 = vmul.f32 %v1918, 1.442695
    %v1922 = vpow.pop %v1921
    %v1923 = vadd.f32 %v1920, 1.0
    %v1924 = vadd.f32 %v1922, 1.0
    %v1925 = vrcp.pop %v1923
    %v1926 = vmul.f32 1.0, %v1925
    %v1927 = vrcp.pop %v1924
    %v1928 = vmul.f32 1.0, %v1927
    %s1929 = scalar_lea.vmem [#allocation10], 640
    %v1930 = vld [vmem:[%s1929] sm:$0xff]
    %v1931 = vld [vmem:[%s1929 + $0x8] sm:$0xff]
    %v1932 = vld [vmem:[%s1929 + $0x10] sm:$0xff]
    %v1933 = vld [vmem:[%s1929 + $0x18] sm:$0xff]
    %v1934 = vld [vmem:[%s1929 + $0x20] sm:$0xff]
    %v1935 = vld [vmem:[%s1929 + $0x28] sm:$0xff]
    %v1936 = vld [vmem:[%s1929 + $0x30] sm:$0xff]
    %v1937 = vld [vmem:[%s1929 + $0x38] sm:$0xff]
    %v1938 = vld [vmem:[%s1929 + $0x40] sm:$0xff]
    %v1939 = vld [vmem:[%s1929 + $0x48] sm:$0xff]
    %v1940 = vld [vmem:[%s1929 + $0x50] sm:$0xff]
    %v1941 = vld [vmem:[%s1929 + $0x58] sm:$0xff]
    %v1942 = vld [vmem:[%s1929 + $0x60] sm:$0xff]
    %v1943 = vld [vmem:[%s1929 + $0x68] sm:$0xff]
    %v1944 = vld [vmem:[%s1929 + $0x70] sm:$0xff]
    %v1945 = vld [vmem:[%s1929 + $0x78] sm:$0xff]
    %s1946 = scalar_lea.vmem %s6, 5
    %v1947 = vld [vmem:[%s1946] sm:$0x1]
    %v1949 = vlaneseq
    %v1950 = vshrl.u32 %v1949, 7
    %v1951 = vsub.s32 0, %v1950
    %v1952 = vrot.slane %v1947, %v1951
    %1954 = vmatprep.subr.mxu0 0.0
    %1955 = vmatpush1.msra.mxu0 %v1930
    %1956 = vmatprep.subr.mxu0 0.0
    %1957 = vmatpush1.msra.mxu0 %v1931
    %1958 = vmatprep.subr.mxu0 0.0
    %1959 = vmatpush1.msra.mxu0 %v1932
    %1960 = vmatprep.subr.mxu0 0.0
    %1961 = vmatpush1.msra.mxu0 %v1933
    %1962 = vmatprep.subr.mxu0 0.0
    %1963 = vmatpush1.msra.mxu0 %v1934
    %1964 = vmatprep.subr.mxu0 0.0
    %1965 = vmatpush1.msra.mxu0 %v1935
    %1966 = vmatprep.subr.mxu0 0.0
    %1967 = vmatpush1.msra.mxu0 %v1936
    %1968 = vmatprep.subr.mxu0 0.0
    %1969 = vmatpush1.msra.mxu0 %v1937
    %1970 = vmatprep.subr.mxu0 0.0
    %1971 = vmatpush1.msra.mxu0 %v1938
    %1972 = vmatprep.subr.mxu0 0.0
    %1973 = vmatpush1.msra.mxu0 %v1939
    %1974 = vmatprep.subr.mxu0 0.0
    %1975 = vmatpush1.msra.mxu0 %v1940
    %1976 = vmatprep.subr.mxu0 0.0
    %1977 = vmatpush1.msra.mxu0 %v1941
    %1978 = vmatprep.subr.mxu0 0.0
    %1979 = vmatpush1.msra.mxu0 %v1942
    %1980 = vmatprep.subr.mxu0 0.0
    %1981 = vmatpush1.msra.mxu0 %v1943
    %1982 = vmatprep.subr.mxu0 0.0
    %1983 = vmatpush1.msra.mxu0 %v1944
    %1984 = vmatprep.subr.mxu0 0.0
    %1985 = vmatpush1.msra.mxu0 %v1945
    %1986 = vmatprep.subr.mxu0 0.0
    %1987 = vmatpush1.msra.mxu0 0.0
    %1988 = vmatprep.subr.mxu0 0.0
    %1989 = vmatpush1.msra.mxu0 0.0
    %1990 = vmatprep.subr.mxu0 0.0
    %1991 = vmatpush1.msra.mxu0 0.0
    %1992 = vmatprep.subr.mxu0 0.0
    %1993 = vmatpush1.msra.mxu0 0.0
    %1994 = vmatprep.subr.mxu0 0.0
    %1995 = vmatpush1.msra.mxu0 0.0
    %1996 = vmatprep.subr.mxu0 0.0
    %1997 = vmatpush1.msra.mxu0 0.0
    %1998 = vmatprep.subr.mxu0 0.0
    %1999 = vmatpush1.msra.mxu0 0.0
    %2000 = vmatprep.subr.mxu0 0.0
    %2001 = vmatpush1.msra.mxu0 0.0
    %2002 = vmatprep.subr.mxu0 0.0
    %2003 = vmatpush1.msra.mxu0 0.0
    %2004 = vmatprep.subr.mxu0 0.0
    %2005 = vmatpush1.msra.mxu0 0.0
    %2006 = vmatprep.subr.mxu0 0.0
    %2007 = vmatpush1.msra.mxu0 0.0
    %2008 = vmatprep.subr.mxu0 0.0
    %2009 = vmatpush1.msra.mxu0 0.0
    %2010 = vmatprep.subr.mxu0 0.0
    %2011 = vmatpush1.msra.mxu0 0.0
    %2012 = vmatprep.subr.mxu0 0.0
    %2013 = vmatpush1.msra.mxu0 0.0
    %2014 = vmatprep.subr.mxu0 0.0
    %2015 = vmatpush1.msra.mxu0 0.0
    %2016 = vmatprep.subr.mxu0 0.0
    %2017 = vmatpush1.msra.mxu0 0.0
    %2018 = vmatprep.mubr.f32.mxu0 0.0
    %2019 = vmatmul.mubr.f32.gmra.mrb[0].mxu0 %v1926
    %v2020 = vpop.f32.mrb[0].mxu0
    %v2021 = vadd.f32 %v1952, %v2020
    %v2022 = vpop.f32.mrb[0].mxu0
    %2023 = vmatprep.mubr.f32.mxu0 0.0
    %2024 = vmatmul.mubr.f32.gmra.mrb[0].mxu0 %v1928
    %v2025 = vpop.f32.mrb[0].mxu0
    %v2026 = vadd.f32 %v1952, %v2025
    %v2027 = vpop.f32.mrb[0].mxu0
    %2028 = vdwg.mxu0
    %s2029 = scalar_lea.vmem %s7, 5
    %v2030 = vld [vmem:[%s2029] sm:$0x1]
    %s2031 = scalar_lea.vmem [#allocation11], 5
    %v2032 = vld [vmem:[%s2031] sm:$0x1]
    %v2033 = vadd.f32 %v2021, %v2026
    %v2034 = vrot.slane %v2033, 4
    %v2035 = vadd.f32 %v2033, %v2034
    %v2036 = vrot.slane %v2035, 2
    %v2037 = vadd.f32 %v2035, %v2036
    %v2038 = vrot.slane %v2037, 1
    %v2039 = vadd.f32 %v2037, %v2038
    %v2040 = vmul.f32 %v2039, %v310
    %v2041 = vsub.f32 %v2021, %v2040
    %v2042 = vsub.f32 %v2026, %v2040
    %v2043 = vmul.f32 %v2041, %v2041
    %v2044 = vmul.f32 %v2042, %v2042
    %v2045 = vadd.f32 %v2043, %v2044
    %v2046 = vrot.slane %v2045, 4
    %v2047 = vadd.f32 %v2045, %v2046
    %v2048 = vrot.slane %v2047, 2
    %v2049 = vadd.f32 %v2047, %v2048
    %v2050 = vrot.slane %v2049, 1
    %v2051 = vadd.f32 %v2049, %v2050
    %v2052 = vmul.f32 %v2051, %v310
    %v2053 = vadd.f32 %v2052, 1e-05
    %v2054 = vrsqrt.pop %v2053
    %v2055 = vmul.f32 %v2030, %v2054
    %v2056 = vmul.f32 %v2040, %v2055
    %v2057 = vsub.f32 %v2032, %v2056
    %v2059 = vlaneseq
    %v2060 = vshrl.u32 %v2059, 7
    %v2061 = vsub.s32 0, %v2060
    %v2062 = vrot.slane %v2055, %v2061
    %v2064 = vmul.f32 %v2021, %v2062
    %v2065 = vmul.f32 %v2026, %v2062
    %v2067 = vlaneseq
    %v2068 = vshrl.u32 %v2067, 7
    %v2069 = vsub.s32 0, %v2068
    %v2070 = vrot.slane %v2057, %v2069
    %v2072 = vadd.f32 %v2064, %v2070
    %v2073 = vadd.f32 %v2065, %v2070
    %v2074 = vxor.u32 %v2072, 2147483648
    %v2075 = vxor.u32 %v2073, 2147483648
    %v2076 = vmul.f32 %v2074, 1.442695
    %v2077 = vpow.pop %v2076
    %v2078 = vmul.f32 %v2075, 1.442695
    %v2079 = vpow.pop %v2078
    %v2080 = vadd.f32 %v2077, 1.0
    %v2081 = vadd.f32 %v2079, 1.0
    %v2082 = vrcp.pop %v2080
    %v2083 = vmul.f32 1.0, %v2082
    %v2084 = vrcp.pop %v2081
    %v2085 = vmul.f32 1.0, %v2084
    %s2086 = scalar_lea.vmem [#allocation13], 640
    %v2087 = vld [vmem:[%s2086] sm:$0xff]
    %v2088 = vld [vmem:[%s2086 + $0x8] sm:$0xff]
    %v2089 = vld [vmem:[%s2086 + $0x10] sm:$0xff]
    %v2090 = vld [vmem:[%s2086 + $0x18] sm:$0xff]
    %v2091 = vld [vmem:[%s2086 + $0x20] sm:$0xff]
    %v2092 = vld [vmem:[%s2086 + $0x28] sm:$0xff]
    %v2093 = vld [vmem:[%s2086 + $0x30] sm:$0xff]
    %v2094 = vld [vmem:[%s2086 + $0x38] sm:$0xff]
    %v2095 = vld [vmem:[%s2086 + $0x40] sm:$0xff]
    %v2096 = vld [vmem:[%s2086 + $0x48] sm:$0xff]
    %v2097 = vld [vmem:[%s2086 + $0x50] sm:$0xff]
    %v2098 = vld [vmem:[%s2086 + $0x58] sm:$0xff]
    %v2099 = vld [vmem:[%s2086 + $0x60] sm:$0xff]
    %v2100 = vld [vmem:[%s2086 + $0x68] sm:$0xff]
    %v2101 = vld [vmem:[%s2086 + $0x70] sm:$0xff]
    %v2102 = vld [vmem:[%s2086 + $0x78] sm:$0xff]
    %s2103 = scalar_lea.vmem %s10, 5
    %v2104 = vld [vmem:[%s2103] sm:$0x1]
    %v2106 = vlaneseq
    %v2107 = vshrl.u32 %v2106, 7
    %v2108 = vsub.s32 0, %v2107
    %v2109 = vrot.slane %v2104, %v2108
    %2111 = vmatprep.subr.mxu0 0.0
    %2112 = vmatpush1.msra.mxu0 %v2087
    %2113 = vmatprep.subr.mxu0 0.0
    %2114 = vmatpush1.msra.mxu0 %v2088
    %2115 = vmatprep.subr.mxu0 0.0
    %2116 = vmatpush1.msra.mxu0 %v2089
    %2117 = vmatprep.subr.mxu0 0.0
    %2118 = vmatpush1.msra.mxu0 %v2090
    %2119 = vmatprep.subr.mxu0 0.0
    %2120 = vmatpush1.msra.mxu0 %v2091
    %2121 = vmatprep.subr.mxu0 0.0
    %2122 = vmatpush1.msra.mxu0 %v2092
    %2123 = vmatprep.subr.mxu0 0.0
    %2124 = vmatpush1.msra.mxu0 %v2093
    %2125 = vmatprep.subr.mxu0 0.0
    %2126 = vmatpush1.msra.mxu0 %v2094
    %2127 = vmatprep.subr.mxu0 0.0
    %2128 = vmatpush1.msra.mxu0 %v2095
    %2129 = vmatprep.subr.mxu0 0.0
    %2130 = vmatpush1.msra.mxu0 %v2096
    %2131 = vmatprep.subr.mxu0 0.0
    %2132 = vmatpush1.msra.mxu0 %v2097
    %2133 = vmatprep.subr.mxu0 0.0
    %2134 = vmatpush1.msra.mxu0 %v2098
    %2135 = vmatprep.subr.mxu0 0.0
    %2136 = vmatpush1.msra.mxu0 %v2099
    %2137 = vmatprep.subr.mxu0 0.0
    %2138 = vmatpush1.msra.mxu0 %v2100
    %2139 = vmatprep.subr.mxu0 0.0
    %2140 = vmatpush1.msra.mxu0 %v2101
    %2141 = vmatprep.subr.mxu0 0.0
    %2142 = vmatpush1.msra.mxu0 %v2102
    %2143 = vmatprep.subr.mxu0 0.0
    %2144 = vmatpush1.msra.mxu0 0.0
    %2145 = vmatprep.subr.mxu0 0.0
    %2146 = vmatpush1.msra.mxu0 0.0
    %2147 = vmatprep.subr.mxu0 0.0
    %2148 = vmatpush1.msra.mxu0 0.0
    %2149 = vmatprep.subr.mxu0 0.0
    %2150 = vmatpush1.msra.mxu0 0.0
    %2151 = vmatprep.subr.mxu0 0.0
    %2152 = vmatpush1.msra.mxu0 0.0
    %2153 = vmatprep.subr.mxu0 0.0
    %2154 = vmatpush1.msra.mxu0 0.0
    %2155 = vmatprep.subr.mxu0 0.0
    %2156 = vmatpush1.msra.mxu0 0.0
    %2157 = vmatprep.subr.mxu0 0.0
    %2158 = vmatpush1.msra.mxu0 0.0
    %2159 = vmatprep.subr.mxu0 0.0
    %2160 = vmatpush1.msra.mxu0 0.0
    %2161 = vmatprep.subr.mxu0 0.0
    %2162 = vmatpush1.msra.mxu0 0.0
    %2163 = vmatprep.subr.mxu0 0.0
    %2164 = vmatpush1.msra.mxu0 0.0
    %2165 = vmatprep.subr.mxu0 0.0
    %2166 = vmatpush1.msra.mxu0 0.0
    %2167 = vmatprep.subr.mxu0 0.0
    %2168 = vmatpush1.msra.mxu0 0.0
    %2169 = vmatprep.subr.mxu0 0.0
    %2170 = vmatpush1.msra.mxu0 0.0
    %2171 = vmatprep.subr.mxu0 0.0
    %2172 = vmatpush1.msra.mxu0 0.0
    %2173 = vmatprep.subr.mxu0 0.0
    %2174 = vmatpush1.msra.mxu0 0.0
    %2175 = vmatprep.mubr.f32.mxu0 0.0
    %2176 = vmatmul.mubr.f32.gmra.mrb[0].mxu0 %v2083
    %v2177 = vpop.f32.mrb[0].mxu0
    %v2178 = vadd.f32 %v2109, %v2177
    %v2179 = vpop.f32.mrb[0].mxu0
    %2180 = vmatprep.mubr.f32.mxu0 0.0
    %2181 = vmatmul.mubr.f32.gmra.mrb[0].mxu0 %v2085
    %v2182 = vpop.f32.mrb[0].mxu0
    %v2183 = vadd.f32 %v2109, %v2182
    %v2184 = vpop.f32.mrb[0].mxu0
    %2185 = vdwg.mxu0
    %s2186 = scalar_lea.vmem [#allocation14], 5
    %v2187 = vld [vmem:[%s2186] sm:$0x1]
    %s2188 = scalar_lea.vmem [#allocation16], 5
    %v2189 = vld [vmem:[%s2188] sm:$0x1]
    %v2190 = vadd.f32 %v2178, %v2183
    %v2191 = vrot.slane %v2190, 4
    %v2192 = vadd.f32 %v2190, %v2191
    %v2193 = vrot.slane %v2192, 2
    %v2194 = vadd.f32 %v2192, %v2193
    %v2195 = vrot.slane %v2194, 1
    %v2196 = vadd.f32 %v2194, %v2195
    %v2197 = vmul.f32 %v2196, %v310
    %v2198 = vsub.f32 %v2178, %v2197
    %v2199 = vsub.f32 %v2183, %v2197
    %v2200 = vmul.f32 %v2198, %v2198
    %v2201 = vmul.f32 %v2199, %v2199
    %v2202 = vadd.f32 %v2200, %v2201
    %v2203 = vrot.slane %v2202, 4
    %v2204 = vadd.f32 %v2202, %v2203
    %v2205 = vrot.slane %v2204, 2
    %v2206 = vadd.f32 %v2204, %v2205
    %v2207 = vrot.slane %v2206, 1
    %v2208 = vadd.f32 %v2206, %v2207
    %v2209 = vmul.f32 %v2208, %v310
    %v2210 = vadd.f32 %v2209, 1e-05
    %v2211 = vrsqrt.pop %v2210
    %v2212 = vmul.f32 %v2187, %v2211
    %v2213 = vmul.f32 %v2197, %v2212
    %v2214 = vsub.f32 %v2189, %v2213
    %v2216 = vlaneseq
    %v2217 = vshrl.u32 %v2216, 7
    %v2218 = vsub.s32 0, %v2217
    %v2219 = vrot.slane %v2212, %v2218
    %v2221 = vmul.f32 %v2178, %v2219
    %v2222 = vmul.f32 %v2183, %v2219
    %v2224 = vlaneseq
    %v2225 = vshrl.u32 %v2224, 7
    %v2226 = vsub.s32 0, %v2225
    %v2227 = vrot.slane %v2214, %v2226
    %v2229 = vadd.f32 %v2221, %v2227
    %v2230 = vadd.f32 %v2222, %v2227
    %v2231 = vadd.f32 %v2229, %v1926
    %v2232 = vadd.f32 %v2230, %v1928
    %v2233 = vxor.u32 %v2231, 2147483648
    %v2234 = vxor.u32 %v2232, 2147483648
    %v2235 = vmul.f32 %v2233, 1.442695
    %v2236 = vpow.pop %v2235
    %v2237 = vmul.f32 %v2234, 1.442695
    %v2238 = vpow.pop %v2237
    %v2239 = vadd.f32 %v2236, 1.0
    %v2240 = vadd.f32 %v2238, 1.0
    %v2241 = vrcp.pop %v2239
    %v2242 = vmul.f32 1.0, %v2241
    %v2243 = vrcp.pop %v2240
    %v2244 = vmul.f32 1.0, %v2243
    %s2245 = scalar_lea.vmem [#allocation10], 768
    %v2246 = vld [vmem:[%s2245] sm:$0xff]
    %v2247 = vld [vmem:[%s2245 + $0x8] sm:$0xff]
    %v2248 = vld [vmem:[%s2245 + $0x10] sm:$0xff]
    %v2249 = vld [vmem:[%s2245 + $0x18] sm:$0xff]
    %v2250 = vld [vmem:[%s2245 + $0x20] sm:$0xff]
    %v2251 = vld [vmem:[%s2245 + $0x28] sm:$0xff]
    %v2252 = vld [vmem:[%s2245 + $0x30] sm:$0xff]
    %v2253 = vld [vmem:[%s2245 + $0x38] sm:$0xff]
    %v2254 = vld [vmem:[%s2245 + $0x40] sm:$0xff]
    %v2255 = vld [vmem:[%s2245 + $0x48] sm:$0xff]
    %v2256 = vld [vmem:[%s2245 + $0x50] sm:$0xff]
    %v2257 = vld [vmem:[%s2245 + $0x58] sm:$0xff]
    %v2258 = vld [vmem:[%s2245 + $0x60] sm:$0xff]
    %v2259 = vld [vmem:[%s2245 + $0x68] sm:$0xff]
    %v2260 = vld [vmem:[%s2245 + $0x70] sm:$0xff]
    %v2261 = vld [vmem:[%s2245 + $0x78] sm:$0xff]
    %s2262 = scalar_lea.vmem %s6, 6
    %v2263 = vld [vmem:[%s2262] sm:$0x1]
    %v2265 = vlaneseq
    %v2266 = vshrl.u32 %v2265, 7
    %v2267 = vsub.s32 0, %v2266
    %v2268 = vrot.slane %v2263, %v2267
    %2270 = vmatprep.subr.mxu0 0.0
    %2271 = vmatpush1.msra.mxu0 %v2246
    %2272 = vmatprep.subr.mxu0 0.0
    %2273 = vmatpush1.msra.mxu0 %v2247
    %2274 = vmatprep.subr.mxu0 0.0
    %2275 = vmatpush1.msra.mxu0 %v2248
    %2276 = vmatprep.subr.mxu0 0.0
    %2277 = vmatpush1.msra.mxu0 %v2249
    %2278 = vmatprep.subr.mxu0 0.0
    %2279 = vmatpush1.msra.mxu0 %v2250
    %2280 = vmatprep.subr.mxu0 0.0
    %2281 = vmatpush1.msra.mxu0 %v2251
    %2282 = vmatprep.subr.mxu0 0.0
    %2283 = vmatpush1.msra.mxu0 %v2252
    %2284 = vmatprep.subr.mxu0 0.0
    %2285 = vmatpush1.msra.mxu0 %v2253
    %2286 = vmatprep.subr.mxu0 0.0
    %2287 = vmatpush1.msra.mxu0 %v2254
    %2288 = vmatprep.subr.mxu0 0.0
    %2289 = vmatpush1.msra.mxu0 %v2255
    %2290 = vmatprep.subr.mxu0 0.0
    %2291 = vmatpush1.msra.mxu0 %v2256
    %2292 = vmatprep.subr.mxu0 0.0
    %2293 = vmatpush1.msra.mxu0 %v2257
    %2294 = vmatprep.subr.mxu0 0.0
    %2295 = vmatpush1.msra.mxu0 %v2258
    %2296 = vmatprep.subr.mxu0 0.0
    %2297 = vmatpush1.msra.mxu0 %v2259
    %2298 = vmatprep.subr.mxu0 0.0
    %2299 = vmatpush1.msra.mxu0 %v2260
    %2300 = vmatprep.subr.mxu0 0.0
    %2301 = vmatpush1.msra.mxu0 %v2261
    %2302 = vmatprep.subr.mxu0 0.0
    %2303 = vmatpush1.msra.mxu0 0.0
    %2304 = vmatprep.subr.mxu0 0.0
    %2305 = vmatpush1.msra.mxu0 0.0
    %2306 = vmatprep.subr.mxu0 0.0
    %2307 = vmatpush1.msra.mxu0 0.0
    %2308 = vmatprep.subr.mxu0 0.0
    %2309 = vmatpush1.msra.mxu0 0.0
    %2310 = vmatprep.subr.mxu0 0.0
    %2311 = vmatpush1.msra.mxu0 0.0
    %2312 = vmatprep.subr.mxu0 0.0
    %2313 = vmatpush1.msra.mxu0 0.0
    %2314 = vmatprep.subr.mxu0 0.0
    %2315 = vmatpush1.msra.mxu0 0.0
    %2316 = vmatprep.subr.mxu0 0.0
    %2317 = vmatpush1.msra.mxu0 0.0
    %2318 = vmatprep.subr.mxu0 0.0
    %2319 = vmatpush1.msra.mxu0 0.0
    %2320 = vmatprep.subr.mxu0 0.0
    %2321 = vmatpush1.msra.mxu0 0.0
    %2322 = vmatprep.subr.mxu0 0.0
    %2323 = vmatpush1.msra.mxu0 0.0
    %2324 = vmatprep.subr.mxu0 0.0
    %2325 = vmatpush1.msra.mxu0 0.0
    %2326 = vmatprep.subr.mxu0 0.0
    %2327 = vmatpush1.msra.mxu0 0.0
    %2328 = vmatprep.subr.mxu0 0.0
    %2329 = vmatpush1.msra.mxu0 0.0
    %2330 = vmatprep.subr.mxu0 0.0
    %2331 = vmatpush1.msra.mxu0 0.0
    %2332 = vmatprep.subr.mxu0 0.0
    %2333 = vmatpush1.msra.mxu0 0.0
    %2334 = vmatprep.mubr.f32.mxu0 0.0
    %2335 = vmatmul.mubr.f32.gmra.mrb[0].mxu0 %v2242
    %v2336 = vpop.f32.mrb[0].mxu0
    %v2337 = vadd.f32 %v2268, %v2336
    %v2338 = vpop.f32.mrb[0].mxu0
    %2339 = vmatprep.mubr.f32.mxu0 0.0
    %2340 = vmatmul.mubr.f32.gmra.mrb[0].mxu0 %v2244
    %v2341 = vpop.f32.mrb[0].mxu0
    %v2342 = vadd.f32 %v2268, %v2341
    %v2343 = vpop.f32.mrb[0].mxu0
    %2344 = vdwg.mxu0
    %s2345 = scalar_lea.vmem %s7, 6
    %v2346 = vld [vmem:[%s2345] sm:$0x1]
    %s2347 = scalar_lea.vmem [#allocation11], 6
    %v2348 = vld [vmem:[%s2347] sm:$0x1]
    %v2349 = vadd.f32 %v2337, %v2342
    %v2350 = vrot.slane %v2349, 4
    %v2351 = vadd.f32 %v2349, %v2350
    %v2352 = vrot.slane %v2351, 2
    %v2353 = vadd.f32 %v2351, %v2352
    %v2354 = vrot.slane %v2353, 1
    %v2355 = vadd.f32 %v2353, %v2354
    %v2356 = vmul.f32 %v2355, %v310
    %v2357 = vsub.f32 %v2337, %v2356
    %v2358 = vsub.f32 %v2342, %v2356
    %v2359 = vmul.f32 %v2357, %v2357
    %v2360 = vmul.f32 %v2358, %v2358
    %v2361 = vadd.f32 %v2359, %v2360
    %v2362 = vrot.slane %v2361, 4
    %v2363 = vadd.f32 %v2361, %v2362
    %v2364 = vrot.slane %v2363, 2
    %v2365 = vadd.f32 %v2363, %v2364
    %v2366 = vrot.slane %v2365, 1
    %v2367 = vadd.f32 %v2365, %v2366
    %v2368 = vmul.f32 %v2367, %v310
    %v2369 = vadd.f32 %v2368, 1e-05
    %v2370 = vrsqrt.pop %v2369
    %v2371 = vmul.f32 %v2346, %v2370
    %v2372 = vmul.f32 %v2356, %v2371
    %v2373 = vsub.f32 %v2348, %v2372
    %v2375 = vlaneseq
    %v2376 = vshrl.u32 %v2375, 7
    %v2377 = vsub.s32 0, %v2376
    %v2378 = vrot.slane %v2371, %v2377
    %v2380 = vmul.f32 %v2337, %v2378
    %v2381 = vmul.f32 %v2342, %v2378
    %v2383 = vlaneseq
    %v2384 = vshrl.u32 %v2383, 7
    %v2385 = vsub.s32 0, %v2384
    %v2386 = vrot.slane %v2373, %v2385
    %v2388 = vadd.f32 %v2380, %v2386
    %v2389 = vadd.f32 %v2381, %v2386
    %v2390 = vxor.u32 %v2388, 2147483648
    %v2391 = vxor.u32 %v2389, 2147483648
    %v2392 = vmul.f32 %v2390, 1.442695
    %v2393 = vpow.pop %v2392
    %v2394 = vmul.f32 %v2391, 1.442695
    %v2395 = vpow.pop %v2394
    %v2396 = vadd.f32 %v2393, 1.0
    %v2397 = vadd.f32 %v2395, 1.0
    %v2398 = vrcp.pop %v2396
    %v2399 = vmul.f32 1.0, %v2398
    %v2400 = vrcp.pop %v2397
    %v2401 = vmul.f32 1.0, %v2400
    %s2402 = scalar_lea.vmem [#allocation13], 768
    %v2403 = vld [vmem:[%s2402] sm:$0xff]
    %v2404 = vld [vmem:[%s2402 + $0x8] sm:$0xff]
    %v2405 = vld [vmem:[%s2402 + $0x10] sm:$0xff]
    %v2406 = vld [vmem:[%s2402 + $0x18] sm:$0xff]
    %v2407 = vld [vmem:[%s2402 + $0x20] sm:$0xff]
    %v2408 = vld [vmem:[%s2402 + $0x28] sm:$0xff]
    %v2409 = vld [vmem:[%s2402 + $0x30] sm:$0xff]
    %v2410 = vld [vmem:[%s2402 + $0x38] sm:$0xff]
    %v2411 = vld [vmem:[%s2402 + $0x40] sm:$0xff]
    %v2412 = vld [vmem:[%s2402 + $0x48] sm:$0xff]
    %v2413 = vld [vmem:[%s2402 + $0x50] sm:$0xff]
    %v2414 = vld [vmem:[%s2402 + $0x58] sm:$0xff]
    %v2415 = vld [vmem:[%s2402 + $0x60] sm:$0xff]
    %v2416 = vld [vmem:[%s2402 + $0x68] sm:$0xff]
    %v2417 = vld [vmem:[%s2402 + $0x70] sm:$0xff]
    %v2418 = vld [vmem:[%s2402 + $0x78] sm:$0xff]
    %s2419 = scalar_lea.vmem %s10, 6
    %v2420 = vld [vmem:[%s2419] sm:$0x1]
    %v2422 = vlaneseq
    %v2423 = vshrl.u32 %v2422, 7
    %v2424 = vsub.s32 0, %v2423
    %v2425 = vrot.slane %v2420, %v2424
    %2427 = vmatprep.subr.mxu0 0.0
    %2428 = vmatpush1.msra.mxu0 %v2403
    %2429 = vmatprep.subr.mxu0 0.0
    %2430 = vmatpush1.msra.mxu0 %v2404
    %2431 = vmatprep.subr.mxu0 0.0
    %2432 = vmatpush1.msra.mxu0 %v2405
    %2433 = vmatprep.subr.mxu0 0.0
    %2434 = vmatpush1.msra.mxu0 %v2406
    %2435 = vmatprep.subr.mxu0 0.0
    %2436 = vmatpush1.msra.mxu0 %v2407
    %2437 = vmatprep.subr.mxu0 0.0
    %2438 = vmatpush1.msra.mxu0 %v2408
    %2439 = vmatprep.subr.mxu0 0.0
    %2440 = vmatpush1.msra.mxu0 %v2409
    %2441 = vmatprep.subr.mxu0 0.0
    %2442 = vmatpush1.msra.mxu0 %v2410
    %2443 = vmatprep.subr.mxu0 0.0
    %2444 = vmatpush1.msra.mxu0 %v2411
    %2445 = vmatprep.subr.mxu0 0.0
    %2446 = vmatpush1.msra.mxu0 %v2412
    %2447 = vmatprep.subr.mxu0 0.0
    %2448 = vmatpush1.msra.mxu0 %v2413
    %2449 = vmatprep.subr.mxu0 0.0
    %2450 = vmatpush1.msra.mxu0 %v2414
    %2451 = vmatprep.subr.mxu0 0.0
    %2452 = vmatpush1.msra.mxu0 %v2415
    %2453 = vmatprep.subr.mxu0 0.0
    %2454 = vmatpush1.msra.mxu0 %v2416
    %2455 = vmatprep.subr.mxu0 0.0
    %2456 = vmatpush1.msra.mxu0 %v2417
    %2457 = vmatprep.subr.mxu0 0.0
    %2458 = vmatpush1.msra.mxu0 %v2418
    %2459 = vmatprep.subr.mxu0 0.0
    %2460 = vmatpush1.msra.mxu0 0.0
    %2461 = vmatprep.subr.mxu0 0.0
    %2462 = vmatpush1.msra.mxu0 0.0
    %2463 = vmatprep.subr.mxu0 0.0
    %2464 = vmatpush1.msra.mxu0 0.0
    %2465 = vmatprep.subr.mxu0 0.0
    %2466 = vmatpush1.msra.mxu0 0.0
    %2467 = vmatprep.subr.mxu0 0.0
    %2468 = vmatpush1.msra.mxu0 0.0
    %2469 = vmatprep.subr.mxu0 0.0
    %2470 = vmatpush1.msra.mxu0 0.0
    %2471 = vmatprep.subr.mxu0 0.0
    %2472 = vmatpush1.msra.mxu0 0.0
    %2473 = vmatprep.subr.mxu0 0.0
    %2474 = vmatpush1.msra.mxu0 0.0
    %2475 = vmatprep.subr.mxu0 0.0
    %2476 = vmatpush1.msra.mxu0 0.0
    %2477 = vmatprep.subr.mxu0 0.0
    %2478 = vmatpush1.msra.mxu0 0.0
    %2479 = vmatprep.subr.mxu0 0.0
    %2480 = vmatpush1.msra.mxu0 0.0
    %2481 = vmatprep.subr.mxu0 0.0
    %2482 = vmatpush1.msra.mxu0 0.0
    %2483 = vmatprep.subr.mxu0 0.0
    %2484 = vmatpush1.msra.mxu0 0.0
    %2485 = vmatprep.subr.mxu0 0.0
    %2486 = vmatpush1.msra.mxu0 0.0
    %2487 = vmatprep.subr.mxu0 0.0
    %2488 = vmatpush1.msra.mxu0 0.0
    %2489 = vmatprep.subr.mxu0 0.0
    %2490 = vmatpush1.msra.mxu0 0.0
    %2491 = vmatprep.mubr.f32.mxu0 0.0
    %2492 = vmatmul.mubr.f32.gmra.mrb[0].mxu0 %v2399
    %v2493 = vpop.f32.mrb[0].mxu0
    %v2494 = vadd.f32 %v2425, %v2493
    %v2495 = vpop.f32.mrb[0].mxu0
    %2496 = vmatprep.mubr.f32.mxu0 0.0
    %2497 = vmatmul.mubr.f32.gmra.mrb[0].mxu0 %v2401
    %v2498 = vpop.f32.mrb[0].mxu0
    %v2499 = vadd.f32 %v2425, %v2498
    %v2500 = vpop.f32.mrb[0].mxu0
    %2501 = vdwg.mxu0
    %s2502 = scalar_lea.vmem [#allocation14], 6
    %v2503 = vld [vmem:[%s2502] sm:$0x1]
    %s2504 = scalar_lea.vmem [#allocation16], 6
    %v2505 = vld [vmem:[%s2504] sm:$0x1]
    %v2506 = vadd.f32 %v2494, %v2499
    %v2507 = vrot.slane %v2506, 4
    %v2508 = vadd.f32 %v2506, %v2507
    %v2509 = vrot.slane %v2508, 2
    %v2510 = vadd.f32 %v2508, %v2509
    %v2511 = vrot.slane %v2510, 1
    %v2512 = vadd.f32 %v2510, %v2511
    %v2513 = vmul.f32 %v2512, %v310
    %v2514 = vsub.f32 %v2494, %v2513
    %v2515 = vsub.f32 %v2499, %v2513
    %v2516 = vmul.f32 %v2514, %v2514
    %v2517 = vmul.f32 %v2515, %v2515
    %v2518 = vadd.f32 %v2516, %v2517
    %v2519 = vrot.slane %v2518, 4
    %v2520 = vadd.f32 %v2518, %v2519
    %v2521 = vrot.slane %v2520, 2
    %v2522 = vadd.f32 %v2520, %v2521
    %v2523 = vrot.slane %v2522, 1
    %v2524 = vadd.f32 %v2522, %v2523
    %v2525 = vmul.f32 %v2524, %v310
    %v2526 = vadd.f32 %v2525, 1e-05
    %v2527 = vrsqrt.pop %v2526
    %v2528 = vmul.f32 %v2503, %v2527
    %v2529 = vmul.f32 %v2513, %v2528
    %v2530 = vsub.f32 %v2505, %v2529
    %v2532 = vlaneseq
    %v2533 = vshrl.u32 %v2532, 7
    %v2534 = vsub.s32 0, %v2533
    %v2535 = vrot.slane %v2528, %v2534
    %v2537 = vmul.f32 %v2494, %v2535
    %v2538 = vmul.f32 %v2499, %v2535
    %v2540 = vlaneseq
    %v2541 = vshrl.u32 %v2540, 7
    %v2542 = vsub.s32 0, %v2541
    %v2543 = vrot.slane %v2530, %v2542
    %v2545 = vadd.f32 %v2537, %v2543
    %v2546 = vadd.f32 %v2538, %v2543
    %v2547 = vadd.f32 %v2545, %v2242
    %v2548 = vadd.f32 %v2546, %v2244
    %v2549 = vxor.u32 %v2547, 2147483648
    %v2550 = vxor.u32 %v2548, 2147483648
    %v2551 = vmul.f32 %v2549, 1.442695
    %v2552 = vpow.pop %v2551
    %v2553 = vmul.f32 %v2550, 1.442695
    %v2554 = vpow.pop %v2553
    %v2555 = vadd.f32 %v2552, 1.0
    %v2556 = vadd.f32 %v2554, 1.0
    %v2557 = vrcp.pop %v2555
    %v2558 = vmul.f32 1.0, %v2557
    %v2559 = vrcp.pop %v2556
    %v2560 = vmul.f32 1.0, %v2559
    %s2561 = scalar_lea.vmem [#allocation10], 896
    %v2562 = vld [vmem:[%s2561] sm:$0xff]
    %v2563 = vld [vmem:[%s2561 + $0x8] sm:$0xff]
    %v2564 = vld [vmem:[%s2561 + $0x10] sm:$0xff]
    %v2565 = vld [vmem:[%s2561 + $0x18] sm:$0xff]
    %v2566 = vld [vmem:[%s2561 + $0x20] sm:$0xff]
    %v2567 = vld [vmem:[%s2561 + $0x28] sm:$0xff]
    %v2568 = vld [vmem:[%s2561 + $0x30] sm:$0xff]
    %v2569 = vld [vmem:[%s2561 + $0x38] sm:$0xff]
    %v2570 = vld [vmem:[%s2561 + $0x40] sm:$0xff]
    %v2571 = vld [vmem:[%s2561 + $0x48] sm:$0xff]
    %v2572 = vld [vmem:[%s2561 + $0x50] sm:$0xff]
    %v2573 = vld [vmem:[%s2561 + $0x58] sm:$0xff]
    %v2574 = vld [vmem:[%s2561 + $0x60] sm:$0xff]
    %v2575 = vld [vmem:[%s2561 + $0x68] sm:$0xff]
    %v2576 = vld [vmem:[%s2561 + $0x70] sm:$0xff]
    %v2577 = vld [vmem:[%s2561 + $0x78] sm:$0xff]
    %s2578 = scalar_lea.vmem %s6, 7
    %v2579 = vld [vmem:[%s2578] sm:$0x1]
    %v2581 = vlaneseq
    %v2582 = vshrl.u32 %v2581, 7
    %v2583 = vsub.s32 0, %v2582
    %v2584 = vrot.slane %v2579, %v2583
    %2586 = vmatprep.subr.mxu0 0.0
    %2587 = vmatpush1.msra.mxu0 %v2562
    %2588 = vmatprep.subr.mxu0 0.0
    %2589 = vmatpush1.msra.mxu0 %v2563
    %2590 = vmatprep.subr.mxu0 0.0
    %2591 = vmatpush1.msra.mxu0 %v2564
    %2592 = vmatprep.subr.mxu0 0.0
    %2593 = vmatpush1.msra.mxu0 %v2565
    %2594 = vmatprep.subr.mxu0 0.0
    %2595 = vmatpush1.msra.mxu0 %v2566
    %2596 = vmatprep.subr.mxu0 0.0
    %2597 = vmatpush1.msra.mxu0 %v2567
    %2598 = vmatprep.subr.mxu0 0.0
    %2599 = vmatpush1.msra.mxu0 %v2568
    %2600 = vmatprep.subr.mxu0 0.0
    %2601 = vmatpush1.msra.mxu0 %v2569
    %2602 = vmatprep.subr.mxu0 0.0
    %2603 = vmatpush1.msra.mxu0 %v2570
    %2604 = vmatprep.subr.mxu0 0.0
    %2605 = vmatpush1.msra.mxu0 %v2571
    %2606 = vmatprep.subr.mxu0 0.0
    %2607 = vmatpush1.msra.mxu0 %v2572
    %2608 = vmatprep.subr.mxu0 0.0
    %2609 = vmatpush1.msra.mxu0 %v2573
    %2610 = vmatprep.subr.mxu0 0.0
    %2611 = vmatpush1.msra.mxu0 %v2574
    %2612 = vmatprep.subr.mxu0 0.0
    %2613 = vmatpush1.msra.mxu0 %v2575
    %2614 = vmatprep.subr.mxu0 0.0
    %2615 = vmatpush1.msra.mxu0 %v2576
    %2616 = vmatprep.subr.mxu0 0.0
    %2617 = vmatpush1.msra.mxu0 %v2577
    %2618 = vmatprep.subr.mxu0 0.0
    %2619 = vmatpush1.msra.mxu0 0.0
    %2620 = vmatprep.subr.mxu0 0.0
    %2621 = vmatpush1.msra.mxu0 0.0
    %2622 = vmatprep.subr.mxu0 0.0
    %2623 = vmatpush1.msra.mxu0 0.0
    %2624 = vmatprep.subr.mxu0 0.0
    %2625 = vmatpush1.msra.mxu0 0.0
    %2626 = vmatprep.subr.mxu0 0.0
    %2627 = vmatpush1.msra.mxu0 0.0
    %2628 = vmatprep.subr.mxu0 0.0
    %2629 = vmatpush1.msra.mxu0 0.0
    %2630 = vmatprep.subr.mxu0 0.0
    %2631 = vmatpush1.msra.mxu0 0.0
    %2632 = vmatprep.subr.mxu0 0.0
    %2633 = vmatpush1.msra.mxu0 0.0
    %2634 = vmatprep.subr.mxu0 0.0
    %2635 = vmatpush1.msra.mxu0 0.0
    %2636 = vmatprep.subr.mxu0 0.0
    %2637 = vmatpush1.msra.mxu0 0.0
    %2638 = vmatprep.subr.mxu0 0.0
    %2639 = vmatpush1.msra.mxu0 0.0
    %2640 = vmatprep.subr.mxu0 0.0
    %2641 = vmatpush1.msra.mxu0 0.0
    %2642 = vmatprep.subr.mxu0 0.0
    %2643 = vmatpush1.msra.mxu0 0.0
    %2644 = vmatprep.subr.mxu0 0.0
    %2645 = vmatpush1.msra.mxu0 0.0
    %2646 = vmatprep.subr.mxu0 0.0
    %2647 = vmatpush1.msra.mxu0 0.0
    %2648 = vmatprep.subr.mxu0 0.0
    %2649 = vmatpush1.msra.mxu0 0.0
    %2650 = vmatprep.mubr.f32.mxu0 0.0
    %2651 = vmatmul.mubr.f32.gmra.mrb[0].mxu0 %v2558
    %v2652 = vpop.f32.mrb[0].mxu0
    %v2653 = vadd.f32 %v2584, %v2652
    %v2654 = vpop.f32.mrb[0].mxu0
    %2655 = vmatprep.mubr.f32.mxu0 0.0
    %2656 = vmatmul.mubr.f32.gmra.mrb[0].mxu0 %v2560
    %v2657 = vpop.f32.mrb[0].mxu0
    %v2658 = vadd.f32 %v2584, %v2657
    %v2659 = vpop.f32.mrb[0].mxu0
    %2660 = vdwg.mxu0
    %s2661 = scalar_lea.vmem %s7, 7
    %v2662 = vld [vmem:[%s2661] sm:$0x1]
    %s2663 = scalar_lea.vmem [#allocation11], 7
    %v2664 = vld [vmem:[%s2663] sm:$0x1]
    %v2665 = vadd.f32 %v2653, %v2658
    %v2666 = vrot.slane %v2665, 4
    %v2667 = vadd.f32 %v2665, %v2666
    %v2668 = vrot.slane %v2667, 2
    %v2669 = vadd.f32 %v2667, %v2668
    %v2670 = vrot.slane %v2669, 1
    %v2671 = vadd.f32 %v2669, %v2670
    %v2672 = vmul.f32 %v2671, %v310
    %v2673 = vsub.f32 %v2653, %v2672
    %v2674 = vsub.f32 %v2658, %v2672
    %v2675 = vmul.f32 %v2673, %v2673
    %v2676 = vmul.f32 %v2674, %v2674
    %v2677 = vadd.f32 %v2675, %v2676
    %v2678 = vrot.slane %v2677, 4
    %v2679 = vadd.f32 %v2677, %v2678
    %v2680 = vrot.slane %v2679, 2
    %v2681 = vadd.f32 %v2679, %v2680
    %v2682 = vrot.slane %v2681, 1
    %v2683 = vadd.f32 %v2681, %v2682
    %v2684 = vmul.f32 %v2683, %v310
    %v2685 = vadd.f32 %v2684, 1e-05
    %v2686 = vrsqrt.pop %v2685
    %v2687 = vmul.f32 %v2662, %v2686
    %v2688 = vmul.f32 %v2672, %v2687
    %v2689 = vsub.f32 %v2664, %v2688
    %v2691 = vlaneseq
    %v2692 = vshrl.u32 %v2691, 7
    %v2693 = vsub.s32 0, %v2692
    %v2694 = vrot.slane %v2687, %v2693
    %v2696 = vmul.f32 %v2653, %v2694
    %v2697 = vmul.f32 %v2658, %v2694
    %v2699 = vlaneseq
    %v2700 = vshrl.u32 %v2699, 7
    %v2701 = vsub.s32 0, %v2700
    %v2702 = vrot.slane %v2689, %v2701
    %v2704 = vadd.f32 %v2696, %v2702
    %v2705 = vadd.f32 %v2697, %v2702
    %v2706 = vxor.u32 %v2704, 2147483648
    %v2707 = vxor.u32 %v2705, 2147483648
    %v2708 = vmul.f32 %v2706, 1.442695
    %v2709 = vpow.pop %v2708
    %v2710 = vmul.f32 %v2707, 1.442695
    %v2711 = vpow.pop %v2710
    %v2712 = vadd.f32 %v2709, 1.0
    %v2713 = vadd.f32 %v2711, 1.0
    %v2714 = vrcp.pop %v2712
    %v2715 = vmul.f32 1.0, %v2714
    %v2716 = vrcp.pop %v2713
    %v2717 = vmul.f32 1.0, %v2716
    %s2718 = scalar_lea.vmem [#allocation13], 896
    %v2719 = vld [vmem:[%s2718] sm:$0xff]
    %v2720 = vld [vmem:[%s2718 + $0x8] sm:$0xff]
    %v2721 = vld [vmem:[%s2718 + $0x10] sm:$0xff]
    %v2722 = vld [vmem:[%s2718 + $0x18] sm:$0xff]
    %v2723 = vld [vmem:[%s2718 + $0x20] sm:$0xff]
    %v2724 = vld [vmem:[%s2718 + $0x28] sm:$0xff]
    %v2725 = vld [vmem:[%s2718 + $0x30] sm:$0xff]
    %v2726 = vld [vmem:[%s2718 + $0x38] sm:$0xff]
    %v2727 = vld [vmem:[%s2718 + $0x40] sm:$0xff]
    %v2728 = vld [vmem:[%s2718 + $0x48] sm:$0xff]
    %v2729 = vld [vmem:[%s2718 + $0x50] sm:$0xff]
    %v2730 = vld [vmem:[%s2718 + $0x58] sm:$0xff]
    %v2731 = vld [vmem:[%s2718 + $0x60] sm:$0xff]
    %v2732 = vld [vmem:[%s2718 + $0x68] sm:$0xff]
    %v2733 = vld [vmem:[%s2718 + $0x70] sm:$0xff]
    %v2734 = vld [vmem:[%s2718 + $0x78] sm:$0xff]
    %s2735 = scalar_lea.vmem %s10, 7
    %v2736 = vld [vmem:[%s2735] sm:$0x1]
    %v2738 = vlaneseq
    %v2739 = vshrl.u32 %v2738, 7
    %v2740 = vsub.s32 0, %v2739
    %v2741 = vrot.slane %v2736, %v2740
    %2743 = vmatprep.subr.mxu0 0.0
    %2744 = vmatpush1.msra.mxu0 %v2719
    %2745 = vmatprep.subr.mxu0 0.0
    %2746 = vmatpush1.msra.mxu0 %v2720
    %2747 = vmatprep.subr.mxu0 0.0
    %2748 = vmatpush1.msra.mxu0 %v2721
    %2749 = vmatprep.subr.mxu0 0.0
    %2750 = vmatpush1.msra.mxu0 %v2722
    %2751 = vmatprep.subr.mxu0 0.0
    %2752 = vmatpush1.msra.mxu0 %v2723
    %2753 = vmatprep.subr.mxu0 0.0
    %2754 = vmatpush1.msra.mxu0 %v2724
    %2755 = vmatprep.subr.mxu0 0.0
    %2756 = vmatpush1.msra.mxu0 %v2725
    %2757 = vmatprep.subr.mxu0 0.0
    %2758 = vmatpush1.msra.mxu0 %v2726
    %2759 = vmatprep.subr.mxu0 0.0
    %2760 = vmatpush1.msra.mxu0 %v2727
    %2761 = vmatprep.subr.mxu0 0.0
    %2762 = vmatpush1.msra.mxu0 %v2728
    %2763 = vmatprep.subr.mxu0 0.0
    %2764 = vmatpush1.msra.mxu0 %v2729
    %2765 = vmatprep.subr.mxu0 0.0
    %2766 = vmatpush1.msra.mxu0 %v2730
    %2767 = vmatprep.subr.mxu0 0.0
    %2768 = vmatpush1.msra.mxu0 %v2731
    %2769 = vmatprep.subr.mxu0 0.0
    %2770 = vmatpush1.msra.mxu0 %v2732
    %2771 = vmatprep.subr.mxu0 0.0
    %2772 = vmatpush1.msra.mxu0 %v2733
    %2773 = vmatprep.subr.mxu0 0.0
    %2774 = vmatpush1.msra.mxu0 %v2734
    %2775 = vmatprep.subr.mxu0 0.0
    %2776 = vmatpush1.msra.mxu0 0.0
    %2777 = vmatprep.subr.mxu0 0.0
    %2778 = vmatpush1.msra.mxu0 0.0
    %2779 = vmatprep.subr.mxu0 0.0
    %2780 = vmatpush1.msra.mxu0 0.0
    %2781 = vmatprep.subr.mxu0 0.0
    %2782 = vmatpush1.msra.mxu0 0.0
    %2783 = vmatprep.subr.mxu0 0.0
    %2784 = vmatpush1.msra.mxu0 0.0
    %2785 = vmatprep.subr.mxu0 0.0
    %2786 = vmatpush1.msra.mxu0 0.0
    %2787 = vmatprep.subr.mxu0 0.0
    %2788 = vmatpush1.msra.mxu0 0.0
    %2789 = vmatprep.subr.mxu0 0.0
    %2790 = vmatpush1.msra.mxu0 0.0
    %2791 = vmatprep.subr.mxu0 0.0
    %2792 = vmatpush1.msra.mxu0 0.0
    %2793 = vmatprep.subr.mxu0 0.0
    %2794 = vmatpush1.msra.mxu0 0.0
    %2795 = vmatprep.subr.mxu0 0.0
    %2796 = vmatpush1.msra.mxu0 0.0
    %2797 = vmatprep.subr.mxu0 0.0
    %2798 = vmatpush1.msra.mxu0 0.0
    %2799 = vmatprep.subr.mxu0 0.0
    %2800 = vmatpush1.msra.mxu0 0.0
    %2801 = vmatprep.subr.mxu0 0.0
    %2802 = vmatpush1.msra.mxu0 0.0
    %2803 = vmatprep.subr.mxu0 0.0
    %2804 = vmatpush1.msra.mxu0 0.0
    %2805 = vmatprep.subr.mxu0 0.0
    %2806 = vmatpush1.msra.mxu0 0.0
    %2807 = vmatprep.mubr.f32.mxu0 0.0
    %2808 = vmatmul.mubr.f32.gmra.mrb[0].mxu0 %v2715
    %v2809 = vpop.f32.mrb[0].mxu0
    %v2810 = vadd.f32 %v2741, %v2809
    %v2811 = vpop.f32.mrb[0].mxu0
    %2812 = vmatprep.mubr.f32.mxu0 0.0
    %2813 = vmatmul.mubr.f32.gmra.mrb[0].mxu0 %v2717
    %v2814 = vpop.f32.mrb[0].mxu0
    %v2815 = vadd.f32 %v2741, %v2814
    %v2816 = vpop.f32.mrb[0].mxu0
    %2817 = vdwg.mxu0
    %s2818 = scalar_lea.vmem [#allocation14], 7
    %v2819 = vld [vmem:[%s2818] sm:$0x1]
    %s2820 = scalar_lea.vmem [#allocation16], 7
    %v2821 = vld [vmem:[%s2820] sm:$0x1]
    %v2822 = vadd.f32 %v2810, %v2815
    %v2823 = vrot.slane %v2822, 4
    %v2824 = vadd.f32 %v2822, %v2823
    %v2825 = vrot.slane %v2824, 2
    %v2826 = vadd.f32 %v2824, %v2825
    %v2827 = vrot.slane %v2826, 1
    %v2828 = vadd.f32 %v2826, %v2827
    %v2829 = vmul.f32 %v2828, %v310
    %v2830 = vsub.f32 %v2810, %v2829
    %v2831 = vsub.f32 %v2815, %v2829
    %v2832 = vmul.f32 %v2830, %v2830
    %v2833 = vmul.f32 %v2831, %v2831
    %v2834 = vadd.f32 %v2832, %v2833
    %v2835 = vrot.slane %v2834, 4
    %v2836 = vadd.f32 %v2834, %v2835
    %v2837 = vrot.slane %v2836, 2
    %v2838 = vadd.f32 %v2836, %v2837
    %v2839 = vrot.slane %v2838, 1
    %v2840 = vadd.f32 %v2838, %v2839
    %v2841 = vmul.f32 %v2840, %v310
    %v2842 = vadd.f32 %v2841, 1e-05
    %v2843 = vrsqrt.pop %v2842
    %v2844 = vmul.f32 %v2819, %v2843
    %v2845 = vmul.f32 %v2829, %v2844
    %v2846 = vsub.f32 %v2821, %v2845
    %v2848 = vlaneseq
    %v2849 = vshrl.u32 %v2848, 7
    %v2850 = vsub.s32 0, %v2849
    %v2851 = vrot.slane %v2844, %v2850
    %v2853 = vmul.f32 %v2810, %v2851
    %v2854 = vmul.f32 %v2815, %v2851
    %v2856 = vlaneseq
    %v2857 = vshrl.u32 %v2856, 7
    %v2858 = vsub.s32 0, %v2857
    %v2859 = vrot.slane %v2846, %v2858
    %v2861 = vadd.f32 %v2853, %v2859
    %v2862 = vadd.f32 %v2854, %v2859
    %v2863 = vadd.f32 %v2861, %v2558
    %v2864 = vadd.f32 %v2862, %v2560
    %v2865 = vxor.u32 %v2863, 2147483648
    %v2866 = vxor.u32 %v2864, 2147483648
    %v2867 = vmul.f32 %v2865, 1.442695
    %v2868 = vpow.pop %v2867
    %v2869 = vmul.f32 %v2866, 1.442695
    %v2870 = vpow.pop %v2869
    %v2871 = vadd.f32 %v2868, 1.0
    %v2872 = vadd.f32 %v2870, 1.0
    %v2873 = vrcp.pop %v2871
    %v2874 = vmul.f32 1.0, %v2873
    %v2875 = vrcp.pop %v2872
    %v2876 = vmul.f32 1.0, %v2875
    %s2877 = scalar_lea.vmem [#allocation10], 1024
    %v2878 = vld [vmem:[%s2877] sm:$0xff]
    %v2879 = vld [vmem:[%s2877 + $0x8] sm:$0xff]
    %v2880 = vld [vmem:[%s2877 + $0x10] sm:$0xff]
    %v2881 = vld [vmem:[%s2877 + $0x18] sm:$0xff]
    %v2882 = vld [vmem:[%s2877 + $0x20] sm:$0xff]
    %v2883 = vld [vmem:[%s2877 + $0x28] sm:$0xff]
    %v2884 = vld [vmem:[%s2877 + $0x30] sm:$0xff]
    %v2885 = vld [vmem:[%s2877 + $0x38] sm:$0xff]
    %v2886 = vld [vmem:[%s2877 + $0x40] sm:$0xff]
    %v2887 = vld [vmem:[%s2877 + $0x48] sm:$0xff]
    %v2888 = vld [vmem:[%s2877 + $0x50] sm:$0xff]
    %v2889 = vld [vmem:[%s2877 + $0x58] sm:$0xff]
    %v2890 = vld [vmem:[%s2877 + $0x60] sm:$0xff]
    %v2891 = vld [vmem:[%s2877 + $0x68] sm:$0xff]
    %v2892 = vld [vmem:[%s2877 + $0x70] sm:$0xff]
    %v2893 = vld [vmem:[%s2877 + $0x78] sm:$0xff]
    %s2894 = scalar_lea.vmem %s6, 8
    %v2895 = vld [vmem:[%s2894] sm:$0x1]
    %v2897 = vlaneseq
    %v2898 = vshrl.u32 %v2897, 7
    %v2899 = vsub.s32 0, %v2898
    %v2900 = vrot.slane %v2895, %v2899
    %2902 = vmatprep.subr.mxu0 0.0
    %2903 = vmatpush1.msra.mxu0 %v2878
    %2904 = vmatprep.subr.mxu0 0.0
    %2905 = vmatpush1.msra.mxu0 %v2879
    %2906 = vmatprep.subr.mxu0 0.0
    %2907 = vmatpush1.msra.mxu0 %v2880
    %2908 = vmatprep.subr.mxu0 0.0
    %2909 = vmatpush1.msra.mxu0 %v2881
    %2910 = vmatprep.subr.mxu0 0.0
    %2911 = vmatpush1.msra.mxu0 %v2882
    %2912 = vmatprep.subr.mxu0 0.0
    %2913 = vmatpush1.msra.mxu0 %v2883
    %2914 = vmatprep.subr.mxu0 0.0
    %2915 = vmatpush1.msra.mxu0 %v2884
    %2916 = vmatprep.subr.mxu0 0.0
    %2917 = vmatpush1.msra.mxu0 %v2885
    %2918 = vmatprep.subr.mxu0 0.0
    %2919 = vmatpush1.msra.mxu0 %v2886
    %2920 = vmatprep.subr.mxu0 0.0
    %2921 = vmatpush1.msra.mxu0 %v2887
    %2922 = vmatprep.subr.mxu0 0.0
    %2923 = vmatpush1.msra.mxu0 %v2888
    %2924 = vmatprep.subr.mxu0 0.0
    %2925 = vmatpush1.msra.mxu0 %v2889
    %2926 = vmatprep.subr.mxu0 0.0
    %2927 = vmatpush1.msra.mxu0 %v2890
    %2928 = vmatprep.subr.mxu0 0.0
    %2929 = vmatpush1.msra.mxu0 %v2891
    %2930 = vmatprep.subr.mxu0 0.0
    %2931 = vmatpush1.msra.mxu0 %v2892
    %2932 = vmatprep.subr.mxu0 0.0
    %2933 = vmatpush1.msra.mxu0 %v2893
    %2934 = vmatprep.subr.mxu0 0.0
    %2935 = vmatpush1.msra.mxu0 0.0
    %2936 = vmatprep.subr.mxu0 0.0
    %2937 = vmatpush1.msra.mxu0 0.0
    %2938 = vmatprep.subr.mxu0 0.0
    %2939 = vmatpush1.msra.mxu0 0.0
    %2940 = vmatprep.subr.mxu0 0.0
    %2941 = vmatpush1.msra.mxu0 0.0
    %2942 = vmatprep.subr.mxu0 0.0
    %2943 = vmatpush1.msra.mxu0 0.0
    %2944 = vmatprep.subr.mxu0 0.0
    %2945 = vmatpush1.msra.mxu0 0.0
    %2946 = vmatprep.subr.mxu0 0.0
    %2947 = vmatpush1.msra.mxu0 0.0
    %2948 = vmatprep.subr.mxu0 0.0
    %2949 = vmatpush1.msra.mxu0 0.0
    %2950 = vmatprep.subr.mxu0 0.0
    %2951 = vmatpush1.msra.mxu0 0.0
    %2952 = vmatprep.subr.mxu0 0.0
    %2953 = vmatpush1.msra.mxu0 0.0
    %2954 = vmatprep.subr.mxu0 0.0
    %2955 = vmatpush1.msra.mxu0 0.0
    %2956 = vmatprep.subr.mxu0 0.0
    %2957 = vmatpush1.msra.mxu0 0.0
    %2958 = vmatprep.subr.mxu0 0.0
    %2959 = vmatpush1.msra.mxu0 0.0
    %2960 = vmatprep.subr.mxu0 0.0
    %2961 = vmatpush1.msra.mxu0 0.0
    %2962 = vmatprep.subr.mxu0 0.0
    %2963 = vmatpush1.msra.mxu0 0.0
    %2964 = vmatprep.subr.mxu0 0.0
    %2965 = vmatpush1.msra.mxu0 0.0
    %2966 = vmatprep.mubr.f32.mxu0 0.0
    %2967 = vmatmul.mubr.f32.gmra.mrb[0].mxu0 %v2874
    %v2968 = vpop.f32.mrb[0].mxu0
    %v2969 = vadd.f32 %v2900, %v2968
    %v2970 = vpop.f32.mrb[0].mxu0
    %2971 = vmatprep.mubr.f32.mxu0 0.0
    %2972 = vmatmul.mubr.f32.gmra.mrb[0].mxu0 %v2876
    %v2973 = vpop.f32.mrb[0].mxu0
    %v2974 = vadd.f32 %v2900, %v2973
    %v2975 = vpop.f32.mrb[0].mxu0
    %2976 = vdwg.mxu0
    %s2977 = scalar_lea.vmem %s7, 8
    %v2978 = vld [vmem:[%s2977] sm:$0x1]
    %s2979 = scalar_lea.vmem [#allocation11], 8
    %v2980 = vld [vmem:[%s2979] sm:$0x1]
    %v2981 = vadd.f32 %v2969, %v2974
    %v2982 = vrot.slane %v2981, 4
    %v2983 = vadd.f32 %v2981, %v2982
    %v2984 = vrot.slane %v2983, 2
    %v2985 = vadd.f32 %v2983, %v2984
    %v2986 = vrot.slane %v2985, 1
    %v2987 = vadd.f32 %v2985, %v2986
    %v2988 = vmul.f32 %v2987, %v310
    %v2989 = vsub.f32 %v2969, %v2988
    %v2990 = vsub.f32 %v2974, %v2988
    %v2991 = vmul.f32 %v2989, %v2989
    %v2992 = vmul.f32 %v2990, %v2990
    %v2993 = vadd.f32 %v2991, %v2992
    %v2994 = vrot.slane %v2993, 4
    %v2995 = vadd.f32 %v2993, %v2994
    %v2996 = vrot.slane %v2995, 2
    %v2997 = vadd.f32 %v2995, %v2996
    %v2998 = vrot.slane %v2997, 1
    %v2999 = vadd.f32 %v2997, %v2998
    %v3000 = vmul.f32 %v2999, %v310
    %v3001 = vadd.f32 %v3000, 1e-05
    %v3002 = vrsqrt.pop %v3001
    %v3003 = vmul.f32 %v2978, %v3002
    %v3004 = vmul.f32 %v2988, %v3003
    %v3005 = vsub.f32 %v2980, %v3004
    %v3007 = vlaneseq
    %v3008 = vshrl.u32 %v3007, 7
    %v3009 = vsub.s32 0, %v3008
    %v3010 = vrot.slane %v3003, %v3009
    %v3012 = vmul.f32 %v2969, %v3010
    %v3013 = vmul.f32 %v2974, %v3010
    %v3015 = vlaneseq
    %v3016 = vshrl.u32 %v3015, 7
    %v3017 = vsub.s32 0, %v3016
    %v3018 = vrot.slane %v3005, %v3017
    %v3020 = vadd.f32 %v3012, %v3018
    %v3021 = vadd.f32 %v3013, %v3018
    %v3022 = vxor.u32 %v3020, 2147483648
    %v3023 = vxor.u32 %v3021, 2147483648
    %v3024 = vmul.f32 %v3022, 1.442695
    %v3025 = vpow.pop %v3024
    %v3026 = vmul.f32 %v3023, 1.442695
    %v3027 = vpow.pop %v3026
    %v3028 = vadd.f32 %v3025, 1.0
    %v3029 = vadd.f32 %v3027, 1.0
    %v3030 = vrcp.pop %v3028
    %v3031 = vmul.f32 1.0, %v3030
    %v3032 = vrcp.pop %v3029
    %v3033 = vmul.f32 1.0, %v3032
    %s3034 = scalar_lea.vmem [#allocation13], 1024
    %v3035 = vld [vmem:[%s3034] sm:$0xff]
    %v3036 = vld [vmem:[%s3034 + $0x8] sm:$0xff]
    %v3037 = vld [vmem:[%s3034 + $0x10] sm:$0xff]
    %v3038 = vld [vmem:[%s3034 + $0x18] sm:$0xff]
    %v3039 = vld [vmem:[%s3034 + $0x20] sm:$0xff]
    %v3040 = vld [vmem:[%s3034 + $0x28] sm:$0xff]
    %v3041 = vld [vmem:[%s3034 + $0x30] sm:$0xff]
    %v3042 = vld [vmem:[%s3034 + $0x38] sm:$0xff]
    %v3043 = vld [vmem:[%s3034 + $0x40] sm:$0xff]
    %v3044 = vld [vmem:[%s3034 + $0x48] sm:$0xff]
    %v3045 = vld [vmem:[%s3034 + $0x50] sm:$0xff]
    %v3046 = vld [vmem:[%s3034 + $0x58] sm:$0xff]
    %v3047 = vld [vmem:[%s3034 + $0x60] sm:$0xff]
    %v3048 = vld [vmem:[%s3034 + $0x68] sm:$0xff]
    %v3049 = vld [vmem:[%s3034 + $0x70] sm:$0xff]
    %v3050 = vld [vmem:[%s3034 + $0x78] sm:$0xff]
    %s3051 = scalar_lea.vmem %s10, 8
    %v3052 = vld [vmem:[%s3051] sm:$0x1]
    %v3054 = vlaneseq
    %v3055 = vshrl.u32 %v3054, 7
    %v3056 = vsub.s32 0, %v3055
    %v3057 = vrot.slane %v3052, %v3056
    %3059 = vmatprep.subr.mxu0 0.0
    %3060 = vmatpush1.msra.mxu0 %v3035
    %3061 = vmatprep.subr.mxu0 0.0
    %3062 = vmatpush1.msra.mxu0 %v3036
    %3063 = vmatprep.subr.mxu0 0.0
    %3064 = vmatpush1.msra.mxu0 %v3037
    %3065 = vmatprep.subr.mxu0 0.0
    %3066 = vmatpush1.msra.mxu0 %v3038
    %3067 = vmatprep.subr.mxu0 0.0
    %3068 = vmatpush1.msra.mxu0 %v3039
    %3069 = vmatprep.subr.mxu0 0.0
    %3070 = vmatpush1.msra.mxu0 %v3040
    %3071 = vmatprep.subr.mxu0 0.0
    %3072 = vmatpush1.msra.mxu0 %v3041
    %3073 = vmatprep.subr.mxu0 0.0
    %3074 = vmatpush1.msra.mxu0 %v3042
    %3075 = vmatprep.subr.mxu0 0.0
    %3076 = vmatpush1.msra.mxu0 %v3043
    %3077 = vmatprep.subr.mxu0 0.0
    %3078 = vmatpush1.msra.mxu0 %v3044
    %3079 = vmatprep.subr.mxu0 0.0
    %3080 = vmatpush1.msra.mxu0 %v3045
    %3081 = vmatprep.subr.mxu0 0.0
    %3082 = vmatpush1.msra.mxu0 %v3046
    %3083 = vmatprep.subr.mxu0 0.0
    %3084 = vmatpush1.msra.mxu0 %v3047
    %3085 = vmatprep.subr.mxu0 0.0
    %3086 = vmatpush1.msra.mxu0 %v3048
    %3087 = vmatprep.subr.mxu0 0.0
    %3088 = vmatpush1.msra.mxu0 %v3049
    %3089 = vmatprep.subr.mxu0 0.0
    %3090 = vmatpush1.msra.mxu0 %v3050
    %3091 = vmatprep.subr.mxu0 0.0
    %3092 = vmatpush1.msra.mxu0 0.0
    %3093 = vmatprep.subr.mxu0 0.0
    %3094 = vmatpush1.msra.mxu0 0.0
    %3095 = vmatprep.subr.mxu0 0.0
    %3096 = vmatpush1.msra.mxu0 0.0
    %3097 = vmatprep.subr.mxu0 0.0
    %3098 = vmatpush1.msra.mxu0 0.0
    %3099 = vmatprep.subr.mxu0 0.0
    %3100 = vmatpush1.msra.mxu0 0.0
    %3101 = vmatprep.subr.mxu0 0.0
    %3102 = vmatpush1.msra.mxu0 0.0
    %3103 = vmatprep.subr.mxu0 0.0
    %3104 = vmatpush1.msra.mxu0 0.0
    %3105 = vmatprep.subr.mxu0 0.0
    %3106 = vmatpush1.msra.mxu0 0.0
    %3107 = vmatprep.subr.mxu0 0.0
    %3108 = vmatpush1.msra.mxu0 0.0
    %3109 = vmatprep.subr.mxu0 0.0
    %3110 = vmatpush1.msra.mxu0 0.0
    %3111 = vmatprep.subr.mxu0 0.0
    %3112 = vmatpush1.msra.mxu0 0.0
    %3113 = vmatprep.subr.mxu0 0.0
    %3114 = vmatpush1.msra.mxu0 0.0
    %3115 = vmatprep.subr.mxu0 0.0
    %3116 = vmatpush1.msra.mxu0 0.0
    %3117 = vmatprep.subr.mxu0 0.0
    %3118 = vmatpush1.msra.mxu0 0.0
    %3119 = vmatprep.subr.mxu0 0.0
    %3120 = vmatpush1.msra.mxu0 0.0
    %3121 = vmatprep.subr.mxu0 0.0
    %3122 = vmatpush1.msra.mxu0 0.0
    %3123 = vmatprep.mubr.f32.mxu0 0.0
    %3124 = vmatmul.mubr.f32.gmra.mrb[0].mxu0 %v3031
    %v3125 = vpop.f32.mrb[0].mxu0
    %v3126 = vadd.f32 %v3057, %v3125
    %v3127 = vpop.f32.mrb[0].mxu0
    %3128 = vmatprep.mubr.f32.mxu0 0.0
    %3129 = vmatmul.mubr.f32.gmra.mrb[0].mxu0 %v3033
    %v3130 = vpop.f32.mrb[0].mxu0
    %v3131 = vadd.f32 %v3057, %v3130
    %v3132 = vpop.f32.mrb[0].mxu0
    %3133 = vdwg.mxu0
    %s3134 = scalar_lea.vmem [#allocation14], 8
    %v3135 = vld [vmem:[%s3134] sm:$0x1]
    %s3136 = scalar_lea.vmem [#allocation16], 8
    %v3137 = vld [vmem:[%s3136] sm:$0x1]
    %v3138 = vadd.f32 %v3126, %v3131
    %v3139 = vrot.slane %v3138, 4
    %v3140 = vadd.f32 %v3138, %v3139
    %v3141 = vrot.slane %v3140, 2
    %v3142 = vadd.f32 %v3140, %v3141
    %v3143 = vrot.slane %v3142, 1
    %v3144 = vadd.f32 %v3142, %v3143
    %v3145 = vmul.f32 %v3144, %v310
    %v3146 = vsub.f32 %v3126, %v3145
    %v3147 = vsub.f32 %v3131, %v3145
    %v3148 = vmul.f32 %v3146, %v3146
    %v3149 = vmul.f32 %v3147, %v3147
    %v3150 = vadd.f32 %v3148, %v3149
    %v3151 = vrot.slane %v3150, 4
    %v3152 = vadd.f32 %v3150, %v3151
    %v3153 = vrot.slane %v3152, 2
    %v3154 = vadd.f32 %v3152, %v3153
    %v3155 = vrot.slane %v3154, 1
    %v3156 = vadd.f32 %v3154, %v3155
    %v3157 = vmul.f32 %v3156, %v310
    %v3158 = vadd.f32 %v3157, 1e-05
    %v3159 = vrsqrt.pop %v3158
    %v3160 = vmul.f32 %v3135, %v3159
    %v3161 = vmul.f32 %v3145, %v3160
    %v3162 = vsub.f32 %v3137, %v3161
    %v3164 = vlaneseq
    %v3165 = vshrl.u32 %v3164, 7
    %v3166 = vsub.s32 0, %v3165
    %v3167 = vrot.slane %v3160, %v3166
    %v3169 = vmul.f32 %v3126, %v3167
    %v3170 = vmul.f32 %v3131, %v3167
    %v3172 = vlaneseq
    %v3173 = vshrl.u32 %v3172, 7
    %v3174 = vsub.s32 0, %v3173
    %v3175 = vrot.slane %v3162, %v3174
    %v3177 = vadd.f32 %v3169, %v3175
    %v3178 = vadd.f32 %v3170, %v3175
    %v3179 = vadd.f32 %v3177, %v2874
    %v3180 = vadd.f32 %v3178, %v2876
    %v3181 = vxor.u32 %v3179, 2147483648
    %v3182 = vxor.u32 %v3180, 2147483648
    %v3183 = vmul.f32 %v3181, 1.442695
    %v3184 = vpow.pop %v3183
    %v3185 = vmul.f32 %v3182, 1.442695
    %v3186 = vpow.pop %v3185
    %v3187 = vadd.f32 %v3184, 1.0
    %v3188 = vadd.f32 %v3186, 1.0
    %v3189 = vrcp.pop %v3187
    %v3190 = vmul.f32 1.0, %v3189
    %v3191 = vrcp.pop %v3188
    %v3192 = vmul.f32 1.0, %v3191
    %s3193 = scalar_lea.vmem [#allocation10], 1152
    %v3194 = vld [vmem:[%s3193] sm:$0xff]
    %v3195 = vld [vmem:[%s3193 + $0x8] sm:$0xff]
    %v3196 = vld [vmem:[%s3193 + $0x10] sm:$0xff]
    %v3197 = vld [vmem:[%s3193 + $0x18] sm:$0xff]
    %v3198 = vld [vmem:[%s3193 + $0x20] sm:$0xff]
    %v3199 = vld [vmem:[%s3193 + $0x28] sm:$0xff]
    %v3200 = vld [vmem:[%s3193 + $0x30] sm:$0xff]
    %v3201 = vld [vmem:[%s3193 + $0x38] sm:$0xff]
    %v3202 = vld [vmem:[%s3193 + $0x40] sm:$0xff]
    %v3203 = vld [vmem:[%s3193 + $0x48] sm:$0xff]
    %v3204 = vld [vmem:[%s3193 + $0x50] sm:$0xff]
    %v3205 = vld [vmem:[%s3193 + $0x58] sm:$0xff]
    %v3206 = vld [vmem:[%s3193 + $0x60] sm:$0xff]
    %v3207 = vld [vmem:[%s3193 + $0x68] sm:$0xff]
    %v3208 = vld [vmem:[%s3193 + $0x70] sm:$0xff]
    %v3209 = vld [vmem:[%s3193 + $0x78] sm:$0xff]
    %s3210 = scalar_lea.vmem %s6, 9
    %v3211 = vld [vmem:[%s3210] sm:$0x1]
    %v3213 = vlaneseq
    %v3214 = vshrl.u32 %v3213, 7
    %v3215 = vsub.s32 0, %v3214
    %v3216 = vrot.slane %v3211, %v3215
    %3218 = vmatprep.subr.mxu0 0.0
    %3219 = vmatpush1.msra.mxu0 %v3194
    %3220 = vmatprep.subr.mxu0 0.0
    %3221 = vmatpush1.msra.mxu0 %v3195
    %3222 = vmatprep.subr.mxu0 0.0
    %3223 = vmatpush1.msra.mxu0 %v3196
    %3224 = vmatprep.subr.mxu0 0.0
    %3225 = vmatpush1.msra.mxu0 %v3197
    %3226 = vmatprep.subr.mxu0 0.0
    %3227 = vmatpush1.msra.mxu0 %v3198
    %3228 = vmatprep.subr.mxu0 0.0
    %3229 = vmatpush1.msra.mxu0 %v3199
    %3230 = vmatprep.subr.mxu0 0.0
    %3231 = vmatpush1.msra.mxu0 %v3200
    %3232 = vmatprep.subr.mxu0 0.0
    %3233 = vmatpush1.msra.mxu0 %v3201
    %3234 = vmatprep.subr.mxu0 0.0
    %3235 = vmatpush1.msra.mxu0 %v3202
    %3236 = vmatprep.subr.mxu0 0.0
    %3237 = vmatpush1.msra.mxu0 %v3203
    %3238 = vmatprep.subr.mxu0 0.0
    %3239 = vmatpush1.msra.mxu0 %v3204
    %3240 = vmatprep.subr.mxu0 0.0
    %3241 = vmatpush1.msra.mxu0 %v3205
    %3242 = vmatprep.subr.mxu0 0.0
    %3243 = vmatpush1.msra.mxu0 %v3206
    %3244 = vmatprep.subr.mxu0 0.0
    %3245 = vmatpush1.msra.mxu0 %v3207
    %3246 = vmatprep.subr.mxu0 0.0
    %3247 = vmatpush1.msra.mxu0 %v3208
    %3248 = vmatprep.subr.mxu0 0.0
    %3249 = vmatpush1.msra.mxu0 %v3209
    %3250 = vmatprep.subr.mxu0 0.0
    %3251 = vmatpush1.msra.mxu0 0.0
    %3252 = vmatprep.subr.mxu0 0.0
    %3253 = vmatpush1.msra.mxu0 0.0
    %3254 = vmatprep.subr.mxu0 0.0
    %3255 = vmatpush1.msra.mxu0 0.0
    %3256 = vmatprep.subr.mxu0 0.0
    %3257 = vmatpush1.msra.mxu0 0.0
    %3258 = vmatprep.subr.mxu0 0.0
    %3259 = vmatpush1.msra.mxu0 0.0
    %3260 = vmatprep.subr.mxu0 0.0
    %3261 = vmatpush1.msra.mxu0 0.0
    %3262 = vmatprep.subr.mxu0 0.0
    %3263 = vmatpush1.msra.mxu0 0.0
    %3264 = vmatprep.subr.mxu0 0.0
    %3265 = vmatpush1.msra.mxu0 0.0
    %3266 = vmatprep.subr.mxu0 0.0
    %3267 = vmatpush1.msra.mxu0 0.0
    %3268 = vmatprep.subr.mxu0 0.0
    %3269 = vmatpush1.msra.mxu0 0.0
    %3270 = vmatprep.subr.mxu0 0.0
    %3271 = vmatpush1.msra.mxu0 0.0
    %3272 = vmatprep.subr.mxu0 0.0
    %3273 = vmatpush1.msra.mxu0 0.0
    %3274 = vmatprep.subr.mxu0 0.0
    %3275 = vmatpush1.msra.mxu0 0.0
    %3276 = vmatprep.subr.mxu0 0.0
    %3277 = vmatpush1.msra.mxu0 0.0
    %3278 = vmatprep.subr.mxu0 0.0
    %3279 = vmatpush1.msra.mxu0 0.0
    %3280 = vmatprep.subr.mxu0 0.0
    %3281 = vmatpush1.msra.mxu0 0.0
    %3282 = vmatprep.mubr.f32.mxu0 0.0
    %3283 = vmatmul.mubr.f32.gmra.mrb[0].mxu0 %v3190
    %v3284 = vpop.f32.mrb[0].mxu0
    %v3285 = vadd.f32 %v3216, %v3284
    %v3286 = vpop.f32.mrb[0].mxu0
    %3287 = vmatprep.mubr.f32.mxu0 0.0
    %3288 = vmatmul.mubr.f32.gmra.mrb[0].mxu0 %v3192
    %v3289 = vpop.f32.mrb[0].mxu0
    %v3290 = vadd.f32 %v3216, %v3289
    %v3291 = vpop.f32.mrb[0].mxu0
    %3292 = vdwg.mxu0
    %s3293 = scalar_lea.vmem %s7, 9
    %v3294 = vld [vmem:[%s3293] sm:$0x1]
    %s3295 = scalar_lea.vmem [#allocation11], 9
    %v3296 = vld [vmem:[%s3295] sm:$0x1]
    %v3297 = vadd.f32 %v3285, %v3290
    %v3298 = vrot.slane %v3297, 4
    %v3299 = vadd.f32 %v3297, %v3298
    %v3300 = vrot.slane %v3299, 2
    %v3301 = vadd.f32 %v3299, %v3300
    %v3302 = vrot.slane %v3301, 1
    %v3303 = vadd.f32 %v3301, %v3302
    %v3304 = vmul.f32 %v3303, %v310
    %v3305 = vsub.f32 %v3285, %v3304
    %v3306 = vsub.f32 %v3290, %v3304
    %v3307 = vmul.f32 %v3305, %v3305
    %v3308 = vmul.f32 %v3306, %v3306
    %v3309 = vadd.f32 %v3307, %v3308
    %v3310 = vrot.slane %v3309, 4
    %v3311 = vadd.f32 %v3309, %v3310
    %v3312 = vrot.slane %v3311, 2
    %v3313 = vadd.f32 %v3311, %v3312
    %v3314 = vrot.slane %v3313, 1
    %v3315 = vadd.f32 %v3313, %v3314
    %v3316 = vmul.f32 %v3315, %v310
    %v3317 = vadd.f32 %v3316, 1e-05
    %v3318 = vrsqrt.pop %v3317
    %v3319 = vmul.f32 %v3294, %v3318
    %v3320 = vmul.f32 %v3304, %v3319
    %v3321 = vsub.f32 %v3296, %v3320
    %v3323 = vlaneseq
    %v3324 = vshrl.u32 %v3323, 7
    %v3325 = vsub.s32 0, %v3324
    %v3326 = vrot.slane %v3319, %v3325
    %v3328 = vmul.f32 %v3285, %v3326
    %v3329 = vmul.f32 %v3290, %v3326
    %v3331 = vlaneseq
    %v3332 = vshrl.u32 %v3331, 7
    %v3333 = vsub.s32 0, %v3332
    %v3334 = vrot.slane %v3321, %v3333
    %v3336 = vadd.f32 %v3328, %v3334
    %v3337 = vadd.f32 %v3329, %v3334
    %v3338 = vxor.u32 %v3336, 2147483648
    %v3339 = vxor.u32 %v3337, 2147483648
    %v3340 = vmul.f32 %v3338, 1.442695
    %v3341 = vpow.pop %v3340
    %v3342 = vmul.f32 %v3339, 1.442695
    %v3343 = vpow.pop %v3342
    %v3344 = vadd.f32 %v3341, 1.0
    %v3345 = vadd.f32 %v3343, 1.0
    %v3346 = vrcp.pop %v3344
    %v3347 = vmul.f32 1.0, %v3346
    %v3348 = vrcp.pop %v3345
    %v3349 = vmul.f32 1.0, %v3348
    %s3350 = scalar_lea.vmem [#allocation13], 1152
    %v3351 = vld [vmem:[%s3350] sm:$0xff]
    %v3352 = vld [vmem:[%s3350 + $0x8] sm:$0xff]
    %v3353 = vld [vmem:[%s3350 + $0x10] sm:$0xff]
    %v3354 = vld [vmem:[%s3350 + $0x18] sm:$0xff]
    %v3355 = vld [vmem:[%s3350 + $0x20] sm:$0xff]
    %v3356 = vld [vmem:[%s3350 + $0x28] sm:$0xff]
    %v3357 = vld [vmem:[%s3350 + $0x30] sm:$0xff]
    %v3358 = vld [vmem:[%s3350 + $0x38] sm:$0xff]
    %v3359 = vld [vmem:[%s3350 + $0x40] sm:$0xff]
    %v3360 = vld [vmem:[%s3350 + $0x48] sm:$0xff]
    %v3361 = vld [vmem:[%s3350 + $0x50] sm:$0xff]
    %v3362 = vld [vmem:[%s3350 + $0x58] sm:$0xff]
    %v3363 = vld [vmem:[%s3350 + $0x60] sm:$0xff]
    %v3364 = vld [vmem:[%s3350 + $0x68] sm:$0xff]
    %v3365 = vld [vmem:[%s3350 + $0x70] sm:$0xff]
    %v3366 = vld [vmem:[%s3350 + $0x78] sm:$0xff]
    %s3367 = scalar_lea.vmem %s10, 9
    %v3368 = vld [vmem:[%s3367] sm:$0x1]
    %v3370 = vlaneseq
    %v3371 = vshrl.u32 %v3370, 7
    %v3372 = vsub.s32 0, %v3371
    %v3373 = vrot.slane %v3368, %v3372
    %3375 = vmatprep.subr.mxu0 0.0
    %3376 = vmatpush1.msra.mxu0 %v3351
    %3377 = vmatprep.subr.mxu0 0.0
    %3378 = vmatpush1.msra.mxu0 %v3352
    %3379 = vmatprep.subr.mxu0 0.0
    %3380 = vmatpush1.msra.mxu0 %v3353
    %3381 = vmatprep.subr.mxu0 0.0
    %3382 = vmatpush1.msra.mxu0 %v3354
    %3383 = vmatprep.subr.mxu0 0.0
    %3384 = vmatpush1.msra.mxu0 %v3355
    %3385 = vmatprep.subr.mxu0 0.0
    %3386 = vmatpush1.msra.mxu0 %v3356
    %3387 = vmatprep.subr.mxu0 0.0
    %3388 = vmatpush1.msra.mxu0 %v3357
    %3389 = vmatprep.subr.mxu0 0.0
    %3390 = vmatpush1.msra.mxu0 %v3358
    %3391 = vmatprep.subr.mxu0 0.0
    %3392 = vmatpush1.msra.mxu0 %v3359
    %3393 = vmatprep.subr.mxu0 0.0
    %3394 = vmatpush1.msra.mxu0 %v3360
    %3395 = vmatprep.subr.mxu0 0.0
    %3396 = vmatpush1.msra.mxu0 %v3361
    %3397 = vmatprep.subr.mxu0 0.0
    %3398 = vmatpush1.msra.mxu0 %v3362
    %3399 = vmatprep.subr.mxu0 0.0
    %3400 = vmatpush1.msra.mxu0 %v3363
    %3401 = vmatprep.subr.mxu0 0.0
    %3402 = vmatpush1.msra.mxu0 %v3364
    %3403 = vmatprep.subr.mxu0 0.0
    %3404 = vmatpush1.msra.mxu0 %v3365
    %3405 = vmatprep.subr.mxu0 0.0
    %3406 = vmatpush1.msra.mxu0 %v3366
    %3407 = vmatprep.subr.mxu0 0.0
    %3408 = vmatpush1.msra.mxu0 0.0
    %3409 = vmatprep.subr.mxu0 0.0
    %3410 = vmatpush1.msra.mxu0 0.0
    %3411 = vmatprep.subr.mxu0 0.0
    %3412 = vmatpush1.msra.mxu0 0.0
    %3413 = vmatprep.subr.mxu0 0.0
    %3414 = vmatpush1.msra.mxu0 0.0
    %3415 = vmatprep.subr.mxu0 0.0
    %3416 = vmatpush1.msra.mxu0 0.0
    %3417 = vmatprep.subr.mxu0 0.0
    %3418 = vmatpush1.msra.mxu0 0.0
    %3419 = vmatprep.subr.mxu0 0.0
    %3420 = vmatpush1.msra.mxu0 0.0
    %3421 = vmatprep.subr.mxu0 0.0
    %3422 = vmatpush1.msra.mxu0 0.0
    %3423 = vmatprep.subr.mxu0 0.0
    %3424 = vmatpush1.msra.mxu0 0.0
    %3425 = vmatprep.subr.mxu0 0.0
    %3426 = vmatpush1.msra.mxu0 0.0
    %3427 = vmatprep.subr.mxu0 0.0
    %3428 = vmatpush1.msra.mxu0 0.0
    %3429 = vmatprep.subr.mxu0 0.0
    %3430 = vmatpush1.msra.mxu0 0.0
    %3431 = vmatprep.subr.mxu0 0.0
    %3432 = vmatpush1.msra.mxu0 0.0
    %3433 = vmatprep.subr.mxu0 0.0
    %3434 = vmatpush1.msra.mxu0 0.0
    %3435 = vmatprep.subr.mxu0 0.0
    %3436 = vmatpush1.msra.mxu0 0.0
    %3437 = vmatprep.subr.mxu0 0.0
    %3438 = vmatpush1.msra.mxu0 0.0
    %3439 = vmatprep.mubr.f32.mxu0 0.0
    %3440 = vmatmul.mubr.f32.gmra.mrb[0].mxu0 %v3347
    %v3441 = vpop.f32.mrb[0].mxu0
    %v3442 = vadd.f32 %v3373, %v3441
    %v3443 = vpop.f32.mrb[0].mxu0
    %3444 = vmatprep.mubr.f32.mxu0 0.0
    %3445 = vmatmul.mubr.f32.gmra.mrb[0].mxu0 %v3349
    %v3446 = vpop.f32.mrb[0].mxu0
    %v3447 = vadd.f32 %v3373, %v3446
    %v3448 = vpop.f32.mrb[0].mxu0
    %3449 = vdwg.mxu0
    %s3450 = scalar_lea.vmem [#allocation14], 9
    %v3451 = vld [vmem:[%s3450] sm:$0x1]
    %s3452 = scalar_lea.vmem [#allocation16], 9
    %v3453 = vld [vmem:[%s3452] sm:$0x1]
    %v3454 = vadd.f32 %v3442, %v3447
    %v3455 = vrot.slane %v3454, 4
    %v3456 = vadd.f32 %v3454, %v3455
    %v3457 = vrot.slane %v3456, 2
    %v3458 = vadd.f32 %v3456, %v3457
    %v3459 = vrot.slane %v3458, 1
    %v3460 = vadd.f32 %v3458, %v3459
    %v3461 = vmul.f32 %v3460, %v310
    %v3462 = vsub.f32 %v3442, %v3461
    %v3463 = vsub.f32 %v3447, %v3461
    %v3464 = vmul.f32 %v3462, %v3462
    %v3465 = vmul.f32 %v3463, %v3463
    %v3466 = vadd.f32 %v3464, %v3465
    %v3467 = vrot.slane %v3466, 4
    %v3468 = vadd.f32 %v3466, %v3467
    %v3469 = vrot.slane %v3468, 2
    %v3470 = vadd.f32 %v3468, %v3469
    %v3471 = vrot.slane %v3470, 1
    %v3472 = vadd.f32 %v3470, %v3471
    %v3473 = vmul.f32 %v3472, %v310
    %v3474 = vadd.f32 %v3473, 1e-05
    %v3475 = vrsqrt.pop %v3474
    %v3476 = vmul.f32 %v3451, %v3475
    %v3477 = vmul.f32 %v3461, %v3476
    %v3478 = vsub.f32 %v3453, %v3477
    %v3480 = vlaneseq
    %v3481 = vshrl.u32 %v3480, 7
    %v3482 = vsub.s32 0, %v3481
    %v3483 = vrot.slane %v3476, %v3482
    %v3485 = vmul.f32 %v3442, %v3483
    %v3486 = vmul.f32 %v3447, %v3483
    %v3488 = vlaneseq
    %v3489 = vshrl.u32 %v3488, 7
    %v3490 = vsub.s32 0, %v3489
    %v3491 = vrot.slane %v3478, %v3490
    %v3493 = vadd.f32 %v3485, %v3491
    %v3494 = vadd.f32 %v3486, %v3491
    %v3495 = vadd.f32 %v3493, %v3190
    %v3496 = vadd.f32 %v3494, %v3192
    %v3497 = vxor.u32 %v3495, 2147483648
    %v3498 = vxor.u32 %v3496, 2147483648
    %v3499 = vmul.f32 %v3497, 1.442695
    %v3500 = vpow.pop %v3499
    %v3501 = vmul.f32 %v3498, 1.442695
    %v3502 = vpow.pop %v3501
    %v3503 = vadd.f32 %v3500, 1.0
    %v3504 = vadd.f32 %v3502, 1.0
    %v3505 = vrcp.pop %v3503
    %v3506 = vmul.f32 1.0, %v3505
    %v3507 = vrcp.pop %v3504
    %v3508 = vmul.f32 1.0, %v3507
    %s3509 = scalar_lea.vmem [#allocation10], 1280
    %v3510 = vld [vmem:[%s3509] sm:$0xff]
    %v3511 = vld [vmem:[%s3509 + $0x8] sm:$0xff]
    %v3512 = vld [vmem:[%s3509 + $0x10] sm:$0xff]
    %v3513 = vld [vmem:[%s3509 + $0x18] sm:$0xff]
    %v3514 = vld [vmem:[%s3509 + $0x20] sm:$0xff]
    %v3515 = vld [vmem:[%s3509 + $0x28] sm:$0xff]
    %v3516 = vld [vmem:[%s3509 + $0x30] sm:$0xff]
    %v3517 = vld [vmem:[%s3509 + $0x38] sm:$0xff]
    %v3518 = vld [vmem:[%s3509 + $0x40] sm:$0xff]
    %v3519 = vld [vmem:[%s3509 + $0x48] sm:$0xff]
    %v3520 = vld [vmem:[%s3509 + $0x50] sm:$0xff]
    %v3521 = vld [vmem:[%s3509 + $0x58] sm:$0xff]
    %v3522 = vld [vmem:[%s3509 + $0x60] sm:$0xff]
    %v3523 = vld [vmem:[%s3509 + $0x68] sm:$0xff]
    %v3524 = vld [vmem:[%s3509 + $0x70] sm:$0xff]
    %v3525 = vld [vmem:[%s3509 + $0x78] sm:$0xff]
    %s3526 = scalar_lea.vmem %s6, 10
    %v3527 = vld [vmem:[%s3526] sm:$0x1]
    %v3529 = vlaneseq
    %v3530 = vshrl.u32 %v3529, 7
    %v3531 = vsub.s32 0, %v3530
    %v3532 = vrot.slane %v3527, %v3531
    %3534 = vmatprep.subr.mxu0 0.0
    %3535 = vmatpush1.msra.mxu0 %v3510
    %3536 = vmatprep.subr.mxu0 0.0
    %3537 = vmatpush1.msra.mxu0 %v3511
    %3538 = vmatprep.subr.mxu0 0.0
    %3539 = vmatpush1.msra.mxu0 %v3512
    %3540 = vmatprep.subr.mxu0 0.0
    %3541 = vmatpush1.msra.mxu0 %v3513
    %3542 = vmatprep.subr.mxu0 0.0
    %3543 = vmatpush1.msra.mxu0 %v3514
    %3544 = vmatprep.subr.mxu0 0.0
    %3545 = vmatpush1.msra.mxu0 %v3515
    %3546 = vmatprep.subr.mxu0 0.0
    %3547 = vmatpush1.msra.mxu0 %v3516
    %3548 = vmatprep.subr.mxu0 0.0
    %3549 = vmatpush1.msra.mxu0 %v3517
    %3550 = vmatprep.subr.mxu0 0.0
    %3551 = vmatpush1.msra.mxu0 %v3518
    %3552 = vmatprep.subr.mxu0 0.0
    %3553 = vmatpush1.msra.mxu0 %v3519
    %3554 = vmatprep.subr.mxu0 0.0
    %3555 = vmatpush1.msra.mxu0 %v3520
    %3556 = vmatprep.subr.mxu0 0.0
    %3557 = vmatpush1.msra.mxu0 %v3521
    %3558 = vmatprep.subr.mxu0 0.0
    %3559 = vmatpush1.msra.mxu0 %v3522
    %3560 = vmatprep.subr.mxu0 0.0
    %3561 = vmatpush1.msra.mxu0 %v3523
    %3562 = vmatprep.subr.mxu0 0.0
    %3563 = vmatpush1.msra.mxu0 %v3524
    %3564 = vmatprep.subr.mxu0 0.0
    %3565 = vmatpush1.msra.mxu0 %v3525
    %3566 = vmatprep.subr.mxu0 0.0
    %3567 = vmatpush1.msra.mxu0 0.0
    %3568 = vmatprep.subr.mxu0 0.0
    %3569 = vmatpush1.msra.mxu0 0.0
    %3570 = vmatprep.subr.mxu0 0.0
    %3571 = vmatpush1.msra.mxu0 0.0
    %3572 = vmatprep.subr.mxu0 0.0
    %3573 = vmatpush1.msra.mxu0 0.0
    %3574 = vmatprep.subr.mxu0 0.0
    %3575 = vmatpush1.msra.mxu0 0.0
    %3576 = vmatprep.subr.mxu0 0.0
    %3577 = vmatpush1.msra.mxu0 0.0
    %3578 = vmatprep.subr.mxu0 0.0
    %3579 = vmatpush1.msra.mxu0 0.0
    %3580 = vmatprep.subr.mxu0 0.0
    %3581 = vmatpush1.msra.mxu0 0.0
    %3582 = vmatprep.subr.mxu0 0.0
    %3583 = vmatpush1.msra.mxu0 0.0
    %3584 = vmatprep.subr.mxu0 0.0
    %3585 = vmatpush1.msra.mxu0 0.0
    %3586 = vmatprep.subr.mxu0 0.0
    %3587 = vmatpush1.msra.mxu0 0.0
    %3588 = vmatprep.subr.mxu0 0.0
    %3589 = vmatpush1.msra.mxu0 0.0
    %3590 = vmatprep.subr.mxu0 0.0
    %3591 = vmatpush1.msra.mxu0 0.0
    %3592 = vmatprep.subr.mxu0 0.0
    %3593 = vmatpush1.msra.mxu0 0.0
    %3594 = vmatprep.subr.mxu0 0.0
    %3595 = vmatpush1.msra.mxu0 0.0
    %3596 = vmatprep.subr.mxu0 0.0
    %3597 = vmatpush1.msra.mxu0 0.0
    %3598 = vmatprep.mubr.f32.mxu0 0.0
    %3599 = vmatmul.mubr.f32.gmra.mrb[0].mxu0 %v3506
    %v3600 = vpop.f32.mrb[0].mxu0
    %v3601 = vadd.f32 %v3532, %v3600
    %v3602 = vpop.f32.mrb[0].mxu0
    %3603 = vmatprep.mubr.f32.mxu0 0.0
    %3604 = vmatmul.mubr.f32.gmra.mrb[0].mxu0 %v3508
    %v3605 = vpop.f32.mrb[0].mxu0
    %v3606 = vadd.f32 %v3532, %v3605
    %v3607 = vpop.f32.mrb[0].mxu0
    %3608 = vdwg.mxu0
    %s3609 = scalar_lea.vmem %s7, 10
    %v3610 = vld [vmem:[%s3609] sm:$0x1]
    %s3611 = scalar_lea.vmem [#allocation11], 10
    %v3612 = vld [vmem:[%s3611] sm:$0x1]
    %v3613 = vadd.f32 %v3601, %v3606
    %v3614 = vrot.slane %v3613, 4
    %v3615 = vadd.f32 %v3613, %v3614
    %v3616 = vrot.slane %v3615, 2
    %v3617 = vadd.f32 %v3615, %v3616
    %v3618 = vrot.slane %v3617, 1
    %v3619 = vadd.f32 %v3617, %v3618
    %v3620 = vmul.f32 %v3619, %v310
    %v3621 = vsub.f32 %v3601, %v3620
    %v3622 = vsub.f32 %v3606, %v3620
    %v3623 = vmul.f32 %v3621, %v3621
    %v3624 = vmul.f32 %v3622, %v3622
    %v3625 = vadd.f32 %v3623, %v3624
    %v3626 = vrot.slane %v3625, 4
    %v3627 = vadd.f32 %v3625, %v3626
    %v3628 = vrot.slane %v3627, 2
    %v3629 = vadd.f32 %v3627, %v3628
    %v3630 = vrot.slane %v3629, 1
    %v3631 = vadd.f32 %v3629, %v3630
    %v3632 = vmul.f32 %v3631, %v310
    %v3633 = vadd.f32 %v3632, 1e-05
    %v3634 = vrsqrt.pop %v3633
    %v3635 = vmul.f32 %v3610, %v3634
    %v3636 = vmul.f32 %v3620, %v3635
    %v3637 = vsub.f32 %v3612, %v3636
    %v3639 = vlaneseq
    %v3640 = vshrl.u32 %v3639, 7
    %v3641 = vsub.s32 0, %v3640
    %v3642 = vrot.slane %v3635, %v3641
    %v3644 = vmul.f32 %v3601, %v3642
    %v3645 = vmul.f32 %v3606, %v3642
    %v3647 = vlaneseq
    %v3648 = vshrl.u32 %v3647, 7
    %v3649 = vsub.s32 0, %v3648
    %v3650 = vrot.slane %v3637, %v3649
    %v3652 = vadd.f32 %v3644, %v3650
    %v3653 = vadd.f32 %v3645, %v3650
    %v3654 = vxor.u32 %v3652, 2147483648
    %v3655 = vxor.u32 %v3653, 2147483648
    %v3656 = vmul.f32 %v3654, 1.442695
    %v3657 = vpow.pop %v3656
    %v3658 = vmul.f32 %v3655, 1.442695
    %v3659 = vpow.pop %v3658
    %v3660 = vadd.f32 %v3657, 1.0
    %v3661 = vadd.f32 %v3659, 1.0
    %v3662 = vrcp.pop %v3660
    %v3663 = vmul.f32 1.0, %v3662
    %v3664 = vrcp.pop %v3661
    %v3665 = vmul.f32 1.0, %v3664
    %s3666 = scalar_lea.vmem [#allocation13], 1280
    %v3667 = vld [vmem:[%s3666] sm:$0xff]
    %v3668 = vld [vmem:[%s3666 + $0x8] sm:$0xff]
    %v3669 = vld [vmem:[%s3666 + $0x10] sm:$0xff]
    %v3670 = vld [vmem:[%s3666 + $0x18] sm:$0xff]
    %v3671 = vld [vmem:[%s3666 + $0x20] sm:$0xff]
    %v3672 = vld [vmem:[%s3666 + $0x28] sm:$0xff]
    %v3673 = vld [vmem:[%s3666 + $0x30] sm:$0xff]
    %v3674 = vld [vmem:[%s3666 + $0x38] sm:$0xff]
    %v3675 = vld [vmem:[%s3666 + $0x40] sm:$0xff]
    %v3676 = vld [vmem:[%s3666 + $0x48] sm:$0xff]
    %v3677 = vld [vmem:[%s3666 + $0x50] sm:$0xff]
    %v3678 = vld [vmem:[%s3666 + $0x58] sm:$0xff]
    %v3679 = vld [vmem:[%s3666 + $0x60] sm:$0xff]
    %v3680 = vld [vmem:[%s3666 + $0x68] sm:$0xff]
    %v3681 = vld [vmem:[%s3666 + $0x70] sm:$0xff]
    %v3682 = vld [vmem:[%s3666 + $0x78] sm:$0xff]
    %s3683 = scalar_lea.vmem %s10, 10
    %v3684 = vld [vmem:[%s3683] sm:$0x1]
    %v3686 = vlaneseq
    %v3687 = vshrl.u32 %v3686, 7
    %v3688 = vsub.s32 0, %v3687
    %v3689 = vrot.slane %v3684, %v3688
    %3691 = vmatprep.subr.mxu0 0.0
    %3692 = vmatpush1.msra.mxu0 %v3667
    %3693 = vmatprep.subr.mxu0 0.0
    %3694 = vmatpush1.msra.mxu0 %v3668
    %3695 = vmatprep.subr.mxu0 0.0
    %3696 = vmatpush1.msra.mxu0 %v3669
    %3697 = vmatprep.subr.mxu0 0.0
    %3698 = vmatpush1.msra.mxu0 %v3670
    %3699 = vmatprep.subr.mxu0 0.0
    %3700 = vmatpush1.msra.mxu0 %v3671
    %3701 = vmatprep.subr.mxu0 0.0
    %3702 = vmatpush1.msra.mxu0 %v3672
    %3703 = vmatprep.subr.mxu0 0.0
    %3704 = vmatpush1.msra.mxu0 %v3673
    %3705 = vmatprep.subr.mxu0 0.0
    %3706 = vmatpush1.msra.mxu0 %v3674
    %3707 = vmatprep.subr.mxu0 0.0
    %3708 = vmatpush1.msra.mxu0 %v3675
    %3709 = vmatprep.subr.mxu0 0.0
    %3710 = vmatpush1.msra.mxu0 %v3676
    %3711 = vmatprep.subr.mxu0 0.0
    %3712 = vmatpush1.msra.mxu0 %v3677
    %3713 = vmatprep.subr.mxu0 0.0
    %3714 = vmatpush1.msra.mxu0 %v3678
    %3715 = vmatprep.subr.mxu0 0.0
    %3716 = vmatpush1.msra.mxu0 %v3679
    %3717 = vmatprep.subr.mxu0 0.0
    %3718 = vmatpush1.msra.mxu0 %v3680
    %3719 = vmatprep.subr.mxu0 0.0
    %3720 = vmatpush1.msra.mxu0 %v3681
    %3721 = vmatprep.subr.mxu0 0.0
    %3722 = vmatpush1.msra.mxu0 %v3682
    %3723 = vmatprep.subr.mxu0 0.0
    %3724 = vmatpush1.msra.mxu0 0.0
    %3725 = vmatprep.subr.mxu0 0.0
    %3726 = vmatpush1.msra.mxu0 0.0
    %3727 = vmatprep.subr.mxu0 0.0
    %3728 = vmatpush1.msra.mxu0 0.0
    %3729 = vmatprep.subr.mxu0 0.0
    %3730 = vmatpush1.msra.mxu0 0.0
    %3731 = vmatprep.subr.mxu0 0.0
    %3732 = vmatpush1.msra.mxu0 0.0
    %3733 = vmatprep.subr.mxu0 0.0
    %3734 = vmatpush1.msra.mxu0 0.0
    %3735 = vmatprep.subr.mxu0 0.0
    %3736 = vmatpush1.msra.mxu0 0.0
    %3737 = vmatprep.subr.mxu0 0.0
    %3738 = vmatpush1.msra.mxu0 0.0
    %3739 = vmatprep.subr.mxu0 0.0
    %3740 = vmatpush1.msra.mxu0 0.0
    %3741 = vmatprep.subr.mxu0 0.0
    %3742 = vmatpush1.msra.mxu0 0.0
    %3743 = vmatprep.subr.mxu0 0.0
    %3744 = vmatpush1.msra.mxu0 0.0
    %3745 = vmatprep.subr.mxu0 0.0
    %3746 = vmatpush1.msra.mxu0 0.0
    %3747 = vmatprep.subr.mxu0 0.0
    %3748 = vmatpush1.msra.mxu0 0.0
    %3749 = vmatprep.subr.mxu0 0.0
    %3750 = vmatpush1.msra.mxu0 0.0
    %3751 = vmatprep.subr.mxu0 0.0
    %3752 = vmatpush1.msra.mxu0 0.0
    %3753 = vmatprep.subr.mxu0 0.0
    %3754 = vmatpush1.msra.mxu0 0.0
    %3755 = vmatprep.mubr.f32.mxu0 0.0
    %3756 = vmatmul.mubr.f32.gmra.mrb[0].mxu0 %v3663
    %v3757 = vpop.f32.mrb[0].mxu0
    %v3758 = vadd.f32 %v3689, %v3757
    %v3759 = vpop.f32.mrb[0].mxu0
    %3760 = vmatprep.mubr.f32.mxu0 0.0
    %3761 = vmatmul.mubr.f32.gmra.mrb[0].mxu0 %v3665
    %v3762 = vpop.f32.mrb[0].mxu0
    %v3763 = vadd.f32 %v3689, %v3762
    %v3764 = vpop.f32.mrb[0].mxu0
    %3765 = vdwg.mxu0
    %s3766 = scalar_lea.vmem [#allocation14], 10
    %v3767 = vld [vmem:[%s3766] sm:$0x1]
    %s3768 = scalar_lea.vmem [#allocation16], 10
    %v3769 = vld [vmem:[%s3768] sm:$0x1]
    %v3770 = vadd.f32 %v3758, %v3763
    %v3771 = vrot.slane %v3770, 4
    %v3772 = vadd.f32 %v3770, %v3771
    %v3773 = vrot.slane %v3772, 2
    %v3774 = vadd.f32 %v3772, %v3773
    %v3775 = vrot.slane %v3774, 1
    %v3776 = vadd.f32 %v3774, %v3775
    %v3777 = vmul.f32 %v3776, %v310
    %v3778 = vsub.f32 %v3758, %v3777
    %v3779 = vsub.f32 %v3763, %v3777
    %v3780 = vmul.f32 %v3778, %v3778
    %v3781 = vmul.f32 %v3779, %v3779
    %v3782 = vadd.f32 %v3780, %v3781
    %v3783 = vrot.slane %v3782, 4
    %v3784 = vadd.f32 %v3782, %v3783
    %v3785 = vrot.slane %v3784, 2
    %v3786 = vadd.f32 %v3784, %v3785
    %v3787 = vrot.slane %v3786, 1
    %v3788 = vadd.f32 %v3786, %v3787
    %v3789 = vmul.f32 %v3788, %v310
    %v3790 = vadd.f32 %v3789, 1e-05
    %v3791 = vrsqrt.pop %v3790
    %v3792 = vmul.f32 %v3767, %v3791
    %v3793 = vmul.f32 %v3777, %v3792
    %v3794 = vsub.f32 %v3769, %v3793
    %v3796 = vlaneseq
    %v3797 = vshrl.u32 %v3796, 7
    %v3798 = vsub.s32 0, %v3797
    %v3799 = vrot.slane %v3792, %v3798
    %v3801 = vmul.f32 %v3758, %v3799
    %v3802 = vmul.f32 %v3763, %v3799
    %v3804 = vlaneseq
    %v3805 = vshrl.u32 %v3804, 7
    %v3806 = vsub.s32 0, %v3805
    %v3807 = vrot.slane %v3794, %v3806
    %v3809 = vadd.f32 %v3801, %v3807
    %v3810 = vadd.f32 %v3802, %v3807
    %v3811 = vadd.f32 %v3809, %v3506
    %v3812 = vadd.f32 %v3810, %v3508
    %v3813 = vxor.u32 %v3811, 2147483648
    %v3814 = vxor.u32 %v3812, 2147483648
    %v3815 = vmul.f32 %v3813, 1.442695
    %v3816 = vpow.pop %v3815
    %v3817 = vmul.f32 %v3814, 1.442695
    %v3818 = vpow.pop %v3817
    %v3819 = vadd.f32 %v3816, 1.0
    %v3820 = vadd.f32 %v3818, 1.0
    %v3821 = vrcp.pop %v3819
    %v3822 = vmul.f32 1.0, %v3821
    %v3823 = vrcp.pop %v3820
    %v3824 = vmul.f32 1.0, %v3823
    %s3825 = scalar_lea.vmem [#allocation10], 1408
    %v3826 = vld [vmem:[%s3825] sm:$0xff]
    %v3827 = vld [vmem:[%s3825 + $0x8] sm:$0xff]
    %v3828 = vld [vmem:[%s3825 + $0x10] sm:$0xff]
    %v3829 = vld [vmem:[%s3825 + $0x18] sm:$0xff]
    %v3830 = vld [vmem:[%s3825 + $0x20] sm:$0xff]
    %v3831 = vld [vmem:[%s3825 + $0x28] sm:$0xff]
    %v3832 = vld [vmem:[%s3825 + $0x30] sm:$0xff]
    %v3833 = vld [vmem:[%s3825 + $0x38] sm:$0xff]
    %v3834 = vld [vmem:[%s3825 + $0x40] sm:$0xff]
    %v3835 = vld [vmem:[%s3825 + $0x48] sm:$0xff]
    %v3836 = vld [vmem:[%s3825 + $0x50] sm:$0xff]
    %v3837 = vld [vmem:[%s3825 + $0x58] sm:$0xff]
    %v3838 = vld [vmem:[%s3825 + $0x60] sm:$0xff]
    %v3839 = vld [vmem:[%s3825 + $0x68] sm:$0xff]
    %v3840 = vld [vmem:[%s3825 + $0x70] sm:$0xff]
    %v3841 = vld [vmem:[%s3825 + $0x78] sm:$0xff]
    %s3842 = scalar_lea.vmem %s6, 11
    %v3843 = vld [vmem:[%s3842] sm:$0x1]
    %v3845 = vlaneseq
    %v3846 = vshrl.u32 %v3845, 7
    %v3847 = vsub.s32 0, %v3846
    %v3848 = vrot.slane %v3843, %v3847
    %3850 = vmatprep.subr.mxu0 0.0
    %3851 = vmatpush1.msra.mxu0 %v3826
    %3852 = vmatprep.subr.mxu0 0.0
    %3853 = vmatpush1.msra.mxu0 %v3827
    %3854 = vmatprep.subr.mxu0 0.0
    %3855 = vmatpush1.msra.mxu0 %v3828
    %3856 = vmatprep.subr.mxu0 0.0
    %3857 = vmatpush1.msra.mxu0 %v3829
    %3858 = vmatprep.subr.mxu0 0.0
    %3859 = vmatpush1.msra.mxu0 %v3830
    %3860 = vmatprep.subr.mxu0 0.0
    %3861 = vmatpush1.msra.mxu0 %v3831
    %3862 = vmatprep.subr.mxu0 0.0
    %3863 = vmatpush1.msra.mxu0 %v3832
    %3864 = vmatprep.subr.mxu0 0.0
    %3865 = vmatpush1.msra.mxu0 %v3833
    %3866 = vmatprep.subr.mxu0 0.0
    %3867 = vmatpush1.msra.mxu0 %v3834
    %3868 = vmatprep.subr.mxu0 0.0
    %3869 = vmatpush1.msra.mxu0 %v3835
    %3870 = vmatprep.subr.mxu0 0.0
    %3871 = vmatpush1.msra.mxu0 %v3836
    %3872 = vmatprep.subr.mxu0 0.0
    %3873 = vmatpush1.msra.mxu0 %v3837
    %3874 = vmatprep.subr.mxu0 0.0
    %3875 = vmatpush1.msra.mxu0 %v3838
    %3876 = vmatprep.subr.mxu0 0.0
    %3877 = vmatpush1.msra.mxu0 %v3839
    %3878 = vmatprep.subr.mxu0 0.0
    %3879 = vmatpush1.msra.mxu0 %v3840
    %3880 = vmatprep.subr.mxu0 0.0
    %3881 = vmatpush1.msra.mxu0 %v3841
    %3882 = vmatprep.subr.mxu0 0.0
    %3883 = vmatpush1.msra.mxu0 0.0
    %3884 = vmatprep.subr.mxu0 0.0
    %3885 = vmatpush1.msra.mxu0 0.0
    %3886 = vmatprep.subr.mxu0 0.0
    %3887 = vmatpush1.msra.mxu0 0.0
    %3888 = vmatprep.subr.mxu0 0.0
    %3889 = vmatpush1.msra.mxu0 0.0
    %3890 = vmatprep.subr.mxu0 0.0
    %3891 = vmatpush1.msra.mxu0 0.0
    %3892 = vmatprep.subr.mxu0 0.0
    %3893 = vmatpush1.msra.mxu0 0.0
    %3894 = vmatprep.subr.mxu0 0.0
    %3895 = vmatpush1.msra.mxu0 0.0
    %3896 = vmatprep.subr.mxu0 0.0
    %3897 = vmatpush1.msra.mxu0 0.0
    %3898 = vmatprep.subr.mxu0 0.0
    %3899 = vmatpush1.msra.mxu0 0.0
    %3900 = vmatprep.subr.mxu0 0.0
    %3901 = vmatpush1.msra.mxu0 0.0
    %3902 = vmatprep.subr.mxu0 0.0
    %3903 = vmatpush1.msra.mxu0 0.0
    %3904 = vmatprep.subr.mxu0 0.0
    %3905 = vmatpush1.msra.mxu0 0.0
    %3906 = vmatprep.subr.mxu0 0.0
    %3907 = vmatpush1.msra.mxu0 0.0
    %3908 = vmatprep.subr.mxu0 0.0
    %3909 = vmatpush1.msra.mxu0 0.0
    %3910 = vmatprep.subr.mxu0 0.0
    %3911 = vmatpush1.msra.mxu0 0.0
    %3912 = vmatprep.subr.mxu0 0.0
    %3913 = vmatpush1.msra.mxu0 0.0
    %3914 = vmatprep.mubr.f32.mxu0 0.0
    %3915 = vmatmul.mubr.f32.gmra.mrb[0].mxu0 %v3822
    %v3916 = vpop.f32.mrb[0].mxu0
    %v3917 = vadd.f32 %v3848, %v3916
    %v3918 = vpop.f32.mrb[0].mxu0
    %3919 = vmatprep.mubr.f32.mxu0 0.0
    %3920 = vmatmul.mubr.f32.gmra.mrb[0].mxu0 %v3824
    %v3921 = vpop.f32.mrb[0].mxu0
    %v3922 = vadd.f32 %v3848, %v3921
    %v3923 = vpop.f32.mrb[0].mxu0
    %3924 = vdwg.mxu0
    %s3925 = scalar_lea.vmem %s7, 11
    %v3926 = vld [vmem:[%s3925] sm:$0x1]
    %s3927 = scalar_lea.vmem [#allocation11], 11
    %v3928 = vld [vmem:[%s3927] sm:$0x1]
    %v3929 = vadd.f32 %v3917, %v3922
    %v3930 = vrot.slane %v3929, 4
    %v3931 = vadd.f32 %v3929, %v3930
    %v3932 = vrot.slane %v3931, 2
    %v3933 = vadd.f32 %v3931, %v3932
    %v3934 = vrot.slane %v3933, 1
    %v3935 = vadd.f32 %v3933, %v3934
    %v3936 = vmul.f32 %v3935, %v310
    %v3937 = vsub.f32 %v3917, %v3936
    %v3938 = vsub.f32 %v3922, %v3936
    %v3939 = vmul.f32 %v3937, %v3937
    %v3940 = vmul.f32 %v3938, %v3938
    %v3941 = vadd.f32 %v3939, %v3940
    %v3942 = vrot.slane %v3941, 4
    %v3943 = vadd.f32 %v3941, %v3942
    %v3944 = vrot.slane %v3943, 2
    %v3945 = vadd.f32 %v3943, %v3944
    %v3946 = vrot.slane %v3945, 1
    %v3947 = vadd.f32 %v3945, %v3946
    %v3948 = vmul.f32 %v3947, %v310
    %v3949 = vadd.f32 %v3948, 1e-05
    %v3950 = vrsqrt.pop %v3949
    %v3951 = vmul.f32 %v3926, %v3950
    %v3952 = vmul.f32 %v3936, %v3951
    %v3953 = vsub.f32 %v3928, %v3952
    %v3955 = vlaneseq
    %v3956 = vshrl.u32 %v3955, 7
    %v3957 = vsub.s32 0, %v3956
    %v3958 = vrot.slane %v3951, %v3957
    %v3960 = vmul.f32 %v3917, %v3958
    %v3961 = vmul.f32 %v3922, %v3958
    %v3963 = vlaneseq
    %v3964 = vshrl.u32 %v3963, 7
    %v3965 = vsub.s32 0, %v3964
    %v3966 = vrot.slane %v3953, %v3965
    %v3968 = vadd.f32 %v3960, %v3966
    %v3969 = vadd.f32 %v3961, %v3966
    %v3970 = vxor.u32 %v3968, 2147483648
    %v3971 = vxor.u32 %v3969, 2147483648
    %v3972 = vmul.f32 %v3970, 1.442695
    %v3973 = vpow.pop %v3972
    %v3974 = vmul.f32 %v3971, 1.442695
    %v3975 = vpow.pop %v3974
    %v3976 = vadd.f32 %v3973, 1.0
    %v3977 = vadd.f32 %v3975, 1.0
    %v3978 = vrcp.pop %v3976
    %v3979 = vmul.f32 1.0, %v3978
    %v3980 = vrcp.pop %v3977
    %v3981 = vmul.f32 1.0, %v3980
    %s3982 = scalar_lea.vmem [#allocation13], 1408
    %v3983 = vld [vmem:[%s3982] sm:$0xff]
    %v3984 = vld [vmem:[%s3982 + $0x8] sm:$0xff]
    %v3985 = vld [vmem:[%s3982 + $0x10] sm:$0xff]
    %v3986 = vld [vmem:[%s3982 + $0x18] sm:$0xff]
    %v3987 = vld [vmem:[%s3982 + $0x20] sm:$0xff]
    %v3988 = vld [vmem:[%s3982 + $0x28] sm:$0xff]
    %v3989 = vld [vmem:[%s3982 + $0x30] sm:$0xff]
    %v3990 = vld [vmem:[%s3982 + $0x38] sm:$0xff]
    %v3991 = vld [vmem:[%s3982 + $0x40] sm:$0xff]
    %v3992 = vld [vmem:[%s3982 + $0x48] sm:$0xff]
    %v3993 = vld [vmem:[%s3982 + $0x50] sm:$0xff]
    %v3994 = vld [vmem:[%s3982 + $0x58] sm:$0xff]
    %v3995 = vld [vmem:[%s3982 + $0x60] sm:$0xff]
    %v3996 = vld [vmem:[%s3982 + $0x68] sm:$0xff]
    %v3997 = vld [vmem:[%s3982 + $0x70] sm:$0xff]
    %v3998 = vld [vmem:[%s3982 + $0x78] sm:$0xff]
    %s3999 = scalar_lea.vmem %s10, 11
    %v4000 = vld [vmem:[%s3999] sm:$0x1]
    %v4002 = vlaneseq
    %v4003 = vshrl.u32 %v4002, 7
    %v4004 = vsub.s32 0, %v4003
    %v4005 = vrot.slane %v4000, %v4004
    %4007 = vmatprep.subr.mxu0 0.0
    %4008 = vmatpush1.msra.mxu0 %v3983
    %4009 = vmatprep.subr.mxu0 0.0
    %4010 = vmatpush1.msra.mxu0 %v3984
    %4011 = vmatprep.subr.mxu0 0.0
    %4012 = vmatpush1.msra.mxu0 %v3985
    %4013 = vmatprep.subr.mxu0 0.0
    %4014 = vmatpush1.msra.mxu0 %v3986
    %4015 = vmatprep.subr.mxu0 0.0
    %4016 = vmatpush1.msra.mxu0 %v3987
    %4017 = vmatprep.subr.mxu0 0.0
    %4018 = vmatpush1.msra.mxu0 %v3988
    %4019 = vmatprep.subr.mxu0 0.0
    %4020 = vmatpush1.msra.mxu0 %v3989
    %4021 = vmatprep.subr.mxu0 0.0
    %4022 = vmatpush1.msra.mxu0 %v3990
    %4023 = vmatprep.subr.mxu0 0.0
    %4024 = vmatpush1.msra.mxu0 %v3991
    %4025 = vmatprep.subr.mxu0 0.0
    %4026 = vmatpush1.msra.mxu0 %v3992
    %4027 = vmatprep.subr.mxu0 0.0
    %4028 = vmatpush1.msra.mxu0 %v3993
    %4029 = vmatprep.subr.mxu0 0.0
    %4030 = vmatpush1.msra.mxu0 %v3994
    %4031 = vmatprep.subr.mxu0 0.0
    %4032 = vmatpush1.msra.mxu0 %v3995
    %4033 = vmatprep.subr.mxu0 0.0
    %4034 = vmatpush1.msra.mxu0 %v3996
    %4035 = vmatprep.subr.mxu0 0.0
    %4036 = vmatpush1.msra.mxu0 %v3997
    %4037 = vmatprep.subr.mxu0 0.0
    %4038 = vmatpush1.msra.mxu0 %v3998
    %4039 = vmatprep.subr.mxu0 0.0
    %4040 = vmatpush1.msra.mxu0 0.0
    %4041 = vmatprep.subr.mxu0 0.0
    %4042 = vmatpush1.msra.mxu0 0.0
    %4043 = vmatprep.subr.mxu0 0.0
    %4044 = vmatpush1.msra.mxu0 0.0
    %4045 = vmatprep.subr.mxu0 0.0
    %4046 = vmatpush1.msra.mxu0 0.0
    %4047 = vmatprep.subr.mxu0 0.0
    %4048 = vmatpush1.msra.mxu0 0.0
    %4049 = vmatprep.subr.mxu0 0.0
    %4050 = vmatpush1.msra.mxu0 0.0
    %4051 = vmatprep.subr.mxu0 0.0
    %4052 = vmatpush1.msra.mxu0 0.0
    %4053 = vmatprep.subr.mxu0 0.0
    %4054 = vmatpush1.msra.mxu0 0.0
    %4055 = vmatprep.subr.mxu0 0.0
    %4056 = vmatpush1.msra.mxu0 0.0
    %4057 = vmatprep.subr.mxu0 0.0
    %4058 = vmatpush1.msra.mxu0 0.0
    %4059 = vmatprep.subr.mxu0 0.0
    %4060 = vmatpush1.msra.mxu0 0.0
    %4061 = vmatprep.subr.mxu0 0.0
    %4062 = vmatpush1.msra.mxu0 0.0
    %4063 = vmatprep.subr.mxu0 0.0
    %4064 = vmatpush1.msra.mxu0 0.0
    %4065 = vmatprep.subr.mxu0 0.0
    %4066 = vmatpush1.msra.mxu0 0.0
    %4067 = vmatprep.subr.mxu0 0.0
    %4068 = vmatpush1.msra.mxu0 0.0
    %4069 = vmatprep.subr.mxu0 0.0
    %4070 = vmatpush1.msra.mxu0 0.0
    %4071 = vmatprep.mubr.f32.mxu0 0.0
    %4072 = vmatmul.mubr.f32.gmra.mrb[0].mxu0 %v3979
    %v4073 = vpop.f32.mrb[0].mxu0
    %v4074 = vadd.f32 %v4005, %v4073
    %v4075 = vpop.f32.mrb[0].mxu0
    %4076 = vmatprep.mubr.f32.mxu0 0.0
    %4077 = vmatmul.mubr.f32.gmra.mrb[0].mxu0 %v3981
    %v4078 = vpop.f32.mrb[0].mxu0
    %v4079 = vadd.f32 %v4005, %v4078
    %v4080 = vpop.f32.mrb[0].mxu0
    %4081 = vdwg.mxu0
    %s4082 = scalar_lea.vmem [#allocation14], 11
    %v4083 = vld [vmem:[%s4082] sm:$0x1]
    %s4084 = scalar_lea.vmem [#allocation16], 11
    %v4085 = vld [vmem:[%s4084] sm:$0x1]
    %v4086 = vadd.f32 %v4074, %v4079
    %v4087 = vrot.slane %v4086, 4
    %v4088 = vadd.f32 %v4086, %v4087
    %v4089 = vrot.slane %v4088, 2
    %v4090 = vadd.f32 %v4088, %v4089
    %v4091 = vrot.slane %v4090, 1
    %v4092 = vadd.f32 %v4090, %v4091
    %v4093 = vmul.f32 %v4092, %v310
    %v4094 = vsub.f32 %v4074, %v4093
    %v4095 = vsub.f32 %v4079, %v4093
    %v4096 = vmul.f32 %v4094, %v4094
    %v4097 = vmul.f32 %v4095, %v4095
    %v4098 = vadd.f32 %v4096, %v4097
    %v4099 = vrot.slane %v4098, 4
    %v4100 = vadd.f32 %v4098, %v4099
    %v4101 = vrot.slane %v4100, 2
    %v4102 = vadd.f32 %v4100, %v4101
    %v4103 = vrot.slane %v4102, 1
    %v4104 = vadd.f32 %v4102, %v4103
    %v4105 = vmul.f32 %v4104, %v310
    %v4106 = vadd.f32 %v4105, 1e-05
    %v4107 = vrsqrt.pop %v4106
    %v4108 = vmul.f32 %v4083, %v4107
    %v4109 = vmul.f32 %v4093, %v4108
    %v4110 = vsub.f32 %v4085, %v4109
    %v4112 = vlaneseq
    %v4113 = vshrl.u32 %v4112, 7
    %v4114 = vsub.s32 0, %v4113
    %v4115 = vrot.slane %v4108, %v4114
    %v4117 = vmul.f32 %v4074, %v4115
    %v4118 = vmul.f32 %v4079, %v4115
    %v4120 = vlaneseq
    %v4121 = vshrl.u32 %v4120, 7
    %v4122 = vsub.s32 0, %v4121
    %v4123 = vrot.slane %v4110, %v4122
    %v4125 = vadd.f32 %v4117, %v4123
    %v4126 = vadd.f32 %v4118, %v4123
    %v4127 = vadd.f32 %v4125, %v3822
    %v4128 = vadd.f32 %v4126, %v3824
    %v4129 = vxor.u32 %v4127, 2147483648
    %v4130 = vxor.u32 %v4128, 2147483648
    %v4131 = vmul.f32 %v4129, 1.442695
    %v4132 = vpow.pop %v4131
    %v4133 = vmul.f32 %v4130, 1.442695
    %v4134 = vpow.pop %v4133
    %v4135 = vadd.f32 %v4132, 1.0
    %v4136 = vadd.f32 %v4134, 1.0
    %v4137 = vrcp.pop %v4135
    %v4138 = vmul.f32 1.0, %v4137
    %v4139 = vrcp.pop %v4136
    %v4140 = vmul.f32 1.0, %v4139
    %v4141 = vld [vmem:[#allocation17] sm:$0xff]
    %v4142 = vld [vmem:[#allocation17 + $0x8] sm:$0xff]
    %v4143 = vld [vmem:[#allocation17 + $0x10] sm:$0xff]
    %v4144 = vld [vmem:[#allocation17 + $0x18] sm:$0xff]
    %v4145 = vld [vmem:[#allocation17 + $0x20] sm:$0xff]
    %v4146 = vld [vmem:[#allocation17 + $0x28] sm:$0xff]
    %v4147 = vld [vmem:[#allocation17 + $0x30] sm:$0xff]
    %v4148 = vld [vmem:[#allocation17 + $0x38] sm:$0xff]
    %v4149 = vld [vmem:[#allocation17 + $0x40] sm:$0xff]
    %v4150 = vld [vmem:[#allocation17 + $0x48] sm:$0xff]
    %v4151 = vld [vmem:[#allocation17 + $0x50] sm:$0xff]
    %v4152 = vld [vmem:[#allocation17 + $0x58] sm:$0xff]
    %v4153 = vld [vmem:[#allocation17 + $0x60] sm:$0xff]
    %v4154 = vld [vmem:[#allocation17 + $0x68] sm:$0xff]
    %v4155 = vld [vmem:[#allocation17 + $0x70] sm:$0xff]
    %v4156 = vld [vmem:[#allocation17 + $0x78] sm:$0xff]
    %v4157 = vld [vmem:[#allocation17 + $0x80] sm:$0xff]
    %v4158 = vld [vmem:[#allocation17 + $0x88] sm:$0xff]
    %v4159 = vld [vmem:[#allocation17 + $0x90] sm:$0xff]
    %v4160 = vld [vmem:[#allocation17 + $0x98] sm:$0xff]
    %v4161 = vld [vmem:[#allocation17 + $0xa0] sm:$0xff]
    %v4162 = vld [vmem:[#allocation17 + $0xa8] sm:$0xff]
    %v4163 = vld [vmem:[#allocation17 + $0xb0] sm:$0xff]
    %v4164 = vld [vmem:[#allocation17 + $0xb8] sm:$0xff]
    %v4165 = vld [vmem:[#allocation17 + $0xc0] sm:$0xff]
    %v4166 = vld [vmem:[#allocation17 + $0xc8] sm:$0xff]
    %v4167 = vld [vmem:[#allocation17 + $0xd0] sm:$0xff]
    %v4168 = vld [vmem:[#allocation17 + $0xd8] sm:$0xff]
    %v4169 = vld [vmem:[#allocation17 + $0xe0] sm:$0xff]
    %v4170 = vld [vmem:[#allocation17 + $0xe8] sm:$0xff]
    %v4171 = vld [vmem:[#allocation17 + $0xf0] sm:$0xff]
    %v4172 = vld [vmem:[#allocation17 + $0xf8] sm:$0xff]
    %v4173 = vld [vmem:[#allocation17 + $0x100] sm:$0xff]
    %v4174 = vld [vmem:[#allocation17 + $0x108] sm:$0xff]
    %v4175 = vld [vmem:[#allocation17 + $0x110] sm:$0xff]
    %v4176 = vld [vmem:[#allocation17 + $0x118] sm:$0xff]
    %v4177 = vld [vmem:[#allocation17 + $0x120] sm:$0xff]
    %v4178 = vld [vmem:[#allocation17 + $0x128] sm:$0xff]
    %v4179 = vld [vmem:[#allocation17 + $0x130] sm:$0xff]
    %v4180 = vld [vmem:[#allocation17 + $0x138] sm:$0xff]
    %v4181 = vld [vmem:[#allocation17 + $0x140] sm:$0xff]
    %v4182 = vld [vmem:[#allocation17 + $0x148] sm:$0xff]
    %v4183 = vld [vmem:[#allocation17 + $0x150] sm:$0xff]
    %v4184 = vld [vmem:[#allocation17 + $0x158] sm:$0xff]
    %v4185 = vld [vmem:[#allocation17 + $0x160] sm:$0xff]
    %v4186 = vld [vmem:[#allocation17 + $0x168] sm:$0xff]
    %v4187 = vld [vmem:[#allocation17 + $0x170] sm:$0xff]
    %v4188 = vld [vmem:[#allocation17 + $0x178] sm:$0xff]
    %v4189 = vld [vmem:[#allocation17 + $0x180] sm:$0xff]
    %v4190 = vld [vmem:[#allocation17 + $0x188] sm:$0xff]
    %v4191 = vld [vmem:[#allocation17 + $0x190] sm:$0xff]
    %v4192 = vld [vmem:[#allocation17 + $0x198] sm:$0xff]
    %v4193 = vld [vmem:[#allocation17 + $0x1a0] sm:$0xff]
    %v4194 = vld [vmem:[#allocation17 + $0x1a8] sm:$0xff]
    %v4195 = vld [vmem:[#allocation17 + $0x1b0] sm:$0xff]
    %v4196 = vld [vmem:[#allocation17 + $0x1b8] sm:$0xff]
    %v4197 = vld [vmem:[#allocation17 + $0x1c0] sm:$0xff]
    %v4198 = vld [vmem:[#allocation17 + $0x1c8] sm:$0xff]
    %v4199 = vld [vmem:[#allocation17 + $0x1d0] sm:$0xff]
    %v4200 = vld [vmem:[#allocation17 + $0x1d8] sm:$0xff]
    %v4201 = vld [vmem:[#allocation17 + $0x1e0] sm:$0xff]
    %v4202 = vld [vmem:[#allocation17 + $0x1e8] sm:$0xff]
    %v4203 = vld [vmem:[#allocation17 + $0x1f0] sm:$0xff]
    %v4204 = vld [vmem:[#allocation17 + $0x1f8] sm:$0xff]
    %v4205 = vld [vmem:[%s14] sm:$0xf]
    %v4207 = vlaneseq
    %v4208 = vshrl.u32 %v4207, 7
    %v4209 = vsub.s32 0, %v4208
    %v4210 = vrot.slane %v4205, %v4209
    %v4211 = vlaneseq
    %v4212 = vshrl.u32 %v4211, 7
    %v4213 = vsub.s32 1, %v4212
    %v4214 = vrot.slane %v4205, %v4213
    %v4215 = vlaneseq
    %v4216 = vshrl.u32 %v4215, 7
    %v4217 = vsub.s32 2, %v4216
    %v4218 = vrot.slane %v4205, %v4217
    %v4219 = vlaneseq
    %v4220 = vshrl.u32 %v4219, 7
    %v4221 = vsub.s32 3, %v4220
    %v4222 = vrot.slane %v4205, %v4221
    %4227 = vmatprep.subr.mxu0 %v4142
    %4228 = vmatpush1.msra.mxu0 %v4141
    %4229 = vmatprep.subr.mxu0 %v4146
    %4230 = vmatpush1.msra.mxu0 %v4145
    %4231 = vmatprep.subr.mxu0 %v4150
    %4232 = vmatpush1.msra.mxu0 %v4149
    %4233 = vmatprep.subr.mxu0 %v4154
    %4234 = vmatpush1.msra.mxu0 %v4153
    %4235 = vmatprep.subr.mxu0 %v4158
    %4236 = vmatpush1.msra.mxu0 %v4157
    %4237 = vmatprep.subr.mxu0 %v4162
    %4238 = vmatpush1.msra.mxu0 %v4161
    %4239 = vmatprep.subr.mxu0 %v4166
    %4240 = vmatpush1.msra.mxu0 %v4165
    %4241 = vmatprep.subr.mxu0 %v4170
    %4242 = vmatpush1.msra.mxu0 %v4169
    %4243 = vmatprep.subr.mxu0 %v4174
    %4244 = vmatpush1.msra.mxu0 %v4173
    %4245 = vmatprep.subr.mxu0 %v4178
    %4246 = vmatpush1.msra.mxu0 %v4177
    %4247 = vmatprep.subr.mxu0 %v4182
    %4248 = vmatpush1.msra.mxu0 %v4181
    %4249 = vmatprep.subr.mxu0 %v4186
    %4250 = vmatpush1.msra.mxu0 %v4185
    %4251 = vmatprep.subr.mxu0 %v4190
    %4252 = vmatpush1.msra.mxu0 %v4189
    %4253 = vmatprep.subr.mxu0 %v4194
    %4254 = vmatpush1.msra.mxu0 %v4193
    %4255 = vmatprep.subr.mxu0 %v4198
    %4256 = vmatpush1.msra.mxu0 %v4197
    %4257 = vmatprep.subr.mxu0 %v4202
    %4258 = vmatpush1.msra.mxu0 %v4201
    %4259 = vmatprep.subr.mxu0 0.0
    %4260 = vmatpush1.msra.mxu0 0.0
    %4261 = vmatprep.subr.mxu0 0.0
    %4262 = vmatpush1.msra.mxu0 0.0
    %4263 = vmatprep.subr.mxu0 0.0
    %4264 = vmatpush1.msra.mxu0 0.0
    %4265 = vmatprep.subr.mxu0 0.0
    %4266 = vmatpush1.msra.mxu0 0.0
    %4267 = vmatprep.subr.mxu0 0.0
    %4268 = vmatpush1.msra.mxu0 0.0
    %4269 = vmatprep.subr.mxu0 0.0
    %4270 = vmatpush1.msra.mxu0 0.0
    %4271 = vmatprep.subr.mxu0 0.0
    %4272 = vmatpush1.msra.mxu0 0.0
    %4273 = vmatprep.subr.mxu0 0.0
    %4274 = vmatpush1.msra.mxu0 0.0
    %4275 = vmatprep.subr.mxu0 0.0
    %4276 = vmatpush1.msra.mxu0 0.0
    %4277 = vmatprep.subr.mxu0 0.0
    %4278 = vmatpush1.msra.mxu0 0.0
    %4279 = vmatprep.subr.mxu0 0.0
    %4280 = vmatpush1.msra.mxu0 0.0
    %4281 = vmatprep.subr.mxu0 0.0
    %4282 = vmatpush1.msra.mxu0 0.0
    %4283 = vmatprep.subr.mxu0 0.0
    %4284 = vmatpush1.msra.mxu0 0.0
    %4285 = vmatprep.subr.mxu0 0.0
    %4286 = vmatpush1.msra.mxu0 0.0
    %4287 = vmatprep.subr.mxu0 0.0
    %4288 = vmatpush1.msra.mxu0 0.0
    %4289 = vmatprep.subr.mxu0 0.0
    %4290 = vmatpush1.msra.mxu0 0.0
    %4291 = vmatprep.mubr.f32.mxu0 0.0
    %4292 = vmatmul.mubr.f32.gmra.mrb[0].mxu0 %v4138
    %v4293 = vpop.f32.mrb[0].mxu0
    %v4294 = vadd.f32 %v4210, %v4293
    %v4295 = vpop.f32.mrb[0].mxu0
    %v4296 = vadd.f32 %v4214, %v4295
    %4297 = vmatprep.mubr.f32.mxu0 0.0
    %4298 = vmatmul.mubr.f32.gmra.mrb[0].mxu0 %v4140
    %v4299 = vpop.f32.mrb[0].mxu0
    %v4300 = vadd.f32 %v4210, %v4299
    %v4301 = vpop.f32.mrb[0].mxu0
    %v4302 = vadd.f32 %v4214, %v4301
    %4303 = vdwg.mxu0
    %4304 = vmatprep.subr.mxu0 %v4144
    %4305 = vmatpush1.msra.mxu0 %v4143
    %4306 = vmatprep.subr.mxu0 %v4148
    %4307 = vmatpush1.msra.mxu0 %v4147
    %4308 = vmatprep.subr.mxu0 %v4152
    %4309 = vmatpush1.msra.mxu0 %v4151
    %4310 = vmatprep.subr.mxu0 %v4156
    %4311 = vmatpush1.msra.mxu0 %v4155
    %4312 = vmatprep.subr.mxu0 %v4160
    %4313 = vmatpush1.msra.mxu0 %v4159
    %4314 = vmatprep.subr.mxu0 %v4164
    %4315 = vmatpush1.msra.mxu0 %v4163
    %4316 = vmatprep.subr.mxu0 %v4168
    %4317 = vmatpush1.msra.mxu0 %v4167
    %4318 = vmatprep.subr.mxu0 %v4172
    %4319 = vmatpush1.msra.mxu0 %v4171
    %4320 = vmatprep.subr.mxu0 %v4176
    %4321 = vmatpush1.msra.mxu0 %v4175
    %4322 = vmatprep.subr.mxu0 %v4180
    %4323 = vmatpush1.msra.mxu0 %v4179
    %4324 = vmatprep.subr.mxu0 %v4184
    %4325 = vmatpush1.msra.mxu0 %v4183
    %4326 = vmatprep.subr.mxu0 %v4188
    %4327 = vmatpush1.msra.mxu0 %v4187
    %4328 = vmatprep.subr.mxu0 %v4192
    %4329 = vmatpush1.msra.mxu0 %v4191
    %4330 = vmatprep.subr.mxu0 %v4196
    %4331 = vmatpush1.msra.mxu0 %v4195
    %4332 = vmatprep.subr.mxu0 %v4200
    %4333 = vmatpush1.msra.mxu0 %v4199
    %4334 = vmatprep.subr.mxu0 %v4204
    %4335 = vmatpush1.msra.mxu0 %v4203
    %4336 = vmatprep.subr.mxu0 0.0
    %4337 = vmatpush1.msra.mxu0 0.0
    %4338 = vmatprep.subr.mxu0 0.0
    %4339 = vmatpush1.msra.mxu0 0.0
    %4340 = vmatprep.subr.mxu0 0.0
    %4341 = vmatpush1.msra.mxu0 0.0
    %4342 = vmatprep.subr.mxu0 0.0
    %4343 = vmatpush1.msra.mxu0 0.0
    %4344 = vmatprep.subr.mxu0 0.0
    %4345 = vmatpush1.msra.mxu0 0.0
    %4346 = vmatprep.subr.mxu0 0.0
    %4347 = vmatpush1.msra.mxu0 0.0
    %4348 = vmatprep.subr.mxu0 0.0
    %4349 = vmatpush1.msra.mxu0 0.0
    %4350 = vmatprep.subr.mxu0 0.0
    %4351 = vmatpush1.msra.mxu0 0.0
    %4352 = vmatprep.subr.mxu0 0.0
    %4353 = vmatpush1.msra.mxu0 0.0
    %4354 = vmatprep.subr.mxu0 0.0
    %4355 = vmatpush1.msra.mxu0 0.0
    %4356 = vmatprep.subr.mxu0 0.0
    %4357 = vmatpush1.msra.mxu0 0.0
    %4358 = vmatprep.subr.mxu0 0.0
    %4359 = vmatpush1.msra.mxu0 0.0
    %4360 = vmatprep.subr.mxu0 0.0
    %4361 = vmatpush1.msra.mxu0 0.0
    %4362 = vmatprep.subr.mxu0 0.0
    %4363 = vmatpush1.msra.mxu0 0.0
    %4364 = vmatprep.subr.mxu0 0.0
    %4365 = vmatpush1.msra.mxu0 0.0
    %4366 = vmatprep.subr.mxu0 0.0
    %4367 = vmatpush1.msra.mxu0 0.0
    %4368 = vmatprep.mubr.f32.mxu0 0.0
    %4369 = vmatmul.mubr.f32.gmra.mrb[0].mxu0 %v4138
    %v4370 = vpop.f32.mrb[0].mxu0
    %v4371 = vadd.f32 %v4218, %v4370
    %v4372 = vpop.f32.mrb[0].mxu0
    %v4373 = vadd.f32 %v4222, %v4372
    %4374 = vmatprep.mubr.f32.mxu0 0.0
    %4375 = vmatmul.mubr.f32.gmra.mrb[0].mxu0 %v4140
    %v4376 = vpop.f32.mrb[0].mxu0
    %v4377 = vadd.f32 %v4218, %v4376
    %v4378 = vpop.f32.mrb[0].mxu0
    %v4379 = vadd.f32 %v4222, %v4378
    %4380 = vdwg.mxu0
    %v4381 = vxor.u32 %v4294, 2147483648
    %v4382 = vxor.u32 %v4296, 2147483648
    %v4383 = vxor.u32 %v4371, 2147483648
    %v4384 = vxor.u32 %v4373, 2147483648
    %v4385 = vxor.u32 %v4300, 2147483648
    %v4386 = vxor.u32 %v4302, 2147483648
    %v4387 = vxor.u32 %v4377, 2147483648
    %v4388 = vxor.u32 %v4379, 2147483648
    %v4389 = vmul.f32 %v4381, 1.442695
    %v4390 = vpow.pop %v4389
    %v4391 = vmul.f32 %v4382, 1.442695
    %v4392 = vpow.pop %v4391
    %v4393 = vmul.f32 %v4383, 1.442695
    %v4394 = vpow.pop %v4393
    %v4395 = vmul.f32 %v4384, 1.442695
    %v4396 = vpow.pop %v4395
    %v4397 = vmul.f32 %v4385, 1.442695
    %v4398 = vpow.pop %v4397
    %v4399 = vmul.f32 %v4386, 1.442695
    %v4400 = vpow.pop %v4399
    %v4401 = vmul.f32 %v4387, 1.442695
    %v4402 = vpow.pop %v4401
    %v4403 = vmul.f32 %v4388, 1.442695
    %v4404 = vpow.pop %v4403
    %v4405 = vadd.f32 %v4390, 1.0
    %v4406 = vadd.f32 %v4392, 1.0
    %v4407 = vadd.f32 %v4394, 1.0
    %v4408 = vadd.f32 %v4396, 1.0
    %v4409 = vadd.f32 %v4398, 1.0
    %v4410 = vadd.f32 %v4400, 1.0
    %v4411 = vadd.f32 %v4402, 1.0
    %v4412 = vadd.f32 %v4404, 1.0
    %v4413 = vrcp.pop %v4405
    %v4414 = vmul.f32 1.0, %v4413
    %v4415 = vrcp.pop %v4406
    %v4416 = vmul.f32 1.0, %v4415
    %v4417 = vrcp.pop %v4407
    %v4418 = vmul.f32 1.0, %v4417
    %v4419 = vrcp.pop %v4408
    %v4420 = vmul.f32 1.0, %v4419
    %v4421 = vrcp.pop %v4409
    %v4422 = vmul.f32 1.0, %v4421
    %v4423 = vrcp.pop %v4410
    %v4424 = vmul.f32 1.0, %v4423
    %v4425 = vrcp.pop %v4411
    %v4426 = vmul.f32 1.0, %v4425
    %v4427 = vrcp.pop %v4412
    %v4428 = vmul.f32 1.0, %v4427
    %4429 = vst [vmem:[#allocation19] sm:$0xff] %v4414
    %4430 = vst [vmem:[#allocation19 + $0x8] sm:$0xff] %v4416
    %4431 = vst [vmem:[#allocation19 + $0x10] sm:$0xff] %v4418
    %4432 = vst [vmem:[#allocation19 + $0x18] sm:$0xff] %v4420
    %4433 = vst [vmem:[#allocation19 + $0x20] sm:$0xff] %v4422
    %4434 = vst [vmem:[#allocation19 + $0x28] sm:$0xff] %v4424
    %4435 = vst [vmem:[#allocation19 + $0x30] sm:$0xff] %v4426
    %4436 = vst [vmem:[#allocation19 + $0x38] sm:$0xff] %v4428
    // Predicated region
    $region102: #{tpu_custom_call.1} parent=1 // pred_check
      _
    $region103: #{tpu_custom_call.1} parent=1 // pred_check_branch
      %4438 = sbr.rel (0) target = $region105
    $region104: #{tpu_custom_call.1} parent=1 // pred_region
      %s4440 = ssub.s32 1024, 1024
      %4441 = vsyncadd [#allocation4], %s4440
      %s4442 = sshll.u32 [#allocation19], 4
      %s4443 = int_to_ptr.vmem [resolvable:$true] %s4442
      %4448 = dma.vmem_to_hbm [thread:$0]  %s4443, 1024, %s15, [#allocation4], 512, 512, 32
    $region105: #{tpu_custom_call.1} parent=1 // pred_fallthru
      _
    // Predicated region
    $region106: #{tpu_custom_call.1} parent=1 // pred_check
      _
    $region107: #{tpu_custom_call.1} parent=1 // pred_check_branch
      %4450 = sbr.rel (0) target = $region109
    $region108: #{tpu_custom_call.1} parent=1 // pred_region
      %4451 = dma.done [#allocation4], 1024
    $region109: #{tpu_custom_call.1} parent=1 // pred_fallthru
      _
    %4452 = vsyncpa [#allocation3], 1
    %4453 = vsyncpa [#allocation6], 1
    %4454 = vsyncpa [#allocation9], 1
    %4455 = vsyncpa [#allocation12], 1
    %4456 = vsyncpa [#allocation15], 1
    %4457 = vsyncpa [#allocation18], 1
    %4458 = vsyncpa [#allocation4], 1

</llo_original>
